<compile_context>
chip_gen: v7x
topology: tpu7x:2x2x1
jax: 0.10.0
libtpu: 0.0.40
codegen_flags: <defaults>
</compile_context>

<pallas_src>
import functools

import jax
import jax.numpy as jnp
from jax import lax
from jax.experimental import pallas as pl
from jax.experimental.pallas import tpu as pltpu

K = 7                # AttentionGate kernel size
PAD = (K - 1) // 2   # = 3
BN_EPS = 1e-5


# ----------------------------------------------------------------------------
# Host-side band construction (tiny constants built from the weights).
# A "band" folds the kw (lane-direction) shifts + weights of a conv into a
# matrix so the conv becomes one MXU matmul per layer; the kh (row) shifts are
# folded into the matmul K dimension by lane-concatenating shifted copies.
# ----------------------------------------------------------------------------
def _conv3_band_flat(w, width):
    """w: (Cout, Cin, 3, 3) -> (3*Cin*width, Cout*width) band for the
    lane-dense (H, C*W) layout; row index = kh*(Cin*W) + ci*W + u."""
    cout, cin = w.shape[0], w.shape[1]
    shift = jnp.stack([jnp.eye(width, width, k=1 - kw, dtype=jnp.float32)
                       for kw in range(3)])                        # (3, W, W)
    band = jnp.einsum("oiyx,xuq->yiuoq", w.astype(jnp.float32), shift)
    return band.reshape(3 * cin * width, cout * width)


def _gate_band_flat(w, a2):
    """w: (1, 2, K, K) AttentionGate conv weight -> (2*K*a2, a2) band;
    row index = (p*K + kh)*a2 + u  with p=0 -> max plane, p=1 -> mean plane."""
    shift = jnp.stack([jnp.eye(a2, a2, k=PAD - kw, dtype=jnp.float32)
                       for kw in range(K)])                        # (K, a2, a2)
    band = jnp.einsum("pyx,xuq->pyuq", w[0].astype(jnp.float32), shift)
    return band.reshape(2 * K * a2, a2)


def _fold_bn(gamma, beta, mean, var, eps=BN_EPS):
    a = gamma / jnp.sqrt(var + eps)
    return a, beta - mean * a


# ----------------------------------------------------------------------------
# Fused kernel: conv0 -> res1 -> res2 -> TripletAttention, one batch element.
# ----------------------------------------------------------------------------
def _fused_kernel(gbias_ref, st_ref, band0_ref, band1_ref, band2_ref,
                  gbhw_ref, gbcw_ref, gbhc_ref, x_ref, o_ref):
    """Refs:
      gbias_ref : SMEM (3,)            folded gate-BN bias per TA branch
      st_ref    : VMEM (3, 2, Cout*W)  per-lane scale/offset per conv layer
      band*_ref : VMEM (3*Cin*W, Cout*W) banded 3x3 conv weights (kh in K dim)
      gb*_ref   : VMEM (2*K*A2, A2)    banded 7x7 gate conv (BN scale folded)
      x_ref     : VMEM (Cin, H, W)     NCHW input block
      o_ref     : VMEM (Cout, H, W)    NCHW output block
    """
    c_in, h_sz, w_sz = x_ref.shape
    c_out = o_ref.shape[0]

    def shift_rows(m, d):
        """y[i, :] = m[i + d, :], zero-filled outside [0, rows)."""
        if d == 0:
            return m
        n = m.shape[0]
        r = pltpu.roll(m, (-d) % n, axis=0)            # r[i] = m[(i + d) % n]
        idx = lax.broadcasted_iota(jnp.int32, m.shape, 0)
        return jnp.where((idx + d >= 0) & (idx + d < n), r, 0.0)

    def conv3(h, band_ref, st, relu, residual):
        """3x3 conv (+bias / folded eval BN) [+ReLU] [+residual], ONE matmul."""
        hs = jnp.concatenate([shift_rows(h, kh - 1) for kh in range(3)],
                             axis=1)                   # (H, 3*Cin_l*W)
        y = jnp.dot(hs, band_ref[...], preferred_element_type=jnp.float32)
        y = y * st[0:1, :] + st[1:2, :]
        if relu:
            y = jnp.maximum(y, 0.0)
        if residual:
            y = y + h
        return y

    def gate(pmax, pmean, band_ref, bias):
        """7x7 (2->1 ch) conv + folded BN + exact sigmoid, ONE matmul."""
        parts = [shift_rows(pmax, kh - PAD) for kh in range(K)]
        parts += [shift_rows(pmean, kh - PAD) for kh in range(K)]
        p = jnp.concatenate(parts, axis=1)             # (A1, 2*K*A2)
        y = jnp.dot(p, band_ref[...], preferred_element_type=jnp.float32) + bias
        return 0.5 + 0.5 * jnp.tanh(0.5 * y)           # sigmoid, one EUP op

    # ---- NCHW -> lane-dense (H, Cin*W); relayout on the idle XLU ----------
    x = x_ref[...].astype(jnp.float32)                 # (Cin, H, W)
    xl = jnp.concatenate([x[c] for c in range(c_in)], axis=1)   # (H, Cin*W)

    # ---- conv0 -> res1 -> res2; activation stays resident -----------------
    h = conv3(xl, band0_ref, st_ref[0], relu=False, residual=False)
    h = conv3(h, band1_ref, st_ref[1], relu=True, residual=True)
    h = conv3(h, band2_ref, st_ref[2], relu=True, residual=True)  # (H, Cout*W)

    # ---- TripletAttention: all three ZPools from the lane-dense view ------
    cols = [h[:, c * w_sz:(c + 1) * w_sz] for c in range(c_out)]  # C x (H, W)
    mx_hw = functools.reduce(jnp.maximum, cols)                   # (H, W)
    mn_hw = functools.reduce(lambda a, b: a + b, cols) * (1.0 / c_out)
    mx_cw = jnp.concatenate([jnp.max(c_, axis=0, keepdims=True)
                             for c_ in cols], axis=0)             # (C, W)
    mn_cw = jnp.concatenate([jnp.mean(c_, axis=0, keepdims=True)
                             for c_ in cols], axis=0)
    mx_hc = jnp.concatenate([jnp.max(c_, axis=1, keepdims=True)
                             for c_ in cols], axis=1)             # (H, C)
    mn_hc = jnp.concatenate([jnp.mean(c_, axis=1, keepdims=True)
                             for c_ in cols], axis=1)

    g_hw = gate(mx_hw, mn_hw, gbhw_ref, gbias_ref[0])             # (H, W)
    g_cw = gate(mx_cw, mn_cw, gbcw_ref, gbias_ref[1])             # (C, W)
    g_hc = gate(mx_hc, mn_hc, gbhc_ref, gbias_ref[2])             # (H, C)

    # ---- out = x * (g_hw + g_cw + g_hc) / 3, lane-dense multiply ----------
    g_hw_t = jnp.concatenate([g_hw] * c_out, axis=1)              # (H, C*W)
    g_cw_t = jnp.concatenate([g_cw[c:c + 1, :] for c in range(c_out)],
                             axis=1)                              # (1, C*W)
    g_hc_t = jnp.concatenate([jnp.broadcast_to(g_hc[:, c:c + 1], (h_sz, w_sz))
                              for c in range(c_out)], axis=1)     # (H, C*W)
    out_l = h * ((g_hw_t + g_cw_t + g_hc_t) * (1.0 / 3.0))

    # ---- store NCHW directly (no host-side transpose pass) ----------------
    for c in range(c_out):
        o_ref[c] = out_l[:, c * w_sz:(c + 1) * w_sz].astype(o_ref.dtype)


# ----------------------------------------------------------------------------
# Full conv_block_i forward (eval mode) : one fused pallas_call.
# ----------------------------------------------------------------------------
def conv_block_i_forward(x, params):
    """x: (B, ch_in, H, W) NCHW -> (B, ch_out, H, W)."""
    b_sz, c_in, h_sz, w_sz = x.shape
    c_out = params["conv0"]["w"].shape[0]

    # banded 3x3 conv weights (kh folded into the matmul K dimension)
    band0 = _conv3_band_flat(params["conv0"]["w"], w_sz)
    band1 = _conv3_band_flat(params["res1"]["conv"]["w"], w_sz)
    band2 = _conv3_band_flat(params["res2"]["conv"]["w"], w_sz)

    # per-output-lane scale/offset: conv0 = (1, bias); res = folded eval BN
    def res_scale_offset(p):
        a, b0 = _fold_bn(p["bn"]["gamma"], p["bn"]["beta"],
                         p["bn"]["mean"], p["bn"]["var"])
        return a, a * p["conv"]["b"] + b0

    layer_so = [(jnp.ones((c_out,), jnp.float32), params["conv0"]["b"]),
                res_scale_offset(params["res1"]),
                res_scale_offset(params["res2"])]
    st = jnp.stack([jnp.stack([jnp.repeat(s.astype(jnp.float32), w_sz),
                               jnp.repeat(o.astype(jnp.float32), w_sz)])
                    for (s, o) in layer_so])                      # (3, 2, Cout*W)

    # gate bands (BN scale folded in) + gate biases (SMEM scalars)
    def gate_prep(p, a2):
        a, b0 = _fold_bn(p["gamma"], p["beta"], p["mean"], p["var"])
        return _gate_band_flat(p["w"], a2) * a, b0

    gb_hw, bias_hw = gate_prep(params["ta"]["hw"], w_sz)   # conv over (H, W)
    gb_cw, bias_cw = gate_prep(params["ta"]["cw"], w_sz)   # conv over (C, W)
    gb_hc, bias_hc = gate_prep(params["ta"]["hc"], c_out)  # conv over (H, C)
    gbias = jnp.stack([bias_hw, bias_cw, bias_hc]).astype(jnp.float32)

    return pl.pallas_call(
        _fused_kernel,
        out_shape=jax.ShapeDtypeStruct((b_sz, c_out, h_sz, w_sz), x.dtype),
        grid=(b_sz,),
        in_specs=[
            pl.BlockSpec(memory_space=pltpu.MemorySpace.SMEM),       # gbias
            pl.BlockSpec(st.shape, lambda b: (0, 0, 0)),             # st
            pl.BlockSpec(band0.shape, lambda b: (0, 0)),
            pl.BlockSpec(band1.shape, lambda b: (0, 0)),
            pl.BlockSpec(band2.shape, lambda b: (0, 0)),
            pl.BlockSpec(gb_hw.shape, lambda b: (0, 0)),
            pl.BlockSpec(gb_cw.shape, lambda b: (0, 0)),
            pl.BlockSpec(gb_hc.shape, lambda b: (0, 0)),
            pl.BlockSpec((None, c_in, h_sz, w_sz), lambda b: (b, 0, 0, 0)),
        ],
        out_specs=pl.BlockSpec((None, c_out, h_sz, w_sz),
                               lambda b: (b, 0, 0, 0)),
        compiler_params=pltpu.CompilerParams(
            dimension_semantics=("parallel",),        # B=2 -> both v7x TCs busy
            vmem_limit_bytes=32 * 1024 * 1024),
    )(gbias, st, band0, band1, band2, gb_hw, gb_cw, gb_hc, x)


# ----------------------- pure-JAX reference (for checking) -------------------
def _conv3_ref(x, p):
    y = lax.conv_general_dilated(
        x, p["w"], (1, 1), [(1, 1), (1, 1)],
        dimension_numbers=("NCHW", "OIHW", "NCHW"),
        precision=lax.Precision.HIGHEST)
    return y + p["b"][None, :, None, None]


def _bn_ref(y, p, eps=BN_EPS):
    return ((y - p["mean"][None, :, None, None])
            / jnp.sqrt(p["var"][None, :, None, None] + eps)
            * p["gamma"][None, :, None, None] + p["beta"][None, :, None, None])


def _gate_ref(x, p, eps=BN_EPS):
    zmax = jnp.max(x, axis=1, keepdims=True)
    zmean = jnp.mean(x, axis=1, keepdims=True)
    zp = jnp.concatenate([zmax, zmean], axis=1)
    conv = lax.conv_general_dilated(
        zp, p["w"], (1, 1), [(PAD, PAD), (PAD, PAD)],
        dimension_numbers=("NCHW", "OIHW", "NCHW"),
        precision=lax.Precision.HIGHEST)
    y = (conv - p["mean"]) / jnp.sqrt(p["var"] + eps) * p["gamma"] + p["beta"]
    return x * jax.nn.sigmoid(y)


def _ta_ref(x, tp):
    y_hw = _gate_ref(x, tp["hw"])
    y_cw = jnp.transpose(_gate_ref(jnp.transpose(x, (0, 2, 1, 3)), tp["cw"]),
                         (0, 2, 1, 3))
    y_hc = jnp.transpose(_gate_ref(jnp.transpose(x, (0, 3, 2, 1)), tp["hc"]),
                         (0, 3, 2, 1))
    return (y_hw + y_cw + y_hc) / 3.0


def conv_block_i_ref(x, params):
    h = _conv3_ref(x, params["conv0"])
    y = h + jax.nn.relu(_bn_ref(_conv3_ref(h, params["res1"]["conv"]),
                                params["res1"]["bn"]))
    z = y + jax.nn.relu(_bn_ref(_conv3_ref(y, params["res2"]["conv"]),
                                params["res2"]["bn"]))
    return _ta_ref(z, params["ta"])


# -----------------------------------------------------------------------------
if __name__ == "__main__":
    key = jax.random.PRNGKey(0)
    keys = jax.random.split(key, 10)
    B, CIN, COUT, H, W = 2, 4, 8, 16, 16
    x = jax.random.normal(keys[0], (B, CIN, H, W), dtype=jnp.float32)

    def conv_params(k, cin, cout):
        k1, k2 = jax.random.split(k)
        return {"w": 0.15 * jax.random.normal(k1, (cout, cin, 3, 3), jnp.float32),
                "b": 0.1 * jax.random.normal(k2, (cout,), jnp.float32)}

    def bn_params(k, c):
        k1, k2, k3, k4 = jax.random.split(k, 4)
        return {"gamma": 1.0 + 0.1 * jax.random.normal(k1, (c,), jnp.float32),
                "beta": 0.1 * jax.random.normal(k2, (c,), jnp.float32),
                "mean": 0.1 * jax.random.normal(k3, (c,), jnp.float32),
                "var": jax.random.uniform(k4, (c,), jnp.float32, 0.5, 1.5)}

    def gate_params(k):
        k1, k2 = jax.random.split(k)
        return {"w": 0.1 * jax.random.normal(k1, (1, 2, K, K), jnp.float32),
                "gamma": 1.0 + 0.1 * jax.random.normal(k2, (), jnp.float32),
                "beta": jnp.float32(0.05),
                "mean": jnp.float32(0.02),
                "var": jnp.float32(1.1)}

    params = {
        "conv0": conv_params(keys[1], CIN, COUT),
        "res1": {"conv": conv_params(keys[2], COUT, COUT),
                 "bn": bn_params(keys[3], COUT)},
        "res2": {"conv": conv_params(keys[4], COUT, COUT),
                 "bn": bn_params(keys[5], COUT)},
        "ta": {"hw": gate_params(keys[6]),
               "cw": gate_params(keys[7]),
               "hc": gate_params(keys[8])},
    }

    out = jax.jit(conv_block_i_forward)(x, params)
    out = jax.block_until_ready(out)

    ref = conv_block_i_ref(x, params)
    assert out.shape == (B, COUT, H, W)
    max_err = float(jnp.max(jnp.abs(out - ref)))
    # tolerance budgets DEFAULT-precision (single-pass bf16) MXU matmuls vs the
    # HIGHEST-precision XLA reference convs; the sigmoid itself is exact now.
    assert jnp.allclose(out, ref, rtol=2e-2, atol=2e-2), max_err

    print("KERNEL_OK")
</pallas_src>

<mosaic_0001>
module attributes {stable_mosaic.version = 11 : i64} {
  func.func @_fused_kernel(%arg0: i32, %arg1: memref<3xf32, #tpu.memory_space<smem>>, %arg2: memref<3x2x128xf32, #tpu.memory_space<vmem>>, %arg3: memref<192x128xf32, #tpu.memory_space<vmem>>, %arg4: memref<384x128xf32, #tpu.memory_space<vmem>>, %arg5: memref<384x128xf32, #tpu.memory_space<vmem>>, %arg6: memref<224x16xf32, #tpu.memory_space<vmem>>, %arg7: memref<224x16xf32, #tpu.memory_space<vmem>>, %arg8: memref<112x8xf32, #tpu.memory_space<vmem>>, %arg9: memref<1x4x16x16xf32, #tpu.memory_space<vmem>>, %arg10: memref<1x8x16x16xf32, #tpu.memory_space<vmem>>) attributes {dimension_semantics = [#tpu.dimension_semantics<parallel>], iteration_bounds = array<i64: 2>, scalar_prefetch = 0 : i64, scratch_operands = 0 : i64, tpu.core_type = #tpu.core_type<tc>, window_params = [{transform_indices = @transform_0, window_bounds = array<i64: 3>}, {pipeline_mode = #tpu.pipeline_mode<synchronous>, transform_indices = @transform_1, window_bounds = array<i64: 3, 2, 128>}, {pipeline_mode = #tpu.pipeline_mode<synchronous>, transform_indices = @transform_2, window_bounds = array<i64: 192, 128>}, {pipeline_mode = #tpu.pipeline_mode<synchronous>, transform_indices = @transform_3, window_bounds = array<i64: 384, 128>}, {pipeline_mode = #tpu.pipeline_mode<synchronous>, transform_indices = @transform_4, window_bounds = array<i64: 384, 128>}, {pipeline_mode = #tpu.pipeline_mode<synchronous>, transform_indices = @transform_5, window_bounds = array<i64: 224, 16>}, {pipeline_mode = #tpu.pipeline_mode<synchronous>, transform_indices = @transform_6, window_bounds = array<i64: 224, 16>}, {pipeline_mode = #tpu.pipeline_mode<synchronous>, transform_indices = @transform_7, window_bounds = array<i64: 112, 8>}, {transform_indices = @transform_8, window_bounds = array<i64: 1, 4, 16, 16>}, {transform_indices = @transform_9, window_bounds = array<i64: 1, 8, 16, 16>}]} {
    %c0 = arith.constant 0 : index
    %c0_0 = arith.constant 0 : index
    %c0_1 = arith.constant 0 : index
    %c0_2 = arith.constant 0 : index
    %0 = vector.load %arg9[%c0, %c0_0, %c0_1, %c0_2] : memref<1x4x16x16xf32, #tpu.memory_space<vmem>>, vector<1x4x16x16xf32>
    %1 = vector.shape_cast %0 : vector<1x4x16x16xf32> to vector<4x16x16xf32>
    %2 = vector.extract_strided_slice %1 {offsets = [0, 0, 0], sizes = [1, 16, 16], strides = [1, 1, 1]} : vector<4x16x16xf32> to vector<1x16x16xf32>
    %3 = vector.shape_cast %2 : vector<1x16x16xf32> to vector<16x16xf32>
    %4 = vector.extract_strided_slice %1 {offsets = [1, 0, 0], sizes = [1, 16, 16], strides = [1, 1, 1]} : vector<4x16x16xf32> to vector<1x16x16xf32>
    %5 = vector.shape_cast %4 : vector<1x16x16xf32> to vector<16x16xf32>
    %6 = vector.extract_strided_slice %1 {offsets = [2, 0, 0], sizes = [1, 16, 16], strides = [1, 1, 1]} : vector<4x16x16xf32> to vector<1x16x16xf32>
    %7 = vector.shape_cast %6 : vector<1x16x16xf32> to vector<16x16xf32>
    %8 = vector.extract_strided_slice %1 {offsets = [3, 0, 0], sizes = [1, 16, 16], strides = [1, 1, 1]} : vector<4x16x16xf32> to vector<1x16x16xf32>
    %9 = vector.shape_cast %8 : vector<1x16x16xf32> to vector<16x16xf32>
    %10 = tpu.concatenate %3, %5, %7, %9 in 1 : vector<16x16xf32>, vector<16x16xf32>, vector<16x16xf32>, vector<16x16xf32> -> vector<16x64xf32>
    %c0_3 = arith.constant 0 : index
    %c0_4 = arith.constant 0 : index
    %c0_5 = arith.constant 0 : index
    %11 = vector.load %arg2[%c0_3, %c0_4, %c0_5] : memref<3x2x128xf32, #tpu.memory_space<vmem>>, vector<1x2x128xf32>
    %12 = vector.shape_cast %11 : vector<1x2x128xf32> to vector<2x128xf32>
    %c1_i32 = arith.constant 1 : i32
    %13 = tpu.dynamic_rotate %10 by %c1_i32 dim 0 : vector<16x64xf32>, i32 -> vector<16x64xf32>
    %14 = tpu.iota {dimensions = array<i32: 0>} : vector<16x64xi32>
    %c-1_i32 = arith.constant -1 : i32
    %15 = vector.broadcast %c-1_i32 : i32 to vector<16x64xi32>
    %16 = arith.addi %14, %15 : vector<16x64xi32>
    %c0_i32 = arith.constant 0 : i32
    %17 = vector.broadcast %c0_i32 : i32 to vector<16x64xi32>
    %18 = arith.cmpi sge, %16, %17 : vector<16x64xi32>
    %c-1_i32_6 = arith.constant -1 : i32
    %19 = vector.broadcast %c-1_i32_6 : i32 to vector<16x64xi32>
    %20 = arith.addi %14, %19 : vector<16x64xi32>
    %c16_i32 = arith.constant 16 : i32
    %21 = vector.broadcast %c16_i32 : i32 to vector<16x64xi32>
    %22 = arith.cmpi slt, %20, %21 : vector<16x64xi32>
    %23 = arith.andi %18, %22 : vector<16x64xi1>
    %cst = arith.constant 0.000000e+00 : f32
    %24 = vector.broadcast %cst : f32 to vector<16x64xf32>
    %25 = arith.select %23, %13, %24 : vector<16x64xi1>, vector<16x64xf32>
    %c15_i32 = arith.constant 15 : i32
    %26 = tpu.dynamic_rotate %10 by %c15_i32 dim 0 : vector<16x64xf32>, i32 -> vector<16x64xf32>
    %27 = tpu.iota {dimensions = array<i32: 0>} : vector<16x64xi32>
    %c1_i32_7 = arith.constant 1 : i32
    %28 = vector.broadcast %c1_i32_7 : i32 to vector<16x64xi32>
    %29 = arith.addi %27, %28 : vector<16x64xi32>
    %c0_i32_8 = arith.constant 0 : i32
    %30 = vector.broadcast %c0_i32_8 : i32 to vector<16x64xi32>
    %31 = arith.cmpi sge, %29, %30 : vector<16x64xi32>
    %c1_i32_9 = arith.constant 1 : i32
    %32 = vector.broadcast %c1_i32_9 : i32 to vector<16x64xi32>
    %33 = arith.addi %27, %32 : vector<16x64xi32>
    %c16_i32_10 = arith.constant 16 : i32
    %34 = vector.broadcast %c16_i32_10 : i32 to vector<16x64xi32>
    %35 = arith.cmpi slt, %33, %34 : vector<16x64xi32>
    %36 = arith.andi %31, %35 : vector<16x64xi1>
    %cst_11 = arith.constant 0.000000e+00 : f32
    %37 = vector.broadcast %cst_11 : f32 to vector<16x64xf32>
    %38 = arith.select %36, %26, %37 : vector<16x64xi1>, vector<16x64xf32>
    %39 = tpu.concatenate %25, %10, %38 in 1 : vector<16x64xf32>, vector<16x64xf32>, vector<16x64xf32> -> vector<16x192xf32>
    %c0_12 = arith.constant 0 : index
    %c0_13 = arith.constant 0 : index
    %40 = vector.load %arg3[%c0_12, %c0_13] : memref<192x128xf32, #tpu.memory_space<vmem>>, vector<192x128xf32>
    %cst_14 = arith.constant dense<0.000000e+00> : vector<16x128xf32>
    %41 = tpu.matmul %39, %40, %cst_14 {dimension_numbers = #tpu.dot_dimension_numbers<[1], [0], [0], [1], [0, 0, 1, 1], [], []>} : vector<16x192xf32>, vector<192x128xf32>, vector<16x128xf32> -> vector<16x128xf32>
    %42 = vector.extract_strided_slice %12 {offsets = [0, 0], sizes = [1, 128], strides = [1, 1]} : vector<2x128xf32> to vector<1x128xf32>
    %43 = vector.broadcast %42 : vector<1x128xf32> to vector<16x128xf32>
    %44 = arith.mulf %41, %43 : vector<16x128xf32>
    %45 = vector.extract_strided_slice %12 {offsets = [1, 0], sizes = [1, 128], strides = [1, 1]} : vector<2x128xf32> to vector<1x128xf32>
    %46 = vector.broadcast %45 : vector<1x128xf32> to vector<16x128xf32>
    %47 = arith.addf %44, %46 : vector<16x128xf32>
    %c1 = arith.constant 1 : index
    %c0_15 = arith.constant 0 : index
    %c0_16 = arith.constant 0 : index
    %48 = vector.load %arg2[%c1, %c0_15, %c0_16] : memref<3x2x128xf32, #tpu.memory_space<vmem>>, vector<1x2x128xf32>
    %49 = vector.shape_cast %48 : vector<1x2x128xf32> to vector<2x128xf32>
    %c1_i32_17 = arith.constant 1 : i32
    %50 = tpu.dynamic_rotate %47 by %c1_i32_17 dim 0 : vector<16x128xf32>, i32 -> vector<16x128xf32>
    %51 = tpu.iota {dimensions = array<i32: 0>} : vector<16x128xi32>
    %c-1_i32_18 = arith.constant -1 : i32
    %52 = vector.broadcast %c-1_i32_18 : i32 to vector<16x128xi32>
    %53 = arith.addi %51, %52 : vector<16x128xi32>
    %c0_i32_19 = arith.constant 0 : i32
    %54 = vector.broadcast %c0_i32_19 : i32 to vector<16x128xi32>
    %55 = arith.cmpi sge, %53, %54 : vector<16x128xi32>
    %c-1_i32_20 = arith.constant -1 : i32
    %56 = vector.broadcast %c-1_i32_20 : i32 to vector<16x128xi32>
    %57 = arith.addi %51, %56 : vector<16x128xi32>
    %c16_i32_21 = arith.constant 16 : i32
    %58 = vector.broadcast %c16_i32_21 : i32 to vector<16x128xi32>
    %59 = arith.cmpi slt, %57, %58 : vector<16x128xi32>
    %60 = arith.andi %55, %59 : vector<16x128xi1>
    %cst_22 = arith.constant 0.000000e+00 : f32
    %61 = vector.broadcast %cst_22 : f32 to vector<16x128xf32>
    %62 = arith.select %60, %50, %61 : vector<16x128xi1>, vector<16x128xf32>
    %c15_i32_23 = arith.constant 15 : i32
    %63 = tpu.dynamic_rotate %47 by %c15_i32_23 dim 0 : vector<16x128xf32>, i32 -> vector<16x128xf32>
    %64 = tpu.iota {dimensions = array<i32: 0>} : vector<16x128xi32>
    %c1_i32_24 = arith.constant 1 : i32
    %65 = vector.broadcast %c1_i32_24 : i32 to vector<16x128xi32>
    %66 = arith.addi %64, %65 : vector<16x128xi32>
    %c0_i32_25 = arith.constant 0 : i32
    %67 = vector.broadcast %c0_i32_25 : i32 to vector<16x128xi32>
    %68 = arith.cmpi sge, %66, %67 : vector<16x128xi32>
    %c1_i32_26 = arith.constant 1 : i32
    %69 = vector.broadcast %c1_i32_26 : i32 to vector<16x128xi32>
    %70 = arith.addi %64, %69 : vector<16x128xi32>
    %c16_i32_27 = arith.constant 16 : i32
    %71 = vector.broadcast %c16_i32_27 : i32 to vector<16x128xi32>
    %72 = arith.cmpi slt, %70, %71 : vector<16x128xi32>
    %73 = arith.andi %68, %72 : vector<16x128xi1>
    %cst_28 = arith.constant 0.000000e+00 : f32
    %74 = vector.broadcast %cst_28 : f32 to vector<16x128xf32>
    %75 = arith.select %73, %63, %74 : vector<16x128xi1>, vector<16x128xf32>
    %76 = tpu.concatenate %62, %47, %75 in 1 : vector<16x128xf32>, vector<16x128xf32>, vector<16x128xf32> -> vector<16x384xf32>
    %c0_29 = arith.constant 0 : index
    %c0_30 = arith.constant 0 : index
    %77 = vector.load %arg4[%c0_29, %c0_30] : memref<384x128xf32, #tpu.memory_space<vmem>>, vector<384x128xf32>
    %cst_31 = arith.constant dense<0.000000e+00> : vector<16x128xf32>
    %78 = tpu.matmul %76, %77, %cst_31 {dimension_numbers = #tpu.dot_dimension_numbers<[1], [0], [0], [1], [0, 0, 1, 1], [], []>} : vector<16x384xf32>, vector<384x128xf32>, vector<16x128xf32> -> vector<16x128xf32>
    %79 = vector.extract_strided_slice %49 {offsets = [0, 0], sizes = [1, 128], strides = [1, 1]} : vector<2x128xf32> to vector<1x128xf32>
    %80 = vector.broadcast %79 : vector<1x128xf32> to vector<16x128xf32>
    %81 = arith.mulf %78, %80 : vector<16x128xf32>
    %82 = vector.extract_strided_slice %49 {offsets = [1, 0], sizes = [1, 128], strides = [1, 1]} : vector<2x128xf32> to vector<1x128xf32>
    %83 = vector.broadcast %82 : vector<1x128xf32> to vector<16x128xf32>
    %84 = arith.addf %81, %83 : vector<16x128xf32>
    %cst_32 = arith.constant 0.000000e+00 : f32
    %85 = vector.broadcast %cst_32 : f32 to vector<16x128xf32>
    %86 = arith.maximumf %84, %85 : vector<16x128xf32>
    %87 = arith.addf %86, %47 : vector<16x128xf32>
    %c2 = arith.constant 2 : index
    %c0_33 = arith.constant 0 : index
    %c0_34 = arith.constant 0 : index
    %88 = vector.load %arg2[%c2, %c0_33, %c0_34] : memref<3x2x128xf32, #tpu.memory_space<vmem>>, vector<1x2x128xf32>
    %89 = vector.shape_cast %88 : vector<1x2x128xf32> to vector<2x128xf32>
    %c1_i32_35 = arith.constant 1 : i32
    %90 = tpu.dynamic_rotate %87 by %c1_i32_35 dim 0 : vector<16x128xf32>, i32 -> vector<16x128xf32>
    %91 = tpu.iota {dimensions = array<i32: 0>} : vector<16x128xi32>
    %c-1_i32_36 = arith.constant -1 : i32
    %92 = vector.broadcast %c-1_i32_36 : i32 to vector<16x128xi32>
    %93 = arith.addi %91, %92 : vector<16x128xi32>
    %c0_i32_37 = arith.constant 0 : i32
    %94 = vector.broadcast %c0_i32_37 : i32 to vector<16x128xi32>
    %95 = arith.cmpi sge, %93, %94 : vector<16x128xi32>
    %c-1_i32_38 = arith.constant -1 : i32
    %96 = vector.broadcast %c-1_i32_38 : i32 to vector<16x128xi32>
    %97 = arith.addi %91, %96 : vector<16x128xi32>
    %c16_i32_39 = arith.constant 16 : i32
    %98 = vector.broadcast %c16_i32_39 : i32 to vector<16x128xi32>
    %99 = arith.cmpi slt, %97, %98 : vector<16x128xi32>
    %100 = arith.andi %95, %99 : vector<16x128xi1>
    %cst_40 = arith.constant 0.000000e+00 : f32
    %101 = vector.broadcast %cst_40 : f32 to vector<16x128xf32>
    %102 = arith.select %100, %90, %101 : vector<16x128xi1>, vector<16x128xf32>
    %c15_i32_41 = arith.constant 15 : i32
    %103 = tpu.dynamic_rotate %87 by %c15_i32_41 dim 0 : vector<16x128xf32>, i32 -> vector<16x128xf32>
    %104 = tpu.iota {dimensions = array<i32: 0>} : vector<16x128xi32>
    %c1_i32_42 = arith.constant 1 : i32
    %105 = vector.broadcast %c1_i32_42 : i32 to vector<16x128xi32>
    %106 = arith.addi %104, %105 : vector<16x128xi32>
    %c0_i32_43 = arith.constant 0 : i32
    %107 = vector.broadcast %c0_i32_43 : i32 to vector<16x128xi32>
    %108 = arith.cmpi sge, %106, %107 : vector<16x128xi32>
    %c1_i32_44 = arith.constant 1 : i32
    %109 = vector.broadcast %c1_i32_44 : i32 to vector<16x128xi32>
    %110 = arith.addi %104, %109 : vector<16x128xi32>
    %c16_i32_45 = arith.constant 16 : i32
    %111 = vector.broadcast %c16_i32_45 : i32 to vector<16x128xi32>
    %112 = arith.cmpi slt, %110, %111 : vector<16x128xi32>
    %113 = arith.andi %108, %112 : vector<16x128xi1>
    %cst_46 = arith.constant 0.000000e+00 : f32
    %114 = vector.broadcast %cst_46 : f32 to vector<16x128xf32>
    %115 = arith.select %113, %103, %114 : vector<16x128xi1>, vector<16x128xf32>
    %116 = tpu.concatenate %102, %87, %115 in 1 : vector<16x128xf32>, vector<16x128xf32>, vector<16x128xf32> -> vector<16x384xf32>
    %c0_47 = arith.constant 0 : index
    %c0_48 = arith.constant 0 : index
    %117 = vector.load %arg5[%c0_47, %c0_48] : memref<384x128xf32, #tpu.memory_space<vmem>>, vector<384x128xf32>
    %cst_49 = arith.constant dense<0.000000e+00> : vector<16x128xf32>
    %118 = tpu.matmul %116, %117, %cst_49 {dimension_numbers = #tpu.dot_dimension_numbers<[1], [0], [0], [1], [0, 0, 1, 1], [], []>} : vector<16x384xf32>, vector<384x128xf32>, vector<16x128xf32> -> vector<16x128xf32>
    %119 = vector.extract_strided_slice %89 {offsets = [0, 0], sizes = [1, 128], strides = [1, 1]} : vector<2x128xf32> to vector<1x128xf32>
    %120 = vector.broadcast %119 : vector<1x128xf32> to vector<16x128xf32>
    %121 = arith.mulf %118, %120 : vector<16x128xf32>
    %122 = vector.extract_strided_slice %89 {offsets = [1, 0], sizes = [1, 128], strides = [1, 1]} : vector<2x128xf32> to vector<1x128xf32>
    %123 = vector.broadcast %122 : vector<1x128xf32> to vector<16x128xf32>
    %124 = arith.addf %121, %123 : vector<16x128xf32>
    %cst_50 = arith.constant 0.000000e+00 : f32
    %125 = vector.broadcast %cst_50 : f32 to vector<16x128xf32>
    %126 = arith.maximumf %124, %125 : vector<16x128xf32>
    %127 = arith.addf %126, %87 : vector<16x128xf32>
    %128 = vector.extract_strided_slice %127 {offsets = [0, 0], sizes = [16, 16], strides = [1, 1]} : vector<16x128xf32> to vector<16x16xf32>
    %129 = vector.extract_strided_slice %127 {offsets = [0, 16], sizes = [16, 16], strides = [1, 1]} : vector<16x128xf32> to vector<16x16xf32>
    %130 = vector.extract_strided_slice %127 {offsets = [0, 32], sizes = [16, 16], strides = [1, 1]} : vector<16x128xf32> to vector<16x16xf32>
    %131 = vector.extract_strided_slice %127 {offsets = [0, 48], sizes = [16, 16], strides = [1, 1]} : vector<16x128xf32> to vector<16x16xf32>
    %132 = vector.extract_strided_slice %127 {offsets = [0, 64], sizes = [16, 16], strides = [1, 1]} : vector<16x128xf32> to vector<16x16xf32>
    %133 = vector.extract_strided_slice %127 {offsets = [0, 80], sizes = [16, 16], strides = [1, 1]} : vector<16x128xf32> to vector<16x16xf32>
    %134 = vector.extract_strided_slice %127 {offsets = [0, 96], sizes = [16, 16], strides = [1, 1]} : vector<16x128xf32> to vector<16x16xf32>
    %135 = vector.extract_strided_slice %127 {offsets = [0, 112], sizes = [16, 16], strides = [1, 1]} : vector<16x128xf32> to vector<16x16xf32>
    %136 = arith.maximumf %128, %129 : vector<16x16xf32>
    %137 = arith.maximumf %136, %130 : vector<16x16xf32>
    %138 = arith.maximumf %137, %131 : vector<16x16xf32>
    %139 = arith.maximumf %138, %132 : vector<16x16xf32>
    %140 = arith.maximumf %139, %133 : vector<16x16xf32>
    %141 = arith.maximumf %140, %134 : vector<16x16xf32>
    %142 = arith.maximumf %141, %135 : vector<16x16xf32>
    %143 = arith.addf %128, %129 : vector<16x16xf32>
    %144 = arith.addf %143, %130 : vector<16x16xf32>
    %145 = arith.addf %144, %131 : vector<16x16xf32>
    %146 = arith.addf %145, %132 : vector<16x16xf32>
    %147 = arith.addf %146, %133 : vector<16x16xf32>
    %148 = arith.addf %147, %134 : vector<16x16xf32>
    %149 = arith.addf %148, %135 : vector<16x16xf32>
    %cst_51 = arith.constant 1.250000e-01 : f32
    %150 = vector.broadcast %cst_51 : f32 to vector<16x16xf32>
    %151 = arith.mulf %149, %150 : vector<16x16xf32>
    %cst_52 = arith.constant dense<0xFF800000> : vector<16xf32>
    %152 = vector.multi_reduction <maximumf>, %128, %cst_52 [0] : vector<16x16xf32> to vector<16xf32>
    %153 = vector.shape_cast %152 : vector<16xf32> to vector<1x16xf32>
    %cst_53 = arith.constant dense<0xFF800000> : vector<16xf32>
    %154 = vector.multi_reduction <maximumf>, %129, %cst_53 [0] : vector<16x16xf32> to vector<16xf32>
    %155 = vector.shape_cast %154 : vector<16xf32> to vector<1x16xf32>
    %cst_54 = arith.constant dense<0xFF800000> : vector<16xf32>
    %156 = vector.multi_reduction <maximumf>, %130, %cst_54 [0] : vector<16x16xf32> to vector<16xf32>
    %157 = vector.shape_cast %156 : vector<16xf32> to vector<1x16xf32>
    %cst_55 = arith.constant dense<0xFF800000> : vector<16xf32>
    %158 = vector.multi_reduction <maximumf>, %131, %cst_55 [0] : vector<16x16xf32> to vector<16xf32>
    %159 = vector.shape_cast %158 : vector<16xf32> to vector<1x16xf32>
    %cst_56 = arith.constant dense<0xFF800000> : vector<16xf32>
    %160 = vector.multi_reduction <maximumf>, %132, %cst_56 [0] : vector<16x16xf32> to vector<16xf32>
    %161 = vector.shape_cast %160 : vector<16xf32> to vector<1x16xf32>
    %cst_57 = arith.constant dense<0xFF800000> : vector<16xf32>
    %162 = vector.multi_reduction <maximumf>, %133, %cst_57 [0] : vector<16x16xf32> to vector<16xf32>
    %163 = vector.shape_cast %162 : vector<16xf32> to vector<1x16xf32>
    %cst_58 = arith.constant dense<0xFF800000> : vector<16xf32>
    %164 = vector.multi_reduction <maximumf>, %134, %cst_58 [0] : vector<16x16xf32> to vector<16xf32>
    %165 = vector.shape_cast %164 : vector<16xf32> to vector<1x16xf32>
    %cst_59 = arith.constant dense<0xFF800000> : vector<16xf32>
    %166 = vector.multi_reduction <maximumf>, %135, %cst_59 [0] : vector<16x16xf32> to vector<16xf32>
    %167 = vector.shape_cast %166 : vector<16xf32> to vector<1x16xf32>
    %168 = tpu.concatenate %153, %155, %157, %159, %161, %163, %165, %167 in 0 : vector<1x16xf32>, vector<1x16xf32>, vector<1x16xf32>, vector<1x16xf32>, vector<1x16xf32>, vector<1x16xf32>, vector<1x16xf32>, vector<1x16xf32> -> vector<8x16xf32>
    %cst_60 = arith.constant dense<0.000000e+00> : vector<16xf32>
    %169 = vector.multi_reduction <add>, %128, %cst_60 [0] : vector<16x16xf32> to vector<16xf32>
    %170 = vector.shape_cast %169 : vector<16xf32> to vector<1x16xf32>
    %cst_61 = arith.constant 1.600000e+01 : f32
    %171 = vector.broadcast %cst_61 : f32 to vector<1x16xf32>
    %172 = arith.divf %170, %171 : vector<1x16xf32>
    %cst_62 = arith.constant dense<0.000000e+00> : vector<16xf32>
    %173 = vector.multi_reduction <add>, %129, %cst_62 [0] : vector<16x16xf32> to vector<16xf32>
    %174 = vector.shape_cast %173 : vector<16xf32> to vector<1x16xf32>
    %cst_63 = arith.constant 1.600000e+01 : f32
    %175 = vector.broadcast %cst_63 : f32 to vector<1x16xf32>
    %176 = arith.divf %174, %175 : vector<1x16xf32>
    %cst_64 = arith.constant dense<0.000000e+00> : vector<16xf32>
    %177 = vector.multi_reduction <add>, %130, %cst_64 [0] : vector<16x16xf32> to vector<16xf32>
    %178 = vector.shape_cast %177 : vector<16xf32> to vector<1x16xf32>
    %cst_65 = arith.constant 1.600000e+01 : f32
    %179 = vector.broadcast %cst_65 : f32 to vector<1x16xf32>
    %180 = arith.divf %178, %179 : vector<1x16xf32>
    %cst_66 = arith.constant dense<0.000000e+00> : vector<16xf32>
    %181 = vector.multi_reduction <add>, %131, %cst_66 [0] : vector<16x16xf32> to vector<16xf32>
    %182 = vector.shape_cast %181 : vector<16xf32> to vector<1x16xf32>
    %cst_67 = arith.constant 1.600000e+01 : f32
    %183 = vector.broadcast %cst_67 : f32 to vector<1x16xf32>
    %184 = arith.divf %182, %183 : vector<1x16xf32>
    %cst_68 = arith.constant dense<0.000000e+00> : vector<16xf32>
    %185 = vector.multi_reduction <add>, %132, %cst_68 [0] : vector<16x16xf32> to vector<16xf32>
    %186 = vector.shape_cast %185 : vector<16xf32> to vector<1x16xf32>
    %cst_69 = arith.constant 1.600000e+01 : f32
    %187 = vector.broadcast %cst_69 : f32 to vector<1x16xf32>
    %188 = arith.divf %186, %187 : vector<1x16xf32>
    %cst_70 = arith.constant dense<0.000000e+00> : vector<16xf32>
    %189 = vector.multi_reduction <add>, %133, %cst_70 [0] : vector<16x16xf32> to vector<16xf32>
    %190 = vector.shape_cast %189 : vector<16xf32> to vector<1x16xf32>
    %cst_71 = arith.constant 1.600000e+01 : f32
    %191 = vector.broadcast %cst_71 : f32 to vector<1x16xf32>
    %192 = arith.divf %190, %191 : vector<1x16xf32>
    %cst_72 = arith.constant dense<0.000000e+00> : vector<16xf32>
    %193 = vector.multi_reduction <add>, %134, %cst_72 [0] : vector<16x16xf32> to vector<16xf32>
    %194 = vector.shape_cast %193 : vector<16xf32> to vector<1x16xf32>
    %cst_73 = arith.constant 1.600000e+01 : f32
    %195 = vector.broadcast %cst_73 : f32 to vector<1x16xf32>
    %196 = arith.divf %194, %195 : vector<1x16xf32>
    %cst_74 = arith.constant dense<0.000000e+00> : vector<16xf32>
    %197 = vector.multi_reduction <add>, %135, %cst_74 [0] : vector<16x16xf32> to vector<16xf32>
    %198 = vector.shape_cast %197 : vector<16xf32> to vector<1x16xf32>
    %cst_75 = arith.constant 1.600000e+01 : f32
    %199 = vector.broadcast %cst_75 : f32 to vector<1x16xf32>
    %200 = arith.divf %198, %199 : vector<1x16xf32>
    %201 = tpu.concatenate %172, %176, %180, %184, %188, %192, %196, %200 in 0 : vector<1x16xf32>, vector<1x16xf32>, vector<1x16xf32>, vector<1x16xf32>, vector<1x16xf32>, vector<1x16xf32>, vector<1x16xf32>, vector<1x16xf32> -> vector<8x16xf32>
    %cst_76 = arith.constant dense<0xFF800000> : vector<16xf32>
    %202 = vector.multi_reduction <maximumf>, %128, %cst_76 [1] : vector<16x16xf32> to vector<16xf32>
    %203 = vector.shape_cast %202 : vector<16xf32> to vector<16x1xf32>
    %cst_77 = arith.constant dense<0xFF800000> : vector<16xf32>
    %204 = vector.multi_reduction <maximumf>, %129, %cst_77 [1] : vector<16x16xf32> to vector<16xf32>
    %205 = vector.shape_cast %204 : vector<16xf32> to vector<16x1xf32>
    %cst_78 = arith.constant dense<0xFF800000> : vector<16xf32>
    %206 = vector.multi_reduction <maximumf>, %130, %cst_78 [1] : vector<16x16xf32> to vector<16xf32>
    %207 = vector.shape_cast %206 : vector<16xf32> to vector<16x1xf32>
    %cst_79 = arith.constant dense<0xFF800000> : vector<16xf32>
    %208 = vector.multi_reduction <maximumf>, %131, %cst_79 [1] : vector<16x16xf32> to vector<16xf32>
    %209 = vector.shape_cast %208 : vector<16xf32> to vector<16x1xf32>
    %cst_80 = arith.constant dense<0xFF800000> : vector<16xf32>
    %210 = vector.multi_reduction <maximumf>, %132, %cst_80 [1] : vector<16x16xf32> to vector<16xf32>
    %211 = vector.shape_cast %210 : vector<16xf32> to vector<16x1xf32>
    %cst_81 = arith.constant dense<0xFF800000> : vector<16xf32>
    %212 = vector.multi_reduction <maximumf>, %133, %cst_81 [1] : vector<16x16xf32> to vector<16xf32>
    %213 = vector.shape_cast %212 : vector<16xf32> to vector<16x1xf32>
    %cst_82 = arith.constant dense<0xFF800000> : vector<16xf32>
    %214 = vector.multi_reduction <maximumf>, %134, %cst_82 [1] : vector<16x16xf32> to vector<16xf32>
    %215 = vector.shape_cast %214 : vector<16xf32> to vector<16x1xf32>
    %cst_83 = arith.constant dense<0xFF800000> : vector<16xf32>
    %216 = vector.multi_reduction <maximumf>, %135, %cst_83 [1] : vector<16x16xf32> to vector<16xf32>
    %217 = vector.shape_cast %216 : vector<16xf32> to vector<16x1xf32>
    %218 = tpu.concatenate %203, %205, %207, %209, %211, %213, %215, %217 in 1 : vector<16x1xf32>, vector<16x1xf32>, vector<16x1xf32>, vector<16x1xf32>, vector<16x1xf32>, vector<16x1xf32>, vector<16x1xf32>, vector<16x1xf32> -> vector<16x8xf32>
    %cst_84 = arith.constant dense<0.000000e+00> : vector<16xf32>
    %219 = vector.multi_reduction <add>, %128, %cst_84 [1] : vector<16x16xf32> to vector<16xf32>
    %220 = vector.shape_cast %219 : vector<16xf32> to vector<16x1xf32>
    %cst_85 = arith.constant 1.600000e+01 : f32
    %221 = vector.broadcast %cst_85 : f32 to vector<16x1xf32>
    %222 = arith.divf %220, %221 : vector<16x1xf32>
    %cst_86 = arith.constant dense<0.000000e+00> : vector<16xf32>
    %223 = vector.multi_reduction <add>, %129, %cst_86 [1] : vector<16x16xf32> to vector<16xf32>
    %224 = vector.shape_cast %223 : vector<16xf32> to vector<16x1xf32>
    %cst_87 = arith.constant 1.600000e+01 : f32
    %225 = vector.broadcast %cst_87 : f32 to vector<16x1xf32>
    %226 = arith.divf %224, %225 : vector<16x1xf32>
    %cst_88 = arith.constant dense<0.000000e+00> : vector<16xf32>
    %227 = vector.multi_reduction <add>, %130, %cst_88 [1] : vector<16x16xf32> to vector<16xf32>
    %228 = vector.shape_cast %227 : vector<16xf32> to vector<16x1xf32>
    %cst_89 = arith.constant 1.600000e+01 : f32
    %229 = vector.broadcast %cst_89 : f32 to vector<16x1xf32>
    %230 = arith.divf %228, %229 : vector<16x1xf32>
    %cst_90 = arith.constant dense<0.000000e+00> : vector<16xf32>
    %231 = vector.multi_reduction <add>, %131, %cst_90 [1] : vector<16x16xf32> to vector<16xf32>
    %232 = vector.shape_cast %231 : vector<16xf32> to vector<16x1xf32>
    %cst_91 = arith.constant 1.600000e+01 : f32
    %233 = vector.broadcast %cst_91 : f32 to vector<16x1xf32>
    %234 = arith.divf %232, %233 : vector<16x1xf32>
    %cst_92 = arith.constant dense<0.000000e+00> : vector<16xf32>
    %235 = vector.multi_reduction <add>, %132, %cst_92 [1] : vector<16x16xf32> to vector<16xf32>
    %236 = vector.shape_cast %235 : vector<16xf32> to vector<16x1xf32>
    %cst_93 = arith.constant 1.600000e+01 : f32
    %237 = vector.broadcast %cst_93 : f32 to vector<16x1xf32>
    %238 = arith.divf %236, %237 : vector<16x1xf32>
    %cst_94 = arith.constant dense<0.000000e+00> : vector<16xf32>
    %239 = vector.multi_reduction <add>, %133, %cst_94 [1] : vector<16x16xf32> to vector<16xf32>
    %240 = vector.shape_cast %239 : vector<16xf32> to vector<16x1xf32>
    %cst_95 = arith.constant 1.600000e+01 : f32
    %241 = vector.broadcast %cst_95 : f32 to vector<16x1xf32>
    %242 = arith.divf %240, %241 : vector<16x1xf32>
    %cst_96 = arith.constant dense<0.000000e+00> : vector<16xf32>
    %243 = vector.multi_reduction <add>, %134, %cst_96 [1] : vector<16x16xf32> to vector<16xf32>
    %244 = vector.shape_cast %243 : vector<16xf32> to vector<16x1xf32>
    %cst_97 = arith.constant 1.600000e+01 : f32
    %245 = vector.broadcast %cst_97 : f32 to vector<16x1xf32>
    %246 = arith.divf %244, %245 : vector<16x1xf32>
    %cst_98 = arith.constant dense<0.000000e+00> : vector<16xf32>
    %247 = vector.multi_reduction <add>, %135, %cst_98 [1] : vector<16x16xf32> to vector<16xf32>
    %248 = vector.shape_cast %247 : vector<16xf32> to vector<16x1xf32>
    %cst_99 = arith.constant 1.600000e+01 : f32
    %249 = vector.broadcast %cst_99 : f32 to vector<16x1xf32>
    %250 = arith.divf %248, %249 : vector<16x1xf32>
    %251 = tpu.concatenate %222, %226, %230, %234, %238, %242, %246, %250 in 1 : vector<16x1xf32>, vector<16x1xf32>, vector<16x1xf32>, vector<16x1xf32>, vector<16x1xf32>, vector<16x1xf32>, vector<16x1xf32>, vector<16x1xf32> -> vector<16x8xf32>
    %c0_100 = arith.constant 0 : index
    %252 = memref.load %arg1[%c0_100] : memref<3xf32, #tpu.memory_space<smem>>
    %c3_i32 = arith.constant 3 : i32
    %253 = tpu.dynamic_rotate %142 by %c3_i32 dim 0 : vector<16x16xf32>, i32 -> vector<16x16xf32>
    %254 = tpu.iota {dimensions = array<i32: 0>} : vector<16x16xi32>
    %c-3_i32 = arith.constant -3 : i32
    %255 = vector.broadcast %c-3_i32 : i32 to vector<16x16xi32>
    %256 = arith.addi %254, %255 : vector<16x16xi32>
    %c0_i32_101 = arith.constant 0 : i32
    %257 = vector.broadcast %c0_i32_101 : i32 to vector<16x16xi32>
    %258 = arith.cmpi sge, %256, %257 : vector<16x16xi32>
    %c-3_i32_102 = arith.constant -3 : i32
    %259 = vector.broadcast %c-3_i32_102 : i32 to vector<16x16xi32>
    %260 = arith.addi %254, %259 : vector<16x16xi32>
    %c16_i32_103 = arith.constant 16 : i32
    %261 = vector.broadcast %c16_i32_103 : i32 to vector<16x16xi32>
    %262 = arith.cmpi slt, %260, %261 : vector<16x16xi32>
    %263 = arith.andi %258, %262 : vector<16x16xi1>
    %cst_104 = arith.constant 0.000000e+00 : f32
    %264 = vector.broadcast %cst_104 : f32 to vector<16x16xf32>
    %265 = arith.select %263, %253, %264 : vector<16x16xi1>, vector<16x16xf32>
    %c2_i32 = arith.constant 2 : i32
    %266 = tpu.dynamic_rotate %142 by %c2_i32 dim 0 : vector<16x16xf32>, i32 -> vector<16x16xf32>
    %267 = tpu.iota {dimensions = array<i32: 0>} : vector<16x16xi32>
    %c-2_i32 = arith.constant -2 : i32
    %268 = vector.broadcast %c-2_i32 : i32 to vector<16x16xi32>
    %269 = arith.addi %267, %268 : vector<16x16xi32>
    %c0_i32_105 = arith.constant 0 : i32
    %270 = vector.broadcast %c0_i32_105 : i32 to vector<16x16xi32>
    %271 = arith.cmpi sge, %269, %270 : vector<16x16xi32>
    %c-2_i32_106 = arith.constant -2 : i32
    %272 = vector.broadcast %c-2_i32_106 : i32 to vector<16x16xi32>
    %273 = arith.addi %267, %272 : vector<16x16xi32>
    %c16_i32_107 = arith.constant 16 : i32
    %274 = vector.broadcast %c16_i32_107 : i32 to vector<16x16xi32>
    %275 = arith.cmpi slt, %273, %274 : vector<16x16xi32>
    %276 = arith.andi %271, %275 : vector<16x16xi1>
    %cst_108 = arith.constant 0.000000e+00 : f32
    %277 = vector.broadcast %cst_108 : f32 to vector<16x16xf32>
    %278 = arith.select %276, %266, %277 : vector<16x16xi1>, vector<16x16xf32>
    %c1_i32_109 = arith.constant 1 : i32
    %279 = tpu.dynamic_rotate %142 by %c1_i32_109 dim 0 : vector<16x16xf32>, i32 -> vector<16x16xf32>
    %280 = tpu.iota {dimensions = array<i32: 0>} : vector<16x16xi32>
    %c-1_i32_110 = arith.constant -1 : i32
    %281 = vector.broadcast %c-1_i32_110 : i32 to vector<16x16xi32>
    %282 = arith.addi %280, %281 : vector<16x16xi32>
    %c0_i32_111 = arith.constant 0 : i32
    %283 = vector.broadcast %c0_i32_111 : i32 to vector<16x16xi32>
    %284 = arith.cmpi sge, %282, %283 : vector<16x16xi32>
    %c-1_i32_112 = arith.constant -1 : i32
    %285 = vector.broadcast %c-1_i32_112 : i32 to vector<16x16xi32>
    %286 = arith.addi %280, %285 : vector<16x16xi32>
    %c16_i32_113 = arith.constant 16 : i32
    %287 = vector.broadcast %c16_i32_113 : i32 to vector<16x16xi32>
    %288 = arith.cmpi slt, %286, %287 : vector<16x16xi32>
    %289 = arith.andi %284, %288 : vector<16x16xi1>
    %cst_114 = arith.constant 0.000000e+00 : f32
    %290 = vector.broadcast %cst_114 : f32 to vector<16x16xf32>
    %291 = arith.select %289, %279, %290 : vector<16x16xi1>, vector<16x16xf32>
    %c15_i32_115 = arith.constant 15 : i32
    %292 = tpu.dynamic_rotate %142 by %c15_i32_115 dim 0 : vector<16x16xf32>, i32 -> vector<16x16xf32>
    %293 = tpu.iota {dimensions = array<i32: 0>} : vector<16x16xi32>
    %c1_i32_116 = arith.constant 1 : i32
    %294 = vector.broadcast %c1_i32_116 : i32 to vector<16x16xi32>
    %295 = arith.addi %293, %294 : vector<16x16xi32>
    %c0_i32_117 = arith.constant 0 : i32
    %296 = vector.broadcast %c0_i32_117 : i32 to vector<16x16xi32>
    %297 = arith.cmpi sge, %295, %296 : vector<16x16xi32>
    %c1_i32_118 = arith.constant 1 : i32
    %298 = vector.broadcast %c1_i32_118 : i32 to vector<16x16xi32>
    %299 = arith.addi %293, %298 : vector<16x16xi32>
    %c16_i32_119 = arith.constant 16 : i32
    %300 = vector.broadcast %c16_i32_119 : i32 to vector<16x16xi32>
    %301 = arith.cmpi slt, %299, %300 : vector<16x16xi32>
    %302 = arith.andi %297, %301 : vector<16x16xi1>
    %cst_120 = arith.constant 0.000000e+00 : f32
    %303 = vector.broadcast %cst_120 : f32 to vector<16x16xf32>
    %304 = arith.select %302, %292, %303 : vector<16x16xi1>, vector<16x16xf32>
    %c14_i32 = arith.constant 14 : i32
    %305 = tpu.dynamic_rotate %142 by %c14_i32 dim 0 : vector<16x16xf32>, i32 -> vector<16x16xf32>
    %306 = tpu.iota {dimensions = array<i32: 0>} : vector<16x16xi32>
    %c2_i32_121 = arith.constant 2 : i32
    %307 = vector.broadcast %c2_i32_121 : i32 to vector<16x16xi32>
    %308 = arith.addi %306, %307 : vector<16x16xi32>
    %c0_i32_122 = arith.constant 0 : i32
    %309 = vector.broadcast %c0_i32_122 : i32 to vector<16x16xi32>
    %310 = arith.cmpi sge, %308, %309 : vector<16x16xi32>
    %c2_i32_123 = arith.constant 2 : i32
    %311 = vector.broadcast %c2_i32_123 : i32 to vector<16x16xi32>
    %312 = arith.addi %306, %311 : vector<16x16xi32>
    %c16_i32_124 = arith.constant 16 : i32
    %313 = vector.broadcast %c16_i32_124 : i32 to vector<16x16xi32>
    %314 = arith.cmpi slt, %312, %313 : vector<16x16xi32>
    %315 = arith.andi %310, %314 : vector<16x16xi1>
    %cst_125 = arith.constant 0.000000e+00 : f32
    %316 = vector.broadcast %cst_125 : f32 to vector<16x16xf32>
    %317 = arith.select %315, %305, %316 : vector<16x16xi1>, vector<16x16xf32>
    %c13_i32 = arith.constant 13 : i32
    %318 = tpu.dynamic_rotate %142 by %c13_i32 dim 0 : vector<16x16xf32>, i32 -> vector<16x16xf32>
    %319 = tpu.iota {dimensions = array<i32: 0>} : vector<16x16xi32>
    %c3_i32_126 = arith.constant 3 : i32
    %320 = vector.broadcast %c3_i32_126 : i32 to vector<16x16xi32>
    %321 = arith.addi %319, %320 : vector<16x16xi32>
    %c0_i32_127 = arith.constant 0 : i32
    %322 = vector.broadcast %c0_i32_127 : i32 to vector<16x16xi32>
    %323 = arith.cmpi sge, %321, %322 : vector<16x16xi32>
    %c3_i32_128 = arith.constant 3 : i32
    %324 = vector.broadcast %c3_i32_128 : i32 to vector<16x16xi32>
    %325 = arith.addi %319, %324 : vector<16x16xi32>
    %c16_i32_129 = arith.constant 16 : i32
    %326 = vector.broadcast %c16_i32_129 : i32 to vector<16x16xi32>
    %327 = arith.cmpi slt, %325, %326 : vector<16x16xi32>
    %328 = arith.andi %323, %327 : vector<16x16xi1>
    %cst_130 = arith.constant 0.000000e+00 : f32
    %329 = vector.broadcast %cst_130 : f32 to vector<16x16xf32>
    %330 = arith.select %328, %318, %329 : vector<16x16xi1>, vector<16x16xf32>
    %c3_i32_131 = arith.constant 3 : i32
    %331 = tpu.dynamic_rotate %151 by %c3_i32_131 dim 0 : vector<16x16xf32>, i32 -> vector<16x16xf32>
    %332 = tpu.iota {dimensions = array<i32: 0>} : vector<16x16xi32>
    %c-3_i32_132 = arith.constant -3 : i32
    %333 = vector.broadcast %c-3_i32_132 : i32 to vector<16x16xi32>
    %334 = arith.addi %332, %333 : vector<16x16xi32>
    %c0_i32_133 = arith.constant 0 : i32
    %335 = vector.broadcast %c0_i32_133 : i32 to vector<16x16xi32>
    %336 = arith.cmpi sge, %334, %335 : vector<16x16xi32>
    %c-3_i32_134 = arith.constant -3 : i32
    %337 = vector.broadcast %c-3_i32_134 : i32 to vector<16x16xi32>
    %338 = arith.addi %332, %337 : vector<16x16xi32>
    %c16_i32_135 = arith.constant 16 : i32
    %339 = vector.broadcast %c16_i32_135 : i32 to vector<16x16xi32>
    %340 = arith.cmpi slt, %338, %339 : vector<16x16xi32>
    %341 = arith.andi %336, %340 : vector<16x16xi1>
    %cst_136 = arith.constant 0.000000e+00 : f32
    %342 = vector.broadcast %cst_136 : f32 to vector<16x16xf32>
    %343 = arith.select %341, %331, %342 : vector<16x16xi1>, vector<16x16xf32>
    %c2_i32_137 = arith.constant 2 : i32
    %344 = tpu.dynamic_rotate %151 by %c2_i32_137 dim 0 : vector<16x16xf32>, i32 -> vector<16x16xf32>
    %345 = tpu.iota {dimensions = array<i32: 0>} : vector<16x16xi32>
    %c-2_i32_138 = arith.constant -2 : i32
    %346 = vector.broadcast %c-2_i32_138 : i32 to vector<16x16xi32>
    %347 = arith.addi %345, %346 : vector<16x16xi32>
    %c0_i32_139 = arith.constant 0 : i32
    %348 = vector.broadcast %c0_i32_139 : i32 to vector<16x16xi32>
    %349 = arith.cmpi sge, %347, %348 : vector<16x16xi32>
    %c-2_i32_140 = arith.constant -2 : i32
    %350 = vector.broadcast %c-2_i32_140 : i32 to vector<16x16xi32>
    %351 = arith.addi %345, %350 : vector<16x16xi32>
    %c16_i32_141 = arith.constant 16 : i32
    %352 = vector.broadcast %c16_i32_141 : i32 to vector<16x16xi32>
    %353 = arith.cmpi slt, %351, %352 : vector<16x16xi32>
    %354 = arith.andi %349, %353 : vector<16x16xi1>
    %cst_142 = arith.constant 0.000000e+00 : f32
    %355 = vector.broadcast %cst_142 : f32 to vector<16x16xf32>
    %356 = arith.select %354, %344, %355 : vector<16x16xi1>, vector<16x16xf32>
    %c1_i32_143 = arith.constant 1 : i32
    %357 = tpu.dynamic_rotate %151 by %c1_i32_143 dim 0 : vector<16x16xf32>, i32 -> vector<16x16xf32>
    %358 = tpu.iota {dimensions = array<i32: 0>} : vector<16x16xi32>
    %c-1_i32_144 = arith.constant -1 : i32
    %359 = vector.broadcast %c-1_i32_144 : i32 to vector<16x16xi32>
    %360 = arith.addi %358, %359 : vector<16x16xi32>
    %c0_i32_145 = arith.constant 0 : i32
    %361 = vector.broadcast %c0_i32_145 : i32 to vector<16x16xi32>
    %362 = arith.cmpi sge, %360, %361 : vector<16x16xi32>
    %c-1_i32_146 = arith.constant -1 : i32
    %363 = vector.broadcast %c-1_i32_146 : i32 to vector<16x16xi32>
    %364 = arith.addi %358, %363 : vector<16x16xi32>
    %c16_i32_147 = arith.constant 16 : i32
    %365 = vector.broadcast %c16_i32_147 : i32 to vector<16x16xi32>
    %366 = arith.cmpi slt, %364, %365 : vector<16x16xi32>
    %367 = arith.andi %362, %366 : vector<16x16xi1>
    %cst_148 = arith.constant 0.000000e+00 : f32
    %368 = vector.broadcast %cst_148 : f32 to vector<16x16xf32>
    %369 = arith.select %367, %357, %368 : vector<16x16xi1>, vector<16x16xf32>
    %c15_i32_149 = arith.constant 15 : i32
    %370 = tpu.dynamic_rotate %151 by %c15_i32_149 dim 0 : vector<16x16xf32>, i32 -> vector<16x16xf32>
    %371 = tpu.iota {dimensions = array<i32: 0>} : vector<16x16xi32>
    %c1_i32_150 = arith.constant 1 : i32
    %372 = vector.broadcast %c1_i32_150 : i32 to vector<16x16xi32>
    %373 = arith.addi %371, %372 : vector<16x16xi32>
    %c0_i32_151 = arith.constant 0 : i32
    %374 = vector.broadcast %c0_i32_151 : i32 to vector<16x16xi32>
    %375 = arith.cmpi sge, %373, %374 : vector<16x16xi32>
    %c1_i32_152 = arith.constant 1 : i32
    %376 = vector.broadcast %c1_i32_152 : i32 to vector<16x16xi32>
    %377 = arith.addi %371, %376 : vector<16x16xi32>
    %c16_i32_153 = arith.constant 16 : i32
    %378 = vector.broadcast %c16_i32_153 : i32 to vector<16x16xi32>
    %379 = arith.cmpi slt, %377, %378 : vector<16x16xi32>
    %380 = arith.andi %375, %379 : vector<16x16xi1>
    %cst_154 = arith.constant 0.000000e+00 : f32
    %381 = vector.broadcast %cst_154 : f32 to vector<16x16xf32>
    %382 = arith.select %380, %370, %381 : vector<16x16xi1>, vector<16x16xf32>
    %c14_i32_155 = arith.constant 14 : i32
    %383 = tpu.dynamic_rotate %151 by %c14_i32_155 dim 0 : vector<16x16xf32>, i32 -> vector<16x16xf32>
    %384 = tpu.iota {dimensions = array<i32: 0>} : vector<16x16xi32>
    %c2_i32_156 = arith.constant 2 : i32
    %385 = vector.broadcast %c2_i32_156 : i32 to vector<16x16xi32>
    %386 = arith.addi %384, %385 : vector<16x16xi32>
    %c0_i32_157 = arith.constant 0 : i32
    %387 = vector.broadcast %c0_i32_157 : i32 to vector<16x16xi32>
    %388 = arith.cmpi sge, %386, %387 : vector<16x16xi32>
    %c2_i32_158 = arith.constant 2 : i32
    %389 = vector.broadcast %c2_i32_158 : i32 to vector<16x16xi32>
    %390 = arith.addi %384, %389 : vector<16x16xi32>
    %c16_i32_159 = arith.constant 16 : i32
    %391 = vector.broadcast %c16_i32_159 : i32 to vector<16x16xi32>
    %392 = arith.cmpi slt, %390, %391 : vector<16x16xi32>
    %393 = arith.andi %388, %392 : vector<16x16xi1>
    %cst_160 = arith.constant 0.000000e+00 : f32
    %394 = vector.broadcast %cst_160 : f32 to vector<16x16xf32>
    %395 = arith.select %393, %383, %394 : vector<16x16xi1>, vector<16x16xf32>
    %c13_i32_161 = arith.constant 13 : i32
    %396 = tpu.dynamic_rotate %151 by %c13_i32_161 dim 0 : vector<16x16xf32>, i32 -> vector<16x16xf32>
    %397 = tpu.iota {dimensions = array<i32: 0>} : vector<16x16xi32>
    %c3_i32_162 = arith.constant 3 : i32
    %398 = vector.broadcast %c3_i32_162 : i32 to vector<16x16xi32>
    %399 = arith.addi %397, %398 : vector<16x16xi32>
    %c0_i32_163 = arith.constant 0 : i32
    %400 = vector.broadcast %c0_i32_163 : i32 to vector<16x16xi32>
    %401 = arith.cmpi sge, %399, %400 : vector<16x16xi32>
    %c3_i32_164 = arith.constant 3 : i32
    %402 = vector.broadcast %c3_i32_164 : i32 to vector<16x16xi32>
    %403 = arith.addi %397, %402 : vector<16x16xi32>
    %c16_i32_165 = arith.constant 16 : i32
    %404 = vector.broadcast %c16_i32_165 : i32 to vector<16x16xi32>
    %405 = arith.cmpi slt, %403, %404 : vector<16x16xi32>
    %406 = arith.andi %401, %405 : vector<16x16xi1>
    %cst_166 = arith.constant 0.000000e+00 : f32
    %407 = vector.broadcast %cst_166 : f32 to vector<16x16xf32>
    %408 = arith.select %406, %396, %407 : vector<16x16xi1>, vector<16x16xf32>
    %409 = tpu.concatenate %265, %278, %291, %142, %304, %317, %330, %343, %356, %369, %151, %382, %395, %408 in 1 : vector<16x16xf32>, vector<16x16xf32>, vector<16x16xf32>, vector<16x16xf32>, vector<16x16xf32>, vector<16x16xf32>, vector<16x16xf32>, vector<16x16xf32>, vector<16x16xf32>, vector<16x16xf32>, vector<16x16xf32>, vector<16x16xf32>, vector<16x16xf32>, vector<16x16xf32> -> vector<16x224xf32>
    %c0_167 = arith.constant 0 : index
    %c0_168 = arith.constant 0 : index
    %410 = vector.load %arg6[%c0_167, %c0_168] : memref<224x16xf32, #tpu.memory_space<vmem>>, vector<224x16xf32>
    %cst_169 = arith.constant dense<0.000000e+00> : vector<16x16xf32>
    %411 = tpu.matmul %409, %410, %cst_169 {dimension_numbers = #tpu.dot_dimension_numbers<[1], [0], [0], [1], [0, 0, 1, 1], [], []>} : vector<16x224xf32>, vector<224x16xf32>, vector<16x16xf32> -> vector<16x16xf32>
    %412 = vector.broadcast %252 : f32 to vector<16x16xf32>
    %413 = arith.addf %411, %412 : vector<16x16xf32>
    %cst_170 = arith.constant 5.000000e-01 : f32
    %414 = vector.broadcast %cst_170 : f32 to vector<16x16xf32>
    %415 = arith.mulf %414, %413 : vector<16x16xf32>
    %416 = math.tanh %415 : vector<16x16xf32>
    %cst_171 = arith.constant 5.000000e-01 : f32
    %417 = vector.broadcast %cst_171 : f32 to vector<16x16xf32>
    %418 = arith.mulf %417, %416 : vector<16x16xf32>
    %cst_172 = arith.constant 5.000000e-01 : f32
    %419 = vector.broadcast %cst_172 : f32 to vector<16x16xf32>
    %420 = arith.addf %419, %418 : vector<16x16xf32>
    %c1_173 = arith.constant 1 : index
    %421 = memref.load %arg1[%c1_173] : memref<3xf32, #tpu.memory_space<smem>>
    %c3_i32_174 = arith.constant 3 : i32
    %422 = tpu.dynamic_rotate %168 by %c3_i32_174 dim 0 : vector<8x16xf32>, i32 -> vector<8x16xf32>
    %423 = tpu.iota {dimensions = array<i32: 0>} : vector<8x16xi32>
    %c-3_i32_175 = arith.constant -3 : i32
    %424 = vector.broadcast %c-3_i32_175 : i32 to vector<8x16xi32>
    %425 = arith.addi %423, %424 : vector<8x16xi32>
    %c0_i32_176 = arith.constant 0 : i32
    %426 = vector.broadcast %c0_i32_176 : i32 to vector<8x16xi32>
    %427 = arith.cmpi sge, %425, %426 : vector<8x16xi32>
    %c-3_i32_177 = arith.constant -3 : i32
    %428 = vector.broadcast %c-3_i32_177 : i32 to vector<8x16xi32>
    %429 = arith.addi %423, %428 : vector<8x16xi32>
    %c8_i32 = arith.constant 8 : i32
    %430 = vector.broadcast %c8_i32 : i32 to vector<8x16xi32>
    %431 = arith.cmpi slt, %429, %430 : vector<8x16xi32>
    %432 = arith.andi %427, %431 : vector<8x16xi1>
    %cst_178 = arith.constant 0.000000e+00 : f32
    %433 = vector.broadcast %cst_178 : f32 to vector<8x16xf32>
    %434 = arith.select %432, %422, %433 : vector<8x16xi1>, vector<8x16xf32>
    %c2_i32_179 = arith.constant 2 : i32
    %435 = tpu.dynamic_rotate %168 by %c2_i32_179 dim 0 : vector<8x16xf32>, i32 -> vector<8x16xf32>
    %436 = tpu.iota {dimensions = array<i32: 0>} : vector<8x16xi32>
    %c-2_i32_180 = arith.constant -2 : i32
    %437 = vector.broadcast %c-2_i32_180 : i32 to vector<8x16xi32>
    %438 = arith.addi %436, %437 : vector<8x16xi32>
    %c0_i32_181 = arith.constant 0 : i32
    %439 = vector.broadcast %c0_i32_181 : i32 to vector<8x16xi32>
    %440 = arith.cmpi sge, %438, %439 : vector<8x16xi32>
    %c-2_i32_182 = arith.constant -2 : i32
    %441 = vector.broadcast %c-2_i32_182 : i32 to vector<8x16xi32>
    %442 = arith.addi %436, %441 : vector<8x16xi32>
    %c8_i32_183 = arith.constant 8 : i32
    %443 = vector.broadcast %c8_i32_183 : i32 to vector<8x16xi32>
    %444 = arith.cmpi slt, %442, %443 : vector<8x16xi32>
    %445 = arith.andi %440, %444 : vector<8x16xi1>
    %cst_184 = arith.constant 0.000000e+00 : f32
    %446 = vector.broadcast %cst_184 : f32 to vector<8x16xf32>
    %447 = arith.select %445, %435, %446 : vector<8x16xi1>, vector<8x16xf32>
    %c1_i32_185 = arith.constant 1 : i32
    %448 = tpu.dynamic_rotate %168 by %c1_i32_185 dim 0 : vector<8x16xf32>, i32 -> vector<8x16xf32>
    %449 = tpu.iota {dimensions = array<i32: 0>} : vector<8x16xi32>
    %c-1_i32_186 = arith.constant -1 : i32
    %450 = vector.broadcast %c-1_i32_186 : i32 to vector<8x16xi32>
    %451 = arith.addi %449, %450 : vector<8x16xi32>
    %c0_i32_187 = arith.constant 0 : i32
    %452 = vector.broadcast %c0_i32_187 : i32 to vector<8x16xi32>
    %453 = arith.cmpi sge, %451, %452 : vector<8x16xi32>
    %c-1_i32_188 = arith.constant -1 : i32
    %454 = vector.broadcast %c-1_i32_188 : i32 to vector<8x16xi32>
    %455 = arith.addi %449, %454 : vector<8x16xi32>
    %c8_i32_189 = arith.constant 8 : i32
    %456 = vector.broadcast %c8_i32_189 : i32 to vector<8x16xi32>
    %457 = arith.cmpi slt, %455, %456 : vector<8x16xi32>
    %458 = arith.andi %453, %457 : vector<8x16xi1>
    %cst_190 = arith.constant 0.000000e+00 : f32
    %459 = vector.broadcast %cst_190 : f32 to vector<8x16xf32>
    %460 = arith.select %458, %448, %459 : vector<8x16xi1>, vector<8x16xf32>
    %c7_i32 = arith.constant 7 : i32
    %461 = tpu.dynamic_rotate %168 by %c7_i32 dim 0 : vector<8x16xf32>, i32 -> vector<8x16xf32>
    %462 = tpu.iota {dimensions = array<i32: 0>} : vector<8x16xi32>
    %c1_i32_191 = arith.constant 1 : i32
    %463 = vector.broadcast %c1_i32_191 : i32 to vector<8x16xi32>
    %464 = arith.addi %462, %463 : vector<8x16xi32>
    %c0_i32_192 = arith.constant 0 : i32
    %465 = vector.broadcast %c0_i32_192 : i32 to vector<8x16xi32>
    %466 = arith.cmpi sge, %464, %465 : vector<8x16xi32>
    %c1_i32_193 = arith.constant 1 : i32
    %467 = vector.broadcast %c1_i32_193 : i32 to vector<8x16xi32>
    %468 = arith.addi %462, %467 : vector<8x16xi32>
    %c8_i32_194 = arith.constant 8 : i32
    %469 = vector.broadcast %c8_i32_194 : i32 to vector<8x16xi32>
    %470 = arith.cmpi slt, %468, %469 : vector<8x16xi32>
    %471 = arith.andi %466, %470 : vector<8x16xi1>
    %cst_195 = arith.constant 0.000000e+00 : f32
    %472 = vector.broadcast %cst_195 : f32 to vector<8x16xf32>
    %473 = arith.select %471, %461, %472 : vector<8x16xi1>, vector<8x16xf32>
    %c6_i32 = arith.constant 6 : i32
    %474 = tpu.dynamic_rotate %168 by %c6_i32 dim 0 : vector<8x16xf32>, i32 -> vector<8x16xf32>
    %475 = tpu.iota {dimensions = array<i32: 0>} : vector<8x16xi32>
    %c2_i32_196 = arith.constant 2 : i32
    %476 = vector.broadcast %c2_i32_196 : i32 to vector<8x16xi32>
    %477 = arith.addi %475, %476 : vector<8x16xi32>
    %c0_i32_197 = arith.constant 0 : i32
    %478 = vector.broadcast %c0_i32_197 : i32 to vector<8x16xi32>
    %479 = arith.cmpi sge, %477, %478 : vector<8x16xi32>
    %c2_i32_198 = arith.constant 2 : i32
    %480 = vector.broadcast %c2_i32_198 : i32 to vector<8x16xi32>
    %481 = arith.addi %475, %480 : vector<8x16xi32>
    %c8_i32_199 = arith.constant 8 : i32
    %482 = vector.broadcast %c8_i32_199 : i32 to vector<8x16xi32>
    %483 = arith.cmpi slt, %481, %482 : vector<8x16xi32>
    %484 = arith.andi %479, %483 : vector<8x16xi1>
    %cst_200 = arith.constant 0.000000e+00 : f32
    %485 = vector.broadcast %cst_200 : f32 to vector<8x16xf32>
    %486 = arith.select %484, %474, %485 : vector<8x16xi1>, vector<8x16xf32>
    %c5_i32 = arith.constant 5 : i32
    %487 = tpu.dynamic_rotate %168 by %c5_i32 dim 0 : vector<8x16xf32>, i32 -> vector<8x16xf32>
    %488 = tpu.iota {dimensions = array<i32: 0>} : vector<8x16xi32>
    %c3_i32_201 = arith.constant 3 : i32
    %489 = vector.broadcast %c3_i32_201 : i32 to vector<8x16xi32>
    %490 = arith.addi %488, %489 : vector<8x16xi32>
    %c0_i32_202 = arith.constant 0 : i32
    %491 = vector.broadcast %c0_i32_202 : i32 to vector<8x16xi32>
    %492 = arith.cmpi sge, %490, %491 : vector<8x16xi32>
    %c3_i32_203 = arith.constant 3 : i32
    %493 = vector.broadcast %c3_i32_203 : i32 to vector<8x16xi32>
    %494 = arith.addi %488, %493 : vector<8x16xi32>
    %c8_i32_204 = arith.constant 8 : i32
    %495 = vector.broadcast %c8_i32_204 : i32 to vector<8x16xi32>
    %496 = arith.cmpi slt, %494, %495 : vector<8x16xi32>
    %497 = arith.andi %492, %496 : vector<8x16xi1>
    %cst_205 = arith.constant 0.000000e+00 : f32
    %498 = vector.broadcast %cst_205 : f32 to vector<8x16xf32>
    %499 = arith.select %497, %487, %498 : vector<8x16xi1>, vector<8x16xf32>
    %c3_i32_206 = arith.constant 3 : i32
    %500 = tpu.dynamic_rotate %201 by %c3_i32_206 dim 0 : vector<8x16xf32>, i32 -> vector<8x16xf32>
    %501 = tpu.iota {dimensions = array<i32: 0>} : vector<8x16xi32>
    %c-3_i32_207 = arith.constant -3 : i32
    %502 = vector.broadcast %c-3_i32_207 : i32 to vector<8x16xi32>
    %503 = arith.addi %501, %502 : vector<8x16xi32>
    %c0_i32_208 = arith.constant 0 : i32
    %504 = vector.broadcast %c0_i32_208 : i32 to vector<8x16xi32>
    %505 = arith.cmpi sge, %503, %504 : vector<8x16xi32>
    %c-3_i32_209 = arith.constant -3 : i32
    %506 = vector.broadcast %c-3_i32_209 : i32 to vector<8x16xi32>
    %507 = arith.addi %501, %506 : vector<8x16xi32>
    %c8_i32_210 = arith.constant 8 : i32
    %508 = vector.broadcast %c8_i32_210 : i32 to vector<8x16xi32>
    %509 = arith.cmpi slt, %507, %508 : vector<8x16xi32>
    %510 = arith.andi %505, %509 : vector<8x16xi1>
    %cst_211 = arith.constant 0.000000e+00 : f32
    %511 = vector.broadcast %cst_211 : f32 to vector<8x16xf32>
    %512 = arith.select %510, %500, %511 : vector<8x16xi1>, vector<8x16xf32>
    %c2_i32_212 = arith.constant 2 : i32
    %513 = tpu.dynamic_rotate %201 by %c2_i32_212 dim 0 : vector<8x16xf32>, i32 -> vector<8x16xf32>
    %514 = tpu.iota {dimensions = array<i32: 0>} : vector<8x16xi32>
    %c-2_i32_213 = arith.constant -2 : i32
    %515 = vector.broadcast %c-2_i32_213 : i32 to vector<8x16xi32>
    %516 = arith.addi %514, %515 : vector<8x16xi32>
    %c0_i32_214 = arith.constant 0 : i32
    %517 = vector.broadcast %c0_i32_214 : i32 to vector<8x16xi32>
    %518 = arith.cmpi sge, %516, %517 : vector<8x16xi32>
    %c-2_i32_215 = arith.constant -2 : i32
    %519 = vector.broadcast %c-2_i32_215 : i32 to vector<8x16xi32>
    %520 = arith.addi %514, %519 : vector<8x16xi32>
    %c8_i32_216 = arith.constant 8 : i32
    %521 = vector.broadcast %c8_i32_216 : i32 to vector<8x16xi32>
    %522 = arith.cmpi slt, %520, %521 : vector<8x16xi32>
    %523 = arith.andi %518, %522 : vector<8x16xi1>
    %cst_217 = arith.constant 0.000000e+00 : f32
    %524 = vector.broadcast %cst_217 : f32 to vector<8x16xf32>
    %525 = arith.select %523, %513, %524 : vector<8x16xi1>, vector<8x16xf32>
    %c1_i32_218 = arith.constant 1 : i32
    %526 = tpu.dynamic_rotate %201 by %c1_i32_218 dim 0 : vector<8x16xf32>, i32 -> vector<8x16xf32>
    %527 = tpu.iota {dimensions = array<i32: 0>} : vector<8x16xi32>
    %c-1_i32_219 = arith.constant -1 : i32
    %528 = vector.broadcast %c-1_i32_219 : i32 to vector<8x16xi32>
    %529 = arith.addi %527, %528 : vector<8x16xi32>
    %c0_i32_220 = arith.constant 0 : i32
    %530 = vector.broadcast %c0_i32_220 : i32 to vector<8x16xi32>
    %531 = arith.cmpi sge, %529, %530 : vector<8x16xi32>
    %c-1_i32_221 = arith.constant -1 : i32
    %532 = vector.broadcast %c-1_i32_221 : i32 to vector<8x16xi32>
    %533 = arith.addi %527, %532 : vector<8x16xi32>
    %c8_i32_222 = arith.constant 8 : i32
    %534 = vector.broadcast %c8_i32_222 : i32 to vector<8x16xi32>
    %535 = arith.cmpi slt, %533, %534 : vector<8x16xi32>
    %536 = arith.andi %531, %535 : vector<8x16xi1>
    %cst_223 = arith.constant 0.000000e+00 : f32
    %537 = vector.broadcast %cst_223 : f32 to vector<8x16xf32>
    %538 = arith.select %536, %526, %537 : vector<8x16xi1>, vector<8x16xf32>
    %c7_i32_224 = arith.constant 7 : i32
    %539 = tpu.dynamic_rotate %201 by %c7_i32_224 dim 0 : vector<8x16xf32>, i32 -> vector<8x16xf32>
    %540 = tpu.iota {dimensions = array<i32: 0>} : vector<8x16xi32>
    %c1_i32_225 = arith.constant 1 : i32
    %541 = vector.broadcast %c1_i32_225 : i32 to vector<8x16xi32>
    %542 = arith.addi %540, %541 : vector<8x16xi32>
    %c0_i32_226 = arith.constant 0 : i32
    %543 = vector.broadcast %c0_i32_226 : i32 to vector<8x16xi32>
    %544 = arith.cmpi sge, %542, %543 : vector<8x16xi32>
    %c1_i32_227 = arith.constant 1 : i32
    %545 = vector.broadcast %c1_i32_227 : i32 to vector<8x16xi32>
    %546 = arith.addi %540, %545 : vector<8x16xi32>
    %c8_i32_228 = arith.constant 8 : i32
    %547 = vector.broadcast %c8_i32_228 : i32 to vector<8x16xi32>
    %548 = arith.cmpi slt, %546, %547 : vector<8x16xi32>
    %549 = arith.andi %544, %548 : vector<8x16xi1>
    %cst_229 = arith.constant 0.000000e+00 : f32
    %550 = vector.broadcast %cst_229 : f32 to vector<8x16xf32>
    %551 = arith.select %549, %539, %550 : vector<8x16xi1>, vector<8x16xf32>
    %c6_i32_230 = arith.constant 6 : i32
    %552 = tpu.dynamic_rotate %201 by %c6_i32_230 dim 0 : vector<8x16xf32>, i32 -> vector<8x16xf32>
    %553 = tpu.iota {dimensions = array<i32: 0>} : vector<8x16xi32>
    %c2_i32_231 = arith.constant 2 : i32
    %554 = vector.broadcast %c2_i32_231 : i32 to vector<8x16xi32>
    %555 = arith.addi %553, %554 : vector<8x16xi32>
    %c0_i32_232 = arith.constant 0 : i32
    %556 = vector.broadcast %c0_i32_232 : i32 to vector<8x16xi32>
    %557 = arith.cmpi sge, %555, %556 : vector<8x16xi32>
    %c2_i32_233 = arith.constant 2 : i32
    %558 = vector.broadcast %c2_i32_233 : i32 to vector<8x16xi32>
    %559 = arith.addi %553, %558 : vector<8x16xi32>
    %c8_i32_234 = arith.constant 8 : i32
    %560 = vector.broadcast %c8_i32_234 : i32 to vector<8x16xi32>
    %561 = arith.cmpi slt, %559, %560 : vector<8x16xi32>
    %562 = arith.andi %557, %561 : vector<8x16xi1>
    %cst_235 = arith.constant 0.000000e+00 : f32
    %563 = vector.broadcast %cst_235 : f32 to vector<8x16xf32>
    %564 = arith.select %562, %552, %563 : vector<8x16xi1>, vector<8x16xf32>
    %c5_i32_236 = arith.constant 5 : i32
    %565 = tpu.dynamic_rotate %201 by %c5_i32_236 dim 0 : vector<8x16xf32>, i32 -> vector<8x16xf32>
    %566 = tpu.iota {dimensions = array<i32: 0>} : vector<8x16xi32>
    %c3_i32_237 = arith.constant 3 : i32
    %567 = vector.broadcast %c3_i32_237 : i32 to vector<8x16xi32>
    %568 = arith.addi %566, %567 : vector<8x16xi32>
    %c0_i32_238 = arith.constant 0 : i32
    %569 = vector.broadcast %c0_i32_238 : i32 to vector<8x16xi32>
    %570 = arith.cmpi sge, %568, %569 : vector<8x16xi32>
    %c3_i32_239 = arith.constant 3 : i32
    %571 = vector.broadcast %c3_i32_239 : i32 to vector<8x16xi32>
    %572 = arith.addi %566, %571 : vector<8x16xi32>
    %c8_i32_240 = arith.constant 8 : i32
    %573 = vector.broadcast %c8_i32_240 : i32 to vector<8x16xi32>
    %574 = arith.cmpi slt, %572, %573 : vector<8x16xi32>
    %575 = arith.andi %570, %574 : vector<8x16xi1>
    %cst_241 = arith.constant 0.000000e+00 : f32
    %576 = vector.broadcast %cst_241 : f32 to vector<8x16xf32>
    %577 = arith.select %575, %565, %576 : vector<8x16xi1>, vector<8x16xf32>
    %578 = tpu.concatenate %434, %447, %460, %168, %473, %486, %499, %512, %525, %538, %201, %551, %564, %577 in 1 : vector<8x16xf32>, vector<8x16xf32>, vector<8x16xf32>, vector<8x16xf32>, vector<8x16xf32>, vector<8x16xf32>, vector<8x16xf32>, vector<8x16xf32>, vector<8x16xf32>, vector<8x16xf32>, vector<8x16xf32>, vector<8x16xf32>, vector<8x16xf32>, vector<8x16xf32> -> vector<8x224xf32>
    %c0_242 = arith.constant 0 : index
    %c0_243 = arith.constant 0 : index
    %579 = vector.load %arg7[%c0_242, %c0_243] : memref<224x16xf32, #tpu.memory_space<vmem>>, vector<224x16xf32>
    %cst_244 = arith.constant dense<0.000000e+00> : vector<8x16xf32>
    %580 = tpu.matmul %578, %579, %cst_244 {dimension_numbers = #tpu.dot_dimension_numbers<[1], [0], [0], [1], [0, 0, 1, 1], [], []>} : vector<8x224xf32>, vector<224x16xf32>, vector<8x16xf32> -> vector<8x16xf32>
    %581 = vector.broadcast %421 : f32 to vector<8x16xf32>
    %582 = arith.addf %580, %581 : vector<8x16xf32>
    %cst_245 = arith.constant 5.000000e-01 : f32
    %583 = vector.broadcast %cst_245 : f32 to vector<8x16xf32>
    %584 = arith.mulf %583, %582 : vector<8x16xf32>
    %585 = math.tanh %584 : vector<8x16xf32>
    %cst_246 = arith.constant 5.000000e-01 : f32
    %586 = vector.broadcast %cst_246 : f32 to vector<8x16xf32>
    %587 = arith.mulf %586, %585 : vector<8x16xf32>
    %cst_247 = arith.constant 5.000000e-01 : f32
    %588 = vector.broadcast %cst_247 : f32 to vector<8x16xf32>
    %589 = arith.addf %588, %587 : vector<8x16xf32>
    %c2_248 = arith.constant 2 : index
    %590 = memref.load %arg1[%c2_248] : memref<3xf32, #tpu.memory_space<smem>>
    %c3_i32_249 = arith.constant 3 : i32
    %591 = tpu.dynamic_rotate %218 by %c3_i32_249 dim 0 : vector<16x8xf32>, i32 -> vector<16x8xf32>
    %592 = tpu.iota {dimensions = array<i32: 0>} : vector<16x8xi32>
    %c-3_i32_250 = arith.constant -3 : i32
    %593 = vector.broadcast %c-3_i32_250 : i32 to vector<16x8xi32>
    %594 = arith.addi %592, %593 : vector<16x8xi32>
    %c0_i32_251 = arith.constant 0 : i32
    %595 = vector.broadcast %c0_i32_251 : i32 to vector<16x8xi32>
    %596 = arith.cmpi sge, %594, %595 : vector<16x8xi32>
    %c-3_i32_252 = arith.constant -3 : i32
    %597 = vector.broadcast %c-3_i32_252 : i32 to vector<16x8xi32>
    %598 = arith.addi %592, %597 : vector<16x8xi32>
    %c16_i32_253 = arith.constant 16 : i32
    %599 = vector.broadcast %c16_i32_253 : i32 to vector<16x8xi32>
    %600 = arith.cmpi slt, %598, %599 : vector<16x8xi32>
    %601 = arith.andi %596, %600 : vector<16x8xi1>
    %cst_254 = arith.constant 0.000000e+00 : f32
    %602 = vector.broadcast %cst_254 : f32 to vector<16x8xf32>
    %603 = arith.select %601, %591, %602 : vector<16x8xi1>, vector<16x8xf32>
    %c2_i32_255 = arith.constant 2 : i32
    %604 = tpu.dynamic_rotate %218 by %c2_i32_255 dim 0 : vector<16x8xf32>, i32 -> vector<16x8xf32>
    %605 = tpu.iota {dimensions = array<i32: 0>} : vector<16x8xi32>
    %c-2_i32_256 = arith.constant -2 : i32
    %606 = vector.broadcast %c-2_i32_256 : i32 to vector<16x8xi32>
    %607 = arith.addi %605, %606 : vector<16x8xi32>
    %c0_i32_257 = arith.constant 0 : i32
    %608 = vector.broadcast %c0_i32_257 : i32 to vector<16x8xi32>
    %609 = arith.cmpi sge, %607, %608 : vector<16x8xi32>
    %c-2_i32_258 = arith.constant -2 : i32
    %610 = vector.broadcast %c-2_i32_258 : i32 to vector<16x8xi32>
    %611 = arith.addi %605, %610 : vector<16x8xi32>
    %c16_i32_259 = arith.constant 16 : i32
    %612 = vector.broadcast %c16_i32_259 : i32 to vector<16x8xi32>
    %613 = arith.cmpi slt, %611, %612 : vector<16x8xi32>
    %614 = arith.andi %609, %613 : vector<16x8xi1>
    %cst_260 = arith.constant 0.000000e+00 : f32
    %615 = vector.broadcast %cst_260 : f32 to vector<16x8xf32>
    %616 = arith.select %614, %604, %615 : vector<16x8xi1>, vector<16x8xf32>
    %c1_i32_261 = arith.constant 1 : i32
    %617 = tpu.dynamic_rotate %218 by %c1_i32_261 dim 0 : vector<16x8xf32>, i32 -> vector<16x8xf32>
    %618 = tpu.iota {dimensions = array<i32: 0>} : vector<16x8xi32>
    %c-1_i32_262 = arith.constant -1 : i32
    %619 = vector.broadcast %c-1_i32_262 : i32 to vector<16x8xi32>
    %620 = arith.addi %618, %619 : vector<16x8xi32>
    %c0_i32_263 = arith.constant 0 : i32
    %621 = vector.broadcast %c0_i32_263 : i32 to vector<16x8xi32>
    %622 = arith.cmpi sge, %620, %621 : vector<16x8xi32>
    %c-1_i32_264 = arith.constant -1 : i32
    %623 = vector.broadcast %c-1_i32_264 : i32 to vector<16x8xi32>
    %624 = arith.addi %618, %623 : vector<16x8xi32>
    %c16_i32_265 = arith.constant 16 : i32
    %625 = vector.broadcast %c16_i32_265 : i32 to vector<16x8xi32>
    %626 = arith.cmpi slt, %624, %625 : vector<16x8xi32>
    %627 = arith.andi %622, %626 : vector<16x8xi1>
    %cst_266 = arith.constant 0.000000e+00 : f32
    %628 = vector.broadcast %cst_266 : f32 to vector<16x8xf32>
    %629 = arith.select %627, %617, %628 : vector<16x8xi1>, vector<16x8xf32>
    %c15_i32_267 = arith.constant 15 : i32
    %630 = tpu.dynamic_rotate %218 by %c15_i32_267 dim 0 : vector<16x8xf32>, i32 -> vector<16x8xf32>
    %631 = tpu.iota {dimensions = array<i32: 0>} : vector<16x8xi32>
    %c1_i32_268 = arith.constant 1 : i32
    %632 = vector.broadcast %c1_i32_268 : i32 to vector<16x8xi32>
    %633 = arith.addi %631, %632 : vector<16x8xi32>
    %c0_i32_269 = arith.constant 0 : i32
    %634 = vector.broadcast %c0_i32_269 : i32 to vector<16x8xi32>
    %635 = arith.cmpi sge, %633, %634 : vector<16x8xi32>
    %c1_i32_270 = arith.constant 1 : i32
    %636 = vector.broadcast %c1_i32_270 : i32 to vector<16x8xi32>
    %637 = arith.addi %631, %636 : vector<16x8xi32>
    %c16_i32_271 = arith.constant 16 : i32
    %638 = vector.broadcast %c16_i32_271 : i32 to vector<16x8xi32>
    %639 = arith.cmpi slt, %637, %638 : vector<16x8xi32>
    %640 = arith.andi %635, %639 : vector<16x8xi1>
    %cst_272 = arith.constant 0.000000e+00 : f32
    %641 = vector.broadcast %cst_272 : f32 to vector<16x8xf32>
    %642 = arith.select %640, %630, %641 : vector<16x8xi1>, vector<16x8xf32>
    %c14_i32_273 = arith.constant 14 : i32
    %643 = tpu.dynamic_rotate %218 by %c14_i32_273 dim 0 : vector<16x8xf32>, i32 -> vector<16x8xf32>
    %644 = tpu.iota {dimensions = array<i32: 0>} : vector<16x8xi32>
    %c2_i32_274 = arith.constant 2 : i32
    %645 = vector.broadcast %c2_i32_274 : i32 to vector<16x8xi32>
    %646 = arith.addi %644, %645 : vector<16x8xi32>
    %c0_i32_275 = arith.constant 0 : i32
    %647 = vector.broadcast %c0_i32_275 : i32 to vector<16x8xi32>
    %648 = arith.cmpi sge, %646, %647 : vector<16x8xi32>
    %c2_i32_276 = arith.constant 2 : i32
    %649 = vector.broadcast %c2_i32_276 : i32 to vector<16x8xi32>
    %650 = arith.addi %644, %649 : vector<16x8xi32>
    %c16_i32_277 = arith.constant 16 : i32
    %651 = vector.broadcast %c16_i32_277 : i32 to vector<16x8xi32>
    %652 = arith.cmpi slt, %650, %651 : vector<16x8xi32>
    %653 = arith.andi %648, %652 : vector<16x8xi1>
    %cst_278 = arith.constant 0.000000e+00 : f32
    %654 = vector.broadcast %cst_278 : f32 to vector<16x8xf32>
    %655 = arith.select %653, %643, %654 : vector<16x8xi1>, vector<16x8xf32>
    %c13_i32_279 = arith.constant 13 : i32
    %656 = tpu.dynamic_rotate %218 by %c13_i32_279 dim 0 : vector<16x8xf32>, i32 -> vector<16x8xf32>
    %657 = tpu.iota {dimensions = array<i32: 0>} : vector<16x8xi32>
    %c3_i32_280 = arith.constant 3 : i32
    %658 = vector.broadcast %c3_i32_280 : i32 to vector<16x8xi32>
    %659 = arith.addi %657, %658 : vector<16x8xi32>
    %c0_i32_281 = arith.constant 0 : i32
    %660 = vector.broadcast %c0_i32_281 : i32 to vector<16x8xi32>
    %661 = arith.cmpi sge, %659, %660 : vector<16x8xi32>
    %c3_i32_282 = arith.constant 3 : i32
    %662 = vector.broadcast %c3_i32_282 : i32 to vector<16x8xi32>
    %663 = arith.addi %657, %662 : vector<16x8xi32>
    %c16_i32_283 = arith.constant 16 : i32
    %664 = vector.broadcast %c16_i32_283 : i32 to vector<16x8xi32>
    %665 = arith.cmpi slt, %663, %664 : vector<16x8xi32>
    %666 = arith.andi %661, %665 : vector<16x8xi1>
    %cst_284 = arith.constant 0.000000e+00 : f32
    %667 = vector.broadcast %cst_284 : f32 to vector<16x8xf32>
    %668 = arith.select %666, %656, %667 : vector<16x8xi1>, vector<16x8xf32>
    %c3_i32_285 = arith.constant 3 : i32
    %669 = tpu.dynamic_rotate %251 by %c3_i32_285 dim 0 : vector<16x8xf32>, i32 -> vector<16x8xf32>
    %670 = tpu.iota {dimensions = array<i32: 0>} : vector<16x8xi32>
    %c-3_i32_286 = arith.constant -3 : i32
    %671 = vector.broadcast %c-3_i32_286 : i32 to vector<16x8xi32>
    %672 = arith.addi %670, %671 : vector<16x8xi32>
    %c0_i32_287 = arith.constant 0 : i32
    %673 = vector.broadcast %c0_i32_287 : i32 to vector<16x8xi32>
    %674 = arith.cmpi sge, %672, %673 : vector<16x8xi32>
    %c-3_i32_288 = arith.constant -3 : i32
    %675 = vector.broadcast %c-3_i32_288 : i32 to vector<16x8xi32>
    %676 = arith.addi %670, %675 : vector<16x8xi32>
    %c16_i32_289 = arith.constant 16 : i32
    %677 = vector.broadcast %c16_i32_289 : i32 to vector<16x8xi32>
    %678 = arith.cmpi slt, %676, %677 : vector<16x8xi32>
    %679 = arith.andi %674, %678 : vector<16x8xi1>
    %cst_290 = arith.constant 0.000000e+00 : f32
    %680 = vector.broadcast %cst_290 : f32 to vector<16x8xf32>
    %681 = arith.select %679, %669, %680 : vector<16x8xi1>, vector<16x8xf32>
    %c2_i32_291 = arith.constant 2 : i32
    %682 = tpu.dynamic_rotate %251 by %c2_i32_291 dim 0 : vector<16x8xf32>, i32 -> vector<16x8xf32>
    %683 = tpu.iota {dimensions = array<i32: 0>} : vector<16x8xi32>
    %c-2_i32_292 = arith.constant -2 : i32
    %684 = vector.broadcast %c-2_i32_292 : i32 to vector<16x8xi32>
    %685 = arith.addi %683, %684 : vector<16x8xi32>
    %c0_i32_293 = arith.constant 0 : i32
    %686 = vector.broadcast %c0_i32_293 : i32 to vector<16x8xi32>
    %687 = arith.cmpi sge, %685, %686 : vector<16x8xi32>
    %c-2_i32_294 = arith.constant -2 : i32
    %688 = vector.broadcast %c-2_i32_294 : i32 to vector<16x8xi32>
    %689 = arith.addi %683, %688 : vector<16x8xi32>
    %c16_i32_295 = arith.constant 16 : i32
    %690 = vector.broadcast %c16_i32_295 : i32 to vector<16x8xi32>
    %691 = arith.cmpi slt, %689, %690 : vector<16x8xi32>
    %692 = arith.andi %687, %691 : vector<16x8xi1>
    %cst_296 = arith.constant 0.000000e+00 : f32
    %693 = vector.broadcast %cst_296 : f32 to vector<16x8xf32>
    %694 = arith.select %692, %682, %693 : vector<16x8xi1>, vector<16x8xf32>
    %c1_i32_297 = arith.constant 1 : i32
    %695 = tpu.dynamic_rotate %251 by %c1_i32_297 dim 0 : vector<16x8xf32>, i32 -> vector<16x8xf32>
    %696 = tpu.iota {dimensions = array<i32: 0>} : vector<16x8xi32>
    %c-1_i32_298 = arith.constant -1 : i32
    %697 = vector.broadcast %c-1_i32_298 : i32 to vector<16x8xi32>
    %698 = arith.addi %696, %697 : vector<16x8xi32>
    %c0_i32_299 = arith.constant 0 : i32
    %699 = vector.broadcast %c0_i32_299 : i32 to vector<16x8xi32>
    %700 = arith.cmpi sge, %698, %699 : vector<16x8xi32>
    %c-1_i32_300 = arith.constant -1 : i32
    %701 = vector.broadcast %c-1_i32_300 : i32 to vector<16x8xi32>
    %702 = arith.addi %696, %701 : vector<16x8xi32>
    %c16_i32_301 = arith.constant 16 : i32
    %703 = vector.broadcast %c16_i32_301 : i32 to vector<16x8xi32>
    %704 = arith.cmpi slt, %702, %703 : vector<16x8xi32>
    %705 = arith.andi %700, %704 : vector<16x8xi1>
    %cst_302 = arith.constant 0.000000e+00 : f32
    %706 = vector.broadcast %cst_302 : f32 to vector<16x8xf32>
    %707 = arith.select %705, %695, %706 : vector<16x8xi1>, vector<16x8xf32>
    %c15_i32_303 = arith.constant 15 : i32
    %708 = tpu.dynamic_rotate %251 by %c15_i32_303 dim 0 : vector<16x8xf32>, i32 -> vector<16x8xf32>
    %709 = tpu.iota {dimensions = array<i32: 0>} : vector<16x8xi32>
    %c1_i32_304 = arith.constant 1 : i32
    %710 = vector.broadcast %c1_i32_304 : i32 to vector<16x8xi32>
    %711 = arith.addi %709, %710 : vector<16x8xi32>
    %c0_i32_305 = arith.constant 0 : i32
    %712 = vector.broadcast %c0_i32_305 : i32 to vector<16x8xi32>
    %713 = arith.cmpi sge, %711, %712 : vector<16x8xi32>
    %c1_i32_306 = arith.constant 1 : i32
    %714 = vector.broadcast %c1_i32_306 : i32 to vector<16x8xi32>
    %715 = arith.addi %709, %714 : vector<16x8xi32>
    %c16_i32_307 = arith.constant 16 : i32
    %716 = vector.broadcast %c16_i32_307 : i32 to vector<16x8xi32>
    %717 = arith.cmpi slt, %715, %716 : vector<16x8xi32>
    %718 = arith.andi %713, %717 : vector<16x8xi1>
    %cst_308 = arith.constant 0.000000e+00 : f32
    %719 = vector.broadcast %cst_308 : f32 to vector<16x8xf32>
    %720 = arith.select %718, %708, %719 : vector<16x8xi1>, vector<16x8xf32>
    %c14_i32_309 = arith.constant 14 : i32
    %721 = tpu.dynamic_rotate %251 by %c14_i32_309 dim 0 : vector<16x8xf32>, i32 -> vector<16x8xf32>
    %722 = tpu.iota {dimensions = array<i32: 0>} : vector<16x8xi32>
    %c2_i32_310 = arith.constant 2 : i32
    %723 = vector.broadcast %c2_i32_310 : i32 to vector<16x8xi32>
    %724 = arith.addi %722, %723 : vector<16x8xi32>
    %c0_i32_311 = arith.constant 0 : i32
    %725 = vector.broadcast %c0_i32_311 : i32 to vector<16x8xi32>
    %726 = arith.cmpi sge, %724, %725 : vector<16x8xi32>
    %c2_i32_312 = arith.constant 2 : i32
    %727 = vector.broadcast %c2_i32_312 : i32 to vector<16x8xi32>
    %728 = arith.addi %722, %727 : vector<16x8xi32>
    %c16_i32_313 = arith.constant 16 : i32
    %729 = vector.broadcast %c16_i32_313 : i32 to vector<16x8xi32>
    %730 = arith.cmpi slt, %728, %729 : vector<16x8xi32>
    %731 = arith.andi %726, %730 : vector<16x8xi1>
    %cst_314 = arith.constant 0.000000e+00 : f32
    %732 = vector.broadcast %cst_314 : f32 to vector<16x8xf32>
    %733 = arith.select %731, %721, %732 : vector<16x8xi1>, vector<16x8xf32>
    %c13_i32_315 = arith.constant 13 : i32
    %734 = tpu.dynamic_rotate %251 by %c13_i32_315 dim 0 : vector<16x8xf32>, i32 -> vector<16x8xf32>
    %735 = tpu.iota {dimensions = array<i32: 0>} : vector<16x8xi32>
    %c3_i32_316 = arith.constant 3 : i32
    %736 = vector.broadcast %c3_i32_316 : i32 to vector<16x8xi32>
    %737 = arith.addi %735, %736 : vector<16x8xi32>
    %c0_i32_317 = arith.constant 0 : i32
    %738 = vector.broadcast %c0_i32_317 : i32 to vector<16x8xi32>
    %739 = arith.cmpi sge, %737, %738 : vector<16x8xi32>
    %c3_i32_318 = arith.constant 3 : i32
    %740 = vector.broadcast %c3_i32_318 : i32 to vector<16x8xi32>
    %741 = arith.addi %735, %740 : vector<16x8xi32>
    %c16_i32_319 = arith.constant 16 : i32
    %742 = vector.broadcast %c16_i32_319 : i32 to vector<16x8xi32>
    %743 = arith.cmpi slt, %741, %742 : vector<16x8xi32>
    %744 = arith.andi %739, %743 : vector<16x8xi1>
    %cst_320 = arith.constant 0.000000e+00 : f32
    %745 = vector.broadcast %cst_320 : f32 to vector<16x8xf32>
    %746 = arith.select %744, %734, %745 : vector<16x8xi1>, vector<16x8xf32>
    %747 = tpu.concatenate %603, %616, %629, %218, %642, %655, %668, %681, %694, %707, %251, %720, %733, %746 in 1 : vector<16x8xf32>, vector<16x8xf32>, vector<16x8xf32>, vector<16x8xf32>, vector<16x8xf32>, vector<16x8xf32>, vector<16x8xf32>, vector<16x8xf32>, vector<16x8xf32>, vector<16x8xf32>, vector<16x8xf32>, vector<16x8xf32>, vector<16x8xf32>, vector<16x8xf32> -> vector<16x112xf32>
    %c0_321 = arith.constant 0 : index
    %c0_322 = arith.constant 0 : index
    %748 = vector.load %arg8[%c0_321, %c0_322] : memref<112x8xf32, #tpu.memory_space<vmem>>, vector<112x8xf32>
    %cst_323 = arith.constant dense<0.000000e+00> : vector<16x8xf32>
    %749 = tpu.matmul %747, %748, %cst_323 {dimension_numbers = #tpu.dot_dimension_numbers<[1], [0], [0], [1], [0, 0, 1, 1], [], []>} : vector<16x112xf32>, vector<112x8xf32>, vector<16x8xf32> -> vector<16x8xf32>
    %750 = vector.broadcast %590 : f32 to vector<16x8xf32>
    %751 = arith.addf %749, %750 : vector<16x8xf32>
    %cst_324 = arith.constant 5.000000e-01 : f32
    %752 = vector.broadcast %cst_324 : f32 to vector<16x8xf32>
    %753 = arith.mulf %752, %751 : vector<16x8xf32>
    %754 = math.tanh %753 : vector<16x8xf32>
    %cst_325 = arith.constant 5.000000e-01 : f32
    %755 = vector.broadcast %cst_325 : f32 to vector<16x8xf32>
    %756 = arith.mulf %755, %754 : vector<16x8xf32>
    %cst_326 = arith.constant 5.000000e-01 : f32
    %757 = vector.broadcast %cst_326 : f32 to vector<16x8xf32>
    %758 = arith.addf %757, %756 : vector<16x8xf32>
    %759 = tpu.concatenate %420, %420, %420, %420, %420, %420, %420, %420 in 1 : vector<16x16xf32>, vector<16x16xf32>, vector<16x16xf32>, vector<16x16xf32>, vector<16x16xf32>, vector<16x16xf32>, vector<16x16xf32>, vector<16x16xf32> -> vector<16x128xf32>
    %760 = vector.extract_strided_slice %589 {offsets = [0, 0], sizes = [1, 16], strides = [1, 1]} : vector<8x16xf32> to vector<1x16xf32>
    %761 = vector.extract_strided_slice %589 {offsets = [1, 0], sizes = [1, 16], strides = [1, 1]} : vector<8x16xf32> to vector<1x16xf32>
    %762 = vector.extract_strided_slice %589 {offsets = [2, 0], sizes = [1, 16], strides = [1, 1]} : vector<8x16xf32> to vector<1x16xf32>
    %763 = vector.extract_strided_slice %589 {offsets = [3, 0], sizes = [1, 16], strides = [1, 1]} : vector<8x16xf32> to vector<1x16xf32>
    %764 = vector.extract_strided_slice %589 {offsets = [4, 0], sizes = [1, 16], strides = [1, 1]} : vector<8x16xf32> to vector<1x16xf32>
    %765 = vector.extract_strided_slice %589 {offsets = [5, 0], sizes = [1, 16], strides = [1, 1]} : vector<8x16xf32> to vector<1x16xf32>
    %766 = vector.extract_strided_slice %589 {offsets = [6, 0], sizes = [1, 16], strides = [1, 1]} : vector<8x16xf32> to vector<1x16xf32>
    %767 = vector.extract_strided_slice %589 {offsets = [7, 0], sizes = [1, 16], strides = [1, 1]} : vector<8x16xf32> to vector<1x16xf32>
    %768 = tpu.concatenate %760, %761, %762, %763, %764, %765, %766, %767 in 1 : vector<1x16xf32>, vector<1x16xf32>, vector<1x16xf32>, vector<1x16xf32>, vector<1x16xf32>, vector<1x16xf32>, vector<1x16xf32>, vector<1x16xf32> -> vector<1x128xf32>
    %769 = vector.extract_strided_slice %758 {offsets = [0, 0], sizes = [16, 1], strides = [1, 1]} : vector<16x8xf32> to vector<16x1xf32>
    %770 = vector.shape_cast %769 : vector<16x1xf32> to vector<16x1xf32>
    %771 = vector.broadcast %770 : vector<16x1xf32> to vector<16x16xf32>
    %772 = vector.extract_strided_slice %758 {offsets = [0, 1], sizes = [16, 1], strides = [1, 1]} : vector<16x8xf32> to vector<16x1xf32>
    %773 = vector.shape_cast %772 : vector<16x1xf32> to vector<16x1xf32>
    %774 = vector.broadcast %773 : vector<16x1xf32> to vector<16x16xf32>
    %775 = vector.extract_strided_slice %758 {offsets = [0, 2], sizes = [16, 1], strides = [1, 1]} : vector<16x8xf32> to vector<16x1xf32>
    %776 = vector.shape_cast %775 : vector<16x1xf32> to vector<16x1xf32>
    %777 = vector.broadcast %776 : vector<16x1xf32> to vector<16x16xf32>
    %778 = vector.extract_strided_slice %758 {offsets = [0, 3], sizes = [16, 1], strides = [1, 1]} : vector<16x8xf32> to vector<16x1xf32>
    %779 = vector.shape_cast %778 : vector<16x1xf32> to vector<16x1xf32>
    %780 = vector.broadcast %779 : vector<16x1xf32> to vector<16x16xf32>
    %781 = vector.extract_strided_slice %758 {offsets = [0, 4], sizes = [16, 1], strides = [1, 1]} : vector<16x8xf32> to vector<16x1xf32>
    %782 = vector.shape_cast %781 : vector<16x1xf32> to vector<16x1xf32>
    %783 = vector.broadcast %782 : vector<16x1xf32> to vector<16x16xf32>
    %784 = vector.extract_strided_slice %758 {offsets = [0, 5], sizes = [16, 1], strides = [1, 1]} : vector<16x8xf32> to vector<16x1xf32>
    %785 = vector.shape_cast %784 : vector<16x1xf32> to vector<16x1xf32>
    %786 = vector.broadcast %785 : vector<16x1xf32> to vector<16x16xf32>
    %787 = vector.extract_strided_slice %758 {offsets = [0, 6], sizes = [16, 1], strides = [1, 1]} : vector<16x8xf32> to vector<16x1xf32>
    %788 = vector.shape_cast %787 : vector<16x1xf32> to vector<16x1xf32>
    %789 = vector.broadcast %788 : vector<16x1xf32> to vector<16x16xf32>
    %790 = vector.extract_strided_slice %758 {offsets = [0, 7], sizes = [16, 1], strides = [1, 1]} : vector<16x8xf32> to vector<16x1xf32>
    %791 = vector.shape_cast %790 : vector<16x1xf32> to vector<16x1xf32>
    %792 = vector.broadcast %791 : vector<16x1xf32> to vector<16x16xf32>
    %793 = tpu.concatenate %771, %774, %777, %780, %783, %786, %789, %792 in 1 : vector<16x16xf32>, vector<16x16xf32>, vector<16x16xf32>, vector<16x16xf32>, vector<16x16xf32>, vector<16x16xf32>, vector<16x16xf32>, vector<16x16xf32> -> vector<16x128xf32>
    %794 = vector.broadcast %768 : vector<1x128xf32> to vector<16x128xf32>
    %795 = arith.addf %759, %794 : vector<16x128xf32>
    %796 = arith.addf %795, %793 : vector<16x128xf32>
    %cst_327 = arith.constant 0.333333343 : f32
    %797 = vector.broadcast %cst_327 : f32 to vector<16x128xf32>
    %798 = arith.mulf %796, %797 : vector<16x128xf32>
    %799 = arith.mulf %127, %798 : vector<16x128xf32>
    %800 = vector.extract_strided_slice %799 {offsets = [0, 0], sizes = [16, 16], strides = [1, 1]} : vector<16x128xf32> to vector<16x16xf32>
    %c0_328 = arith.constant 0 : index
    %c0_329 = arith.constant 0 : index
    %c0_330 = arith.constant 0 : index
    %c0_331 = arith.constant 0 : index
    %801 = vector.load %arg10[%c0_328, %c0_329, %c0_330, %c0_331] : memref<1x8x16x16xf32, #tpu.memory_space<vmem>>, vector<1x1x16x16xf32>
    %802 = vector.shape_cast %801 : vector<1x1x16x16xf32> to vector<16x16xf32>
    %803 = vector.shape_cast %800 : vector<16x16xf32> to vector<1x1x16x16xf32>
    tpu.vector_store %arg10[%c0_328, %c0_329, %c0_330, %c0_331], %803 {strides = array<i32>} : memref<1x8x16x16xf32, #tpu.memory_space<vmem>>, vector<1x1x16x16xf32>,
    %804 = vector.extract_strided_slice %799 {offsets = [0, 16], sizes = [16, 16], strides = [1, 1]} : vector<16x128xf32> to vector<16x16xf32>
    %c0_332 = arith.constant 0 : index
    %c1_333 = arith.constant 1 : index
    %c0_334 = arith.constant 0 : index
    %c0_335 = arith.constant 0 : index
    %805 = vector.load %arg10[%c0_332, %c1_333, %c0_334, %c0_335] : memref<1x8x16x16xf32, #tpu.memory_space<vmem>>, vector<1x1x16x16xf32>
    %806 = vector.shape_cast %805 : vector<1x1x16x16xf32> to vector<16x16xf32>
    %807 = vector.shape_cast %804 : vector<16x16xf32> to vector<1x1x16x16xf32>
    tpu.vector_store %arg10[%c0_332, %c1_333, %c0_334, %c0_335], %807 {strides = array<i32>} : memref<1x8x16x16xf32, #tpu.memory_space<vmem>>, vector<1x1x16x16xf32>,
    %808 = vector.extract_strided_slice %799 {offsets = [0, 32], sizes = [16, 16], strides = [1, 1]} : vector<16x128xf32> to vector<16x16xf32>
    %c0_336 = arith.constant 0 : index
    %c2_337 = arith.constant 2 : index
    %c0_338 = arith.constant 0 : index
    %c0_339 = arith.constant 0 : index
    %809 = vector.load %arg10[%c0_336, %c2_337, %c0_338, %c0_339] : memref<1x8x16x16xf32, #tpu.memory_space<vmem>>, vector<1x1x16x16xf32>
    %810 = vector.shape_cast %809 : vector<1x1x16x16xf32> to vector<16x16xf32>
    %811 = vector.shape_cast %808 : vector<16x16xf32> to vector<1x1x16x16xf32>
    tpu.vector_store %arg10[%c0_336, %c2_337, %c0_338, %c0_339], %811 {strides = array<i32>} : memref<1x8x16x16xf32, #tpu.memory_space<vmem>>, vector<1x1x16x16xf32>,
    %812 = vector.extract_strided_slice %799 {offsets = [0, 48], sizes = [16, 16], strides = [1, 1]} : vector<16x128xf32> to vector<16x16xf32>
    %c0_340 = arith.constant 0 : index
    %c3 = arith.constant 3 : index
    %c0_341 = arith.constant 0 : index
    %c0_342 = arith.constant 0 : index
    %813 = vector.load %arg10[%c0_340, %c3, %c0_341, %c0_342] : memref<1x8x16x16xf32, #tpu.memory_space<vmem>>, vector<1x1x16x16xf32>
    %814 = vector.shape_cast %813 : vector<1x1x16x16xf32> to vector<16x16xf32>
    %815 = vector.shape_cast %812 : vector<16x16xf32> to vector<1x1x16x16xf32>
    tpu.vector_store %arg10[%c0_340, %c3, %c0_341, %c0_342], %815 {strides = array<i32>} : memref<1x8x16x16xf32, #tpu.memory_space<vmem>>, vector<1x1x16x16xf32>,
    %816 = vector.extract_strided_slice %799 {offsets = [0, 64], sizes = [16, 16], strides = [1, 1]} : vector<16x128xf32> to vector<16x16xf32>
    %c0_343 = arith.constant 0 : index
    %c4 = arith.constant 4 : index
    %c0_344 = arith.constant 0 : index
    %c0_345 = arith.constant 0 : index
    %817 = vector.load %arg10[%c0_343, %c4, %c0_344, %c0_345] : memref<1x8x16x16xf32, #tpu.memory_space<vmem>>, vector<1x1x16x16xf32>
    %818 = vector.shape_cast %817 : vector<1x1x16x16xf32> to vector<16x16xf32>
    %819 = vector.shape_cast %816 : vector<16x16xf32> to vector<1x1x16x16xf32>
    tpu.vector_store %arg10[%c0_343, %c4, %c0_344, %c0_345], %819 {strides = array<i32>} : memref<1x8x16x16xf32, #tpu.memory_space<vmem>>, vector<1x1x16x16xf32>,
    %820 = vector.extract_strided_slice %799 {offsets = [0, 80], sizes = [16, 16], strides = [1, 1]} : vector<16x128xf32> to vector<16x16xf32>
    %c0_346 = arith.constant 0 : index
    %c5 = arith.constant 5 : index
    %c0_347 = arith.constant 0 : index
    %c0_348 = arith.constant 0 : index
    %821 = vector.load %arg10[%c0_346, %c5, %c0_347, %c0_348] : memref<1x8x16x16xf32, #tpu.memory_space<vmem>>, vector<1x1x16x16xf32>
    %822 = vector.shape_cast %821 : vector<1x1x16x16xf32> to vector<16x16xf32>
    %823 = vector.shape_cast %820 : vector<16x16xf32> to vector<1x1x16x16xf32>
    tpu.vector_store %arg10[%c0_346, %c5, %c0_347, %c0_348], %823 {strides = array<i32>} : memref<1x8x16x16xf32, #tpu.memory_space<vmem>>, vector<1x1x16x16xf32>,
    %824 = vector.extract_strided_slice %799 {offsets = [0, 96], sizes = [16, 16], strides = [1, 1]} : vector<16x128xf32> to vector<16x16xf32>
    %c0_349 = arith.constant 0 : index
    %c6 = arith.constant 6 : index
    %c0_350 = arith.constant 0 : index
    %c0_351 = arith.constant 0 : index
    %825 = vector.load %arg10[%c0_349, %c6, %c0_350, %c0_351] : memref<1x8x16x16xf32, #tpu.memory_space<vmem>>, vector<1x1x16x16xf32>
    %826 = vector.shape_cast %825 : vector<1x1x16x16xf32> to vector<16x16xf32>
    %827 = vector.shape_cast %824 : vector<16x16xf32> to vector<1x1x16x16xf32>
    tpu.vector_store %arg10[%c0_349, %c6, %c0_350, %c0_351], %827 {strides = array<i32>} : memref<1x8x16x16xf32, #tpu.memory_space<vmem>>, vector<1x1x16x16xf32>,
    %828 = vector.extract_strided_slice %799 {offsets = [0, 112], sizes = [16, 16], strides = [1, 1]} : vector<16x128xf32> to vector<16x16xf32>
    %c0_352 = arith.constant 0 : index
    %c7 = arith.constant 7 : index
    %c0_353 = arith.constant 0 : index
    %c0_354 = arith.constant 0 : index
    %829 = vector.load %arg10[%c0_352, %c7, %c0_353, %c0_354] : memref<1x8x16x16xf32, #tpu.memory_space<vmem>>, vector<1x1x16x16xf32>
    %830 = vector.shape_cast %829 : vector<1x1x16x16xf32> to vector<16x16xf32>
    %831 = vector.shape_cast %828 : vector<16x16xf32> to vector<1x1x16x16xf32>
    tpu.vector_store %arg10[%c0_352, %c7, %c0_353, %c0_354], %831 {strides = array<i32>} : memref<1x8x16x16xf32, #tpu.memory_space<vmem>>, vector<1x1x16x16xf32>,
    return
  }
  func.func @transform_0(%arg0: i32) -> i32 {
    %c0_i32 = arith.constant 0 : i32
    %c0_i32_0 = arith.constant 0 : i32
    return %c0_i32 : i32
  }
  func.func @transform_1(%arg0: i32) -> (i32, i32, i32) {
    %c0_i32 = arith.constant 0 : i32
    %c0_i32_0 = arith.constant 0 : i32
    %c0_i32_1 = arith.constant 0 : i32
    %c0_i32_2 = arith.constant 0 : i32
    return %c0_i32, %c0_i32_0, %c0_i32_1 : i32, i32, i32
  }
  func.func @transform_2(%arg0: i32) -> (i32, i32) {
    %c0_i32 = arith.constant 0 : i32
    %c0_i32_0 = arith.constant 0 : i32
    %c0_i32_1 = arith.constant 0 : i32
    return %c0_i32, %c0_i32_0 : i32, i32
  }
  func.func @transform_3(%arg0: i32) -> (i32, i32) {
    %c0_i32 = arith.constant 0 : i32
    %c0_i32_0 = arith.constant 0 : i32
    %c0_i32_1 = arith.constant 0 : i32
    return %c0_i32, %c0_i32_0 : i32, i32
  }
  func.func @transform_4(%arg0: i32) -> (i32, i32) {
    %c0_i32 = arith.constant 0 : i32
    %c0_i32_0 = arith.constant 0 : i32
    %c0_i32_1 = arith.constant 0 : i32
    return %c0_i32, %c0_i32_0 : i32, i32
  }
  func.func @transform_5(%arg0: i32) -> (i32, i32) {
    %c0_i32 = arith.constant 0 : i32
    %c0_i32_0 = arith.constant 0 : i32
    %c0_i32_1 = arith.constant 0 : i32
    return %c0_i32, %c0_i32_0 : i32, i32
  }
  func.func @transform_6(%arg0: i32) -> (i32, i32) {
    %c0_i32 = arith.constant 0 : i32
    %c0_i32_0 = arith.constant 0 : i32
    %c0_i32_1 = arith.constant 0 : i32
    return %c0_i32, %c0_i32_0 : i32, i32
  }
  func.func @transform_7(%arg0: i32) -> (i32, i32) {
    %c0_i32 = arith.constant 0 : i32
    %c0_i32_0 = arith.constant 0 : i32
    %c0_i32_1 = arith.constant 0 : i32
    return %c0_i32, %c0_i32_0 : i32, i32
  }
  func.func @transform_8(%arg0: i32) -> (i32, i32, i32, i32) {
    %c0_i32 = arith.constant 0 : i32
    %c0_i32_0 = arith.constant 0 : i32
    %c0_i32_1 = arith.constant 0 : i32
    %c0_i32_2 = arith.constant 0 : i32
    return %arg0, %c0_i32, %c0_i32_0, %c0_i32_1 : i32, i32, i32, i32
  }
  func.func @transform_9(%arg0: i32) -> (i32, i32, i32, i32) {
    %c0_i32 = arith.constant 0 : i32
    %c0_i32_0 = arith.constant 0 : i32
    %c0_i32_1 = arith.constant 0 : i32
    %c0_i32_2 = arith.constant 0 : i32
    return %arg0, %c0_i32, %c0_i32_0, %c0_i32_1 : i32, i32, i32, i32
  }
}

</mosaic_0001>

<llo_original>
// kernel: conv_block_i_forward.1
$region0: #{conv_block_i_forward.1}
  #allocation0 [shape = 'u32[]', space=smem, size = 0x4, offset = 0x4, fixed_abs, tag = 'smem constant byte address 0x4 - core index']
  #allocation1 [shape = 'u32[144,128]{1,0:T(1,128)}', space=vmem, size = 0x12000, scoped, tag = 'internal scratch']
  %s0 = inlined_call_operand.vmem [shape: f32[3], index: 0, kind: input, shape index: {}]
  %s1 = inlined_call_operand.vmem [shape: f32[3,2,128], index: 1, kind: input, shape index: {}]
  %s2 = inlined_call_operand.vmem [shape: f32[192,128], index: 2, kind: input, shape index: {}]
  %s3 = inlined_call_operand.vmem [shape: f32[384,128], index: 3, kind: input, shape index: {}]
  %s4 = inlined_call_operand.vmem [shape: f32[384,128], index: 4, kind: input, shape index: {}]
  %s5 = inlined_call_operand.vmem [shape: f32[224,16], index: 5, kind: input, shape index: {}]
  %s6 = inlined_call_operand.vmem [shape: f32[224,16], index: 6, kind: input, shape index: {}]
  %s7 = inlined_call_operand.vmem [shape: f32[112,8], index: 7, kind: input, shape index: {}]
  %s8 = inlined_call_operand.vmem [shape: f32[2,4,16,16], index: 8, kind: input, shape index: {}]
  %s9 = inlined_call_operand.hbm [shape: f32[2,8,16,16], index: 9, kind: output, shape index: {}]
  %s10 = sld [smem:[#allocation0]]
  $region73: #{conv_block_i_forward.1} parent=0
    _
  %s12 = ssub.s32 1, %s10
  %s13 = scalar_select 0, %s12, %s10
  $region1: #{conv_block_i_forward.1} parent=0
    #allocation2 [shape = 'u8[512]{0}', space=smem, size = 0x200, scoped, tag = 'input window, operand 0, single buffered']
    #allocation3 [shape = 's32[2]{0}', space=sflag, size = 0x8, scoped, tag = 'scoped memory for conv_block_i_forward.1']
    #allocation4 [shape = 's32[2]{0}', space=sflag, size = 0x8, scoped, tag = 'scoped memory for conv_block_i_forward.1']
    #allocation5 [shape = 'u8[131072]{0}', space=vmem, size = 0x20000, scoped, tag = 'output window, operand 0']
    %14 = vsyncpa [#allocation4], 0
    %15 = vsyncpa [#allocation3], 0
    %s16 = scalar_lea.sflag [#allocation3], 1
    %17 = vsyncpa %s16, 0
    loop: start=0, step=1, limit=4
    $region2: #{conv_block_i_forward.1} parent=1 // loop_pre_header
      _
    $region3: #{conv_block_i_forward.1} parent=1 // loop_header
      %s19 = sphi 0, %s23
      %p20 = scmp.ge.s32.totalorder %s19, 4
      %s27 = sphi 0, %s27
      %s29 = sphi 0, %s27
      %s30 = sphi 0, %s29
      %s44 = sphi 0, %s30
      %s48 = sphi 0, %s48
      %s50 = sphi 0, %s48
      %s51 = sphi 0, %s50
      %s65 = sphi 0, %s51
      %s69 = sphi 0, %s69
      %s71 = sphi 0, %s69
      %s72 = sphi 0, %s71
      %s86 = sphi 0, %s72
      %s90 = sphi 0, %s90
      %s92 = sphi 0, %s90
      %s93 = sphi 0, %s92
      %s107 = sphi 0, %s93
      %s111 = sphi 0, %s111
      %s113 = sphi 0, %s111
      %s114 = sphi 0, %s113
      %s128 = sphi 0, %s114
      %s132 = sphi 0, %s132
      %s134 = sphi 0, %s132
      %s135 = sphi 0, %s134
      %s149 = sphi 0, %s135
      %s153 = sphi 0, %s153
      %s155 = sphi 0, %s153
      %s156 = sphi 0, %s155
      %s170 = sphi 0, %s156
      %s174 = sphi 0, %s174
      %s176 = sphi 0, %s174
      %s177 = sphi 0, %s176
      %s191 = sphi 0, %s177
      %s197 = sphi 0, %s199
      %s200 = sphi 0, %s197
      %s201 = sphi 0, %s200
      %s217 = sphi 0, %s201
      %s223 = sphi 0, %s225
      %s226 = sphi 0, %s223
      %s227 = sphi 0, %s226
      %s243 = sphi 0, %s227
    $region4: #{conv_block_i_forward.1} parent=1 // loop_header_branch
      %22 = sbr.rel (%p20) target = $region8
    $region5: #{conv_block_i_forward.1} parent=1 // loop_body
      %s24 = ssub.s32 %s19, 1
      %s25 = ssub.s32 %s19, 2
      %s26 = sadd.s32 %s19, 1
      %s28 = sadd.s32 %s27, 1
      %p31 = scmp.eq.s32.totalorder %s19, 1
      %p32 = scmp.ne.s32.totalorder %s27, %s29
      %p33 = scmp.eq.s32.totalorder %s19, 0
      %p34 = por %p32, %p33
      %p35 = scmp.ne.s32.totalorder %s27, %s29
      %p36 = scmp.eq.s32.totalorder %s24, 1
      %p37 = por %p35, %p36
      %p38 = scmp.ne.s32.totalorder %s29, %s30
      %p39 = scmp.eq.s32.totalorder %s24, 0
      %p40 = por %p38, %p39
      %p41 = scmp.ne.s32.totalorder %s29, %s30
      %p42 = scmp.eq.s32.totalorder %s25, 1
      %p43 = por %p41, %p42
      %p45 = scmp.ne.s32.totalorder %s30, %s44
      %p46 = scmp.eq.s32.totalorder %s25, 0
      %p47 = por %p45, %p46
      %s49 = sadd.s32 %s48, 1
      %p52 = scmp.eq.s32.totalorder %s19, 1
      %p53 = scmp.ne.s32.totalorder %s48, %s50
      %p54 = scmp.eq.s32.totalorder %s19, 0
      %p55 = por %p53, %p54
      %p56 = scmp.ne.s32.totalorder %s48, %s50
      %p57 = scmp.eq.s32.totalorder %s24, 1
      %p58 = por %p56, %p57
      %p59 = scmp.ne.s32.totalorder %s50, %s51
      %p60 = scmp.eq.s32.totalorder %s24, 0
      %p61 = por %p59, %p60
      %p62 = scmp.ne.s32.totalorder %s50, %s51
      %p63 = scmp.eq.s32.totalorder %s25, 1
      %p64 = por %p62, %p63
      %p66 = scmp.ne.s32.totalorder %s51, %s65
      %p67 = scmp.eq.s32.totalorder %s25, 0
      %p68 = por %p66, %p67
      %s70 = sadd.s32 %s69, 1
      %p73 = scmp.eq.s32.totalorder %s19, 1
      %p74 = scmp.ne.s32.totalorder %s69, %s71
      %p75 = scmp.eq.s32.totalorder %s19, 0
      %p76 = por %p74, %p75
      %p77 = scmp.ne.s32.totalorder %s69, %s71
      %p78 = scmp.eq.s32.totalorder %s24, 1
      %p79 = por %p77, %p78
      %p80 = scmp.ne.s32.totalorder %s71, %s72
      %p81 = scmp.eq.s32.totalorder %s24, 0
      %p82 = por %p80, %p81
      %p83 = scmp.ne.s32.totalorder %s71, %s72
      %p84 = scmp.eq.s32.totalorder %s25, 1
      %p85 = por %p83, %p84
      %p87 = scmp.ne.s32.totalorder %s72, %s86
      %p88 = scmp.eq.s32.totalorder %s25, 0
      %p89 = por %p87, %p88
      %s91 = sadd.s32 %s90, 1
      %p94 = scmp.eq.s32.totalorder %s19, 1
      %p95 = scmp.ne.s32.totalorder %s90, %s92
      %p96 = scmp.eq.s32.totalorder %s19, 0
      %p97 = por %p95, %p96
      %p98 = scmp.ne.s32.totalorder %s90, %s92
      %p99 = scmp.eq.s32.totalorder %s24, 1
      %p100 = por %p98, %p99
      %p101 = scmp.ne.s32.totalorder %s92, %s93
      %p102 = scmp.eq.s32.totalorder %s24, 0
      %p103 = por %p101, %p102
      %p104 = scmp.ne.s32.totalorder %s92, %s93
      %p105 = scmp.eq.s32.totalorder %s25, 1
      %p106 = por %p104, %p105
      %p108 = scmp.ne.s32.totalorder %s93, %s107
      %p109 = scmp.eq.s32.totalorder %s25, 0
      %p110 = por %p108, %p109
      %s112 = sadd.s32 %s111, 1
      %p115 = scmp.eq.s32.totalorder %s19, 1
      %p116 = scmp.ne.s32.totalorder %s111, %s113
      %p117 = scmp.eq.s32.totalorder %s19, 0
      %p118 = por %p116, %p117
      %p119 = scmp.ne.s32.totalorder %s111, %s113
      %p120 = scmp.eq.s32.totalorder %s24, 1
      %p121 = por %p119, %p120
      %p122 = scmp.ne.s32.totalorder %s113, %s114
      %p123 = scmp.eq.s32.totalorder %s24, 0
      %p124 = por %p122, %p123
      %p125 = scmp.ne.s32.totalorder %s113, %s114
      %p126 = scmp.eq.s32.totalorder %s25, 1
      %p127 = por %p125, %p126
      %p129 = scmp.ne.s32.totalorder %s114, %s128
      %p130 = scmp.eq.s32.totalorder %s25, 0
      %p131 = por %p129, %p130
      %s133 = sadd.s32 %s132, 1
      %p136 = scmp.eq.s32.totalorder %s19, 1
      %p137 = scmp.ne.s32.totalorder %s132, %s134
      %p138 = scmp.eq.s32.totalorder %s19, 0
      %p139 = por %p137, %p138
      %p140 = scmp.ne.s32.totalorder %s132, %s134
      %p141 = scmp.eq.s32.totalorder %s24, 1
      %p142 = por %p140, %p141
      %p143 = scmp.ne.s32.totalorder %s134, %s135
      %p144 = scmp.eq.s32.totalorder %s24, 0
      %p145 = por %p143, %p144
      %p146 = scmp.ne.s32.totalorder %s134, %s135
      %p147 = scmp.eq.s32.totalorder %s25, 1
      %p148 = por %p146, %p147
      %p150 = scmp.ne.s32.totalorder %s135, %s149
      %p151 = scmp.eq.s32.totalorder %s25, 0
      %p152 = por %p150, %p151
      %s154 = sadd.s32 %s153, 1
      %p157 = scmp.eq.s32.totalorder %s19, 1
      %p158 = scmp.ne.s32.totalorder %s153, %s155
      %p159 = scmp.eq.s32.totalorder %s19, 0
      %p160 = por %p158, %p159
      %p161 = scmp.ne.s32.totalorder %s153, %s155
      %p162 = scmp.eq.s32.totalorder %s24, 1
      %p163 = por %p161, %p162
      %p164 = scmp.ne.s32.totalorder %s155, %s156
      %p165 = scmp.eq.s32.totalorder %s24, 0
      %p166 = por %p164, %p165
      %p167 = scmp.ne.s32.totalorder %s155, %s156
      %p168 = scmp.eq.s32.totalorder %s25, 1
      %p169 = por %p167, %p168
      %p171 = scmp.ne.s32.totalorder %s156, %s170
      %p172 = scmp.eq.s32.totalorder %s25, 0
      %p173 = por %p171, %p172
      %s175 = sadd.s32 %s174, 1
      %p178 = scmp.eq.s32.totalorder %s19, 1
      %p179 = scmp.ne.s32.totalorder %s174, %s176
      %p180 = scmp.eq.s32.totalorder %s19, 0
      %p181 = por %p179, %p180
      %p182 = scmp.ne.s32.totalorder %s174, %s176
      %p183 = scmp.eq.s32.totalorder %s24, 1
      %p184 = por %p182, %p183
      %p185 = scmp.ne.s32.totalorder %s176, %s177
      %p186 = scmp.eq.s32.totalorder %s24, 0
      %p187 = por %p185, %p186
      %p188 = scmp.ne.s32.totalorder %s176, %s177
      %p189 = scmp.eq.s32.totalorder %s25, 1
      %p190 = por %p188, %p189
      %p192 = scmp.ne.s32.totalorder %s177, %s191
      %p193 = scmp.eq.s32.totalorder %s25, 0
      %p194 = por %p192, %p193
      %s195 = ssub.s32 %s19, %s26
      %p196 = scmp.eq.s32.totalorder %s195, 0
      %s198 = sadd.s32 %s197, 1
      %s199 = scalar_select %p196, %s197, %s198
      %p202 = pneg %p196
      %p203 = scmp.eq.s32.totalorder %s19, 1
      %p204 = por %p202, %p203
      %p205 = scmp.ne.s32.totalorder %s197, %s200
      %p206 = scmp.eq.s32.totalorder %s19, 0
      %p207 = por %p205, %p206
      %p208 = scmp.ne.s32.totalorder %s197, %s200
      %p209 = scmp.eq.s32.totalorder %s24, 1
      %p210 = por %p208, %p209
      %p211 = scmp.ne.s32.totalorder %s200, %s201
      %p212 = scmp.eq.s32.totalorder %s24, 0
      %p213 = por %p211, %p212
      %p214 = scmp.ne.s32.totalorder %s200, %s201
      %p215 = scmp.eq.s32.totalorder %s25, 1
      %p216 = por %p214, %p215
      %p218 = scmp.ne.s32.totalorder %s201, %s217
      %p219 = scmp.eq.s32.totalorder %s25, 0
      %p220 = por %p218, %p219
      %s221 = ssub.s32 %s19, %s26
      %p222 = scmp.eq.s32.totalorder %s221, 0
      %s224 = sadd.s32 %s223, 1
      %s225 = scalar_select %p222, %s223, %s224
      %p228 = pneg %p222
      %p229 = scmp.eq.s32.totalorder %s19, 1
      %p230 = por %p228, %p229
      %p231 = scmp.ne.s32.totalorder %s223, %s226
      %p232 = scmp.eq.s32.totalorder %s19, 0
      %p233 = por %p231, %p232
      %p234 = scmp.ne.s32.totalorder %s223, %s226
      %p235 = scmp.eq.s32.totalorder %s24, 1
      %p236 = por %p234, %p235
      %p237 = scmp.ne.s32.totalorder %s226, %s227
      %p238 = scmp.eq.s32.totalorder %s24, 0
      %p239 = por %p237, %p238
      %p240 = scmp.ne.s32.totalorder %s226, %s227
      %p241 = scmp.eq.s32.totalorder %s25, 1
      %p242 = por %p240, %p241
      %p244 = scmp.ne.s32.totalorder %s227, %s243
      %p245 = scmp.eq.s32.totalorder %s25, 0
      %p246 = por %p244, %p245
      %p247 = scmp.le.s32.totalorder 1, %s19
      %p248 = scmp.lt.s32.totalorder %s19, 3
      %p249 = pnand %p247, %p248
      %p250 = pneg %p249
      // Predicated region
      $region9: #{conv_block_i_forward.1} parent=5 // pred_check
        _
      $region10: #{conv_block_i_forward.1} parent=5 // pred_check_branch
        %252 = sbr.rel (%p249) target = $region12
      $region11: #{conv_block_i_forward.1} parent=5 // pred_region
        %s253 = ssub.s32 %s19, 1
        // Predicated region
        $region13: #{conv_block_i_forward.1} parent=11 // pred_check
          %p254 = pneg %p40
        $region14: #{conv_block_i_forward.1} parent=11 // pred_check_branch
          %256 = sbr.rel (%p254) target = $region16
        $region15: #{conv_block_i_forward.1} parent=11 // pred_region
          %s258 = ssub.s32 16, 16
          %259 = vsyncadd [#allocation4], %s258
          %s261 = sshll.u32 %s0, 4
          %s262 = int_to_ptr.vmem [resolvable:$true] %s261
          %264 = dma.vmem_to_smem %s262, 16, [#allocation2], [#allocation4]
        $region16: #{conv_block_i_forward.1} parent=11 // pred_fallthru
          _
        // Predicated region
        $region17: #{conv_block_i_forward.1} parent=11 // pred_check
          %p265 = pneg %p61
        $region18: #{conv_block_i_forward.1} parent=11 // pred_check_branch
          %267 = sbr.rel (%p265) target = $region20
        $region19: #{conv_block_i_forward.1} parent=11 // pred_region
          _
        $region20: #{conv_block_i_forward.1} parent=11 // pred_fallthru
          _
        // Predicated region
        $region21: #{conv_block_i_forward.1} parent=11 // pred_check
          %p268 = pneg %p82
        $region22: #{conv_block_i_forward.1} parent=11 // pred_check_branch
          %270 = sbr.rel (%p268) target = $region24
        $region23: #{conv_block_i_forward.1} parent=11 // pred_region
          _
        $region24: #{conv_block_i_forward.1} parent=11 // pred_fallthru
          _
        // Predicated region
        $region25: #{conv_block_i_forward.1} parent=11 // pred_check
          %p271 = pneg %p103
        $region26: #{conv_block_i_forward.1} parent=11 // pred_check_branch
          %273 = sbr.rel (%p271) target = $region28
        $region27: #{conv_block_i_forward.1} parent=11 // pred_region
          _
        $region28: #{conv_block_i_forward.1} parent=11 // pred_fallthru
          _
        // Predicated region
        $region29: #{conv_block_i_forward.1} parent=11 // pred_check
          %p274 = pneg %p124
        $region30: #{conv_block_i_forward.1} parent=11 // pred_check_branch
          %276 = sbr.rel (%p274) target = $region32
        $region31: #{conv_block_i_forward.1} parent=11 // pred_region
          _
        $region32: #{conv_block_i_forward.1} parent=11 // pred_fallthru
          _
        // Predicated region
        $region33: #{conv_block_i_forward.1} parent=11 // pred_check
          %p277 = pneg %p145
        $region34: #{conv_block_i_forward.1} parent=11 // pred_check_branch
          %279 = sbr.rel (%p277) target = $region36
        $region35: #{conv_block_i_forward.1} parent=11 // pred_region
          _
        $region36: #{conv_block_i_forward.1} parent=11 // pred_fallthru
          _
        // Predicated region
        $region37: #{conv_block_i_forward.1} parent=11 // pred_check
          %p280 = pneg %p166
        $region38: #{conv_block_i_forward.1} parent=11 // pred_check_branch
          %282 = sbr.rel (%p280) target = $region40
        $region39: #{conv_block_i_forward.1} parent=11 // pred_region
          _
        $region40: #{conv_block_i_forward.1} parent=11 // pred_fallthru
          _
        // Predicated region
        $region41: #{conv_block_i_forward.1} parent=11 // pred_check
          %p283 = pneg %p187
        $region42: #{conv_block_i_forward.1} parent=11 // pred_check_branch
          %285 = sbr.rel (%p283) target = $region44
        $region43: #{conv_block_i_forward.1} parent=11 // pred_region
          _
        $region44: #{conv_block_i_forward.1} parent=11 // pred_fallthru
          _
      $region12: #{conv_block_i_forward.1} parent=5 // pred_fallthru
        _
      %p286 = scmp.lt.s32.totalorder %s19, 2
      // Predicated region
      $region45: #{conv_block_i_forward.1} parent=5 // pred_check
        %p287 = pneg %p286
      $region46: #{conv_block_i_forward.1} parent=5 // pred_check_branch
        %289 = sbr.rel (%p287) target = $region48
      $region47: #{conv_block_i_forward.1} parent=5 // pred_region
        // Predicated region
        $region49: #{conv_block_i_forward.1} parent=47 // pred_check
          %p290 = pneg %p207
        $region50: #{conv_block_i_forward.1} parent=47 // pred_check_branch
          %292 = sbr.rel (%p290) target = $region52
        $region51: #{conv_block_i_forward.1} parent=47 // pred_region
          %p293 = scmp.lt.s32.totalorder %s19, 1
          %s294 = scalar_select %p293, %s19, 1
          %s295 = smul.addr %s294, 8
          %s296 = smul.addr %s295, 8
          %s297 = scalar_lea.vmem %s8, %s296
        $region52: #{conv_block_i_forward.1} parent=47 // pred_fallthru
          _
      $region48: #{conv_block_i_forward.1} parent=5 // pred_fallthru
        _
      %p298 = scmp.le.s32.totalorder 1, %s19
      %p299 = scmp.lt.s32.totalorder %s19, 3
      %p300 = pnand %p298, %p299
      %p301 = pneg %p300
      // Predicated region
      $region53: #{conv_block_i_forward.1} parent=5 // pred_check
        _
      $region54: #{conv_block_i_forward.1} parent=5 // pred_check_branch
        %303 = sbr.rel (%p300) target = $region56
      $region55: #{conv_block_i_forward.1} parent=5 // pred_region
        %s304 = ssub.s32 %s19, 1
        // Predicated region
        $region57: #{conv_block_i_forward.1} parent=55 // pred_check
          %p305 = pneg %p40
        $region58: #{conv_block_i_forward.1} parent=55 // pred_check_branch
          %307 = sbr.rel (%p305) target = $region60
        $region59: #{conv_block_i_forward.1} parent=55 // pred_region
          %308 = dma.done [#allocation4], 16
        $region60: #{conv_block_i_forward.1} parent=55 // pred_fallthru
          _
        %309 = sfence
        %p310 = pneg %p40
        %p311 = pneg %p37
        %p312 = pneg %p61
        %p313 = pneg %p58
        %p314 = pneg %p82
        %p315 = pneg %p79
        %p316 = pneg %p103
        %p317 = pneg %p100
        %p318 = pneg %p124
        %p319 = pneg %p121
        %p320 = pneg %p145
        %p321 = pneg %p142
        %p322 = pneg %p166
        %p323 = pneg %p163
        %p324 = pneg %p187
        %p325 = pneg %p184
        %p326 = scmp.lt.s32.totalorder %s24, 1
        %s327 = scalar_select %p326, %s24, 1
        %s328 = smul.addr %s327, 8
        %s329 = smul.addr %s328, 8
        %s330 = scalar_lea.vmem %s8, %s329
        %p331 = pneg %p213
        %p332 = pneg %p210
        %p333 = pneg %p239
        %p334 = pneg %p236
        %s335 = sand.u32 %s226, 1
        %s336 = scalar_lea.sflag [#allocation3], %s335
        %s337 = sand.u32 %s226, 1
        %s338 = smul.addr %s337, 128
        %s339 = scalar_lea.vmem [#allocation5], %s338
        %p340 = scmp.lt.s32.totalorder %s24, 1
        %s341 = scalar_select %p340, %s24, 1
        %s342 = smul.addr %s341, 8
        %s343 = smul.addr %s342, 8
        %s344 = scalar_lea.vmem %s8, %s343
        %v345 = vld [vmem:[%s344] sm:$0xff]
        %v346 = vld [vmem:[%s344 + $0x8] sm:$0xff]
        %v347 = vld [vmem:[%s344 + $0x10] sm:$0xff]
        %v348 = vld [vmem:[%s344 + $0x18] sm:$0xff]
        %v349 = vld [vmem:[%s344 + $0x20] sm:$0xff]
        %v350 = vld [vmem:[%s344 + $0x28] sm:$0xff]
        %v351 = vld [vmem:[%s344 + $0x30] sm:$0xff]
        %v352 = vld [vmem:[%s344 + $0x38] sm:$0xff]
        %355 = vrot.lane.b32.xlu0 %v347, 16
        %v356 = vpop.permute.xlu0 %355
        %357 = vrot.lane.b32.xlu0 %v348, 16
        %v358 = vpop.permute.xlu0 %357
        %363 = vrot.lane.b32.xlu0 %v349, 32
        %v364 = vpop.permute.xlu0 %363
        %365 = vrot.lane.b32.xlu0 %v350, 32
        %v366 = vpop.permute.xlu0 %365
        %371 = vrot.lane.b32.xlu0 %v351, 48
        %v372 = vpop.permute.xlu0 %371
        %373 = vrot.lane.b32.xlu0 %v352, 48
        %v374 = vpop.permute.xlu0 %373
        %vm377 = vcmask 130048
        %v378 = vsel %vm377, %v345, %v356
        %v379 = vsel %vm377, %v346, %v358
        %vm380 = vcmask 261120
        %v381 = vsel %vm380, %v378, %v364
        %v382 = vsel %vm380, %v379, %v366
        %vm383 = vcmask 392192
        %v384 = vsel %vm383, %v381, %v372
        %v385 = vsel %vm383, %v382, %v374
        %v386 = vld [vmem:[%s1] sm:$0x3]
        %v387 = vrot.slane %v384, 7
        %v388 = vrot.slane %v385, 7
        %v389 = vlaneseq
        %v390 = vshrl.u32 %v389, 7
        %vm391 = vcmp.lt.s32.totalorder %v390, 1
        %v392 = vsel %vm391, %v387, %v388
        %v393 = vsel %vm391, %v388, %v387
        %v394 = vadd.s32 %v390, 8
        %v395 = vadd.s32 %v390, 4294967295
        %v396 = vadd.s32 %v394, 4294967295
        %vm397 = vcmp.ge.s32.totalorder %v395, 0
        %vm398 = vcmp.ge.s32.totalorder %v396, 0
        %vm399 = vcmp.lt.s32.totalorder %v395, 16
        %vm400 = vcmp.lt.s32.totalorder %v396, 16
        %vm401 = vmand %vm397, %vm399
        %vm402 = vmand %vm398, %vm400
        %v403 = vsel %vm401, %v393, 0.0
        %v404 = vsel %vm402, %v392, 0.0
        %v405 = vrot.slane %v384, 1
        %v406 = vrot.slane %v385, 1
        %vm407 = vcmp.lt.s32.totalorder %v390, 7
        %v408 = vsel %vm407, %v405, %v406
        %v409 = vsel %vm407, %v406, %v405
        %v410 = vadd.s32 %v390, 1
        %v411 = vadd.s32 %v394, 1
        %vm412 = vcmp.ge.s32.totalorder %v410, 0
        %vm413 = vcmp.ge.s32.totalorder %v411, 0
        %vm414 = vcmp.lt.s32.totalorder %v410, 16
        %vm415 = vcmp.lt.s32.totalorder %v411, 16
        %vm416 = vmand %vm412, %vm414
        %vm417 = vmand %vm413, %vm415
        %v418 = vsel %vm416, %v408, 0.0
        %v419 = vsel %vm417, %v409, 0.0
        %422 = vrot.lane.b32.xlu0 %v384, 64
        %v423 = vpop.permute.xlu0 %422
        %424 = vrot.lane.b32.xlu0 %v385, 64
        %v425 = vpop.permute.xlu0 %424
        %vm428 = vcmask 523264
        %v429 = vsel %vm428, %v403, %v423
        %v430 = vsel %vm428, %v404, %v425
        %v431 = vld [vmem:[%s2] sm:$0xff]
        %v432 = vld [vmem:[%s2 + $0x8] sm:$0xff]
        %v433 = vld [vmem:[%s2 + $0x10] sm:$0xff]
        %v434 = vld [vmem:[%s2 + $0x18] sm:$0xff]
        %v435 = vld [vmem:[%s2 + $0x20] sm:$0xff]
        %v436 = vld [vmem:[%s2 + $0x28] sm:$0xff]
        %v437 = vld [vmem:[%s2 + $0x30] sm:$0xff]
        %v438 = vld [vmem:[%s2 + $0x38] sm:$0xff]
        %v439 = vld [vmem:[%s2 + $0x40] sm:$0xff]
        %v440 = vld [vmem:[%s2 + $0x48] sm:$0xff]
        %v441 = vld [vmem:[%s2 + $0x50] sm:$0xff]
        %v442 = vld [vmem:[%s2 + $0x58] sm:$0xff]
        %v443 = vld [vmem:[%s2 + $0x60] sm:$0xff]
        %v444 = vld [vmem:[%s2 + $0x68] sm:$0xff]
        %v445 = vld [vmem:[%s2 + $0x70] sm:$0xff]
        %v446 = vld [vmem:[%s2 + $0x78] sm:$0xff]
        %v447 = vld [vmem:[%s2 + $0x80] sm:$0xff]
        %v448 = vld [vmem:[%s2 + $0x88] sm:$0xff]
        %v449 = vld [vmem:[%s2 + $0x90] sm:$0xff]
        %v450 = vld [vmem:[%s2 + $0x98] sm:$0xff]
        %v451 = vld [vmem:[%s2 + $0xa0] sm:$0xff]
        %v452 = vld [vmem:[%s2 + $0xa8] sm:$0xff]
        %v453 = vld [vmem:[%s2 + $0xb0] sm:$0xff]
        %v454 = vld [vmem:[%s2 + $0xb8] sm:$0xff]
        %v456 = vsel %vm428, %v418, 0
        %v459 = vsel %vm428, %v419, 0
        %461 = vmatprep.subr.mxu0 0.0
        %462 = vmatpush1.msra.mxu0 %v431
        %463 = vmatprep.subr.mxu0 0.0
        %464 = vmatpush1.msra.mxu0 %v432
        %465 = vmatprep.subr.mxu0 0.0
        %466 = vmatpush1.msra.mxu0 %v433
        %467 = vmatprep.subr.mxu0 0.0
        %468 = vmatpush1.msra.mxu0 %v434
        %469 = vmatprep.subr.mxu0 0.0
        %470 = vmatpush1.msra.mxu0 %v435
        %471 = vmatprep.subr.mxu0 0.0
        %472 = vmatpush1.msra.mxu0 %v436
        %473 = vmatprep.subr.mxu0 0.0
        %474 = vmatpush1.msra.mxu0 %v437
        %475 = vmatprep.subr.mxu0 0.0
        %476 = vmatpush1.msra.mxu0 %v438
        %477 = vmatprep.subr.mxu0 0.0
        %478 = vmatpush1.msra.mxu0 %v439
        %479 = vmatprep.subr.mxu0 0.0
        %480 = vmatpush1.msra.mxu0 %v440
        %481 = vmatprep.subr.mxu0 0.0
        %482 = vmatpush1.msra.mxu0 %v441
        %483 = vmatprep.subr.mxu0 0.0
        %484 = vmatpush1.msra.mxu0 %v442
        %485 = vmatprep.subr.mxu0 0.0
        %486 = vmatpush1.msra.mxu0 %v443
        %487 = vmatprep.subr.mxu0 0.0
        %488 = vmatpush1.msra.mxu0 %v444
        %489 = vmatprep.subr.mxu0 0.0
        %490 = vmatpush1.msra.mxu0 %v445
        %491 = vmatprep.subr.mxu0 0.0
        %492 = vmatpush1.msra.mxu0 %v446
        %493 = vmatprep.subr.mxu0 0.0
        %494 = vmatpush1.msra.mxu0 %v447
        %495 = vmatprep.subr.mxu0 0.0
        %496 = vmatpush1.msra.mxu0 %v448
        %497 = vmatprep.subr.mxu0 0.0
        %498 = vmatpush1.msra.mxu0 %v449
        %499 = vmatprep.subr.mxu0 0.0
        %500 = vmatpush1.msra.mxu0 %v450
        %501 = vmatprep.subr.mxu0 0.0
        %502 = vmatpush1.msra.mxu0 %v451
        %503 = vmatprep.subr.mxu0 0.0
        %504 = vmatpush1.msra.mxu0 %v452
        %505 = vmatprep.subr.mxu0 0.0
        %506 = vmatpush1.msra.mxu0 %v453
        %507 = vmatprep.subr.mxu0 0.0
        %508 = vmatpush1.msra.mxu0 %v454
        %509 = vmatprep.subr.mxu0 0.0
        %510 = vmatpush1.msra.mxu0 0.0
        %511 = vmatprep.subr.mxu0 0.0
        %512 = vmatpush1.msra.mxu0 0.0
        %513 = vmatprep.subr.mxu0 0.0
        %514 = vmatpush1.msra.mxu0 0.0
        %515 = vmatprep.subr.mxu0 0.0
        %516 = vmatpush1.msra.mxu0 0.0
        %517 = vmatprep.subr.mxu0 0.0
        %518 = vmatpush1.msra.mxu0 0.0
        %519 = vmatprep.subr.mxu0 0.0
        %520 = vmatpush1.msra.mxu0 0.0
        %521 = vmatprep.subr.mxu0 0.0
        %522 = vmatpush1.msra.mxu0 0.0
        %523 = vmatprep.subr.mxu0 0.0
        %524 = vmatpush1.msra.mxu0 0.0
        %525 = vmatprep.mubr.f32.mxu0 %v456
        %526 = vmatmul.mubr.f32.gmra.mrb[0].mxu0 %v429
        %v527 = vpop.f32.mrb[0].mxu0
        %v528 = vadd.f32 0.0, %v527
        %v529 = vpop.f32.mrb[0].mxu0
        %530 = vmatprep.mubr.f32.mxu0 %v459
        %531 = vmatmul.mubr.f32.gmra.mrb[0].mxu0 %v430
        %v532 = vpop.f32.mrb[0].mxu0
        %v533 = vadd.f32 0.0, %v532
        %v534 = vpop.f32.mrb[0].mxu0
        %535 = vdwg.mxu0
        %v536 = vlaneseq
        %v537 = vshrl.u32 %v536, 7
        %v538 = vsub.s32 0, %v537
        %v539 = vrot.slane %v386, %v538
        %v540 = vmul.f32 %v528, %v539
        %v541 = vmul.f32 %v533, %v539
        %v542 = vlaneseq
        %v543 = vshrl.u32 %v542, 7
        %v544 = vsub.s32 1, %v543
        %v545 = vrot.slane %v386, %v544
        %v546 = vadd.f32 %v540, %v545
        %v547 = vadd.f32 %v541, %v545
        %s548 = scalar_lea.vmem %s1, 2
        %v549 = vld [vmem:[%s548] sm:$0x3]
        %v550 = vrot.slane %v546, 7
        %v551 = vrot.slane %v547, 7
        %v552 = vsel %vm391, %v550, %v551
        %v553 = vsel %vm391, %v551, %v550
        %v554 = vsel %vm401, %v553, 0.0
        %v555 = vsel %vm402, %v552, 0.0
        %v556 = vrot.slane %v546, 1
        %v557 = vrot.slane %v547, 1
        %v558 = vsel %vm407, %v556, %v557
        %v559 = vsel %vm407, %v557, %v556
        %v560 = vsel %vm416, %v558, 0.0
        %v561 = vsel %vm417, %v559, 0.0
        %v562 = vld [vmem:[%s3] sm:$0xff]
        %v563 = vld [vmem:[%s3 + $0x8] sm:$0xff]
        %v564 = vld [vmem:[%s3 + $0x10] sm:$0xff]
        %v565 = vld [vmem:[%s3 + $0x18] sm:$0xff]
        %v566 = vld [vmem:[%s3 + $0x20] sm:$0xff]
        %v567 = vld [vmem:[%s3 + $0x28] sm:$0xff]
        %v568 = vld [vmem:[%s3 + $0x30] sm:$0xff]
        %v569 = vld [vmem:[%s3 + $0x38] sm:$0xff]
        %v570 = vld [vmem:[%s3 + $0x40] sm:$0xff]
        %v571 = vld [vmem:[%s3 + $0x48] sm:$0xff]
        %v572 = vld [vmem:[%s3 + $0x50] sm:$0xff]
        %v573 = vld [vmem:[%s3 + $0x58] sm:$0xff]
        %v574 = vld [vmem:[%s3 + $0x60] sm:$0xff]
        %v575 = vld [vmem:[%s3 + $0x68] sm:$0xff]
        %v576 = vld [vmem:[%s3 + $0x70] sm:$0xff]
        %v577 = vld [vmem:[%s3 + $0x78] sm:$0xff]
        %v578 = vld [vmem:[%s3 + $0x80] sm:$0xff]
        %v579 = vld [vmem:[%s3 + $0x88] sm:$0xff]
        %v580 = vld [vmem:[%s3 + $0x90] sm:$0xff]
        %v581 = vld [vmem:[%s3 + $0x98] sm:$0xff]
        %v582 = vld [vmem:[%s3 + $0xa0] sm:$0xff]
        %v583 = vld [vmem:[%s3 + $0xa8] sm:$0xff]
        %v584 = vld [vmem:[%s3 + $0xb0] sm:$0xff]
        %v585 = vld [vmem:[%s3 + $0xb8] sm:$0xff]
        %v586 = vld [vmem:[%s3 + $0xc0] sm:$0xff]
        %v587 = vld [vmem:[%s3 + $0xc8] sm:$0xff]
        %v588 = vld [vmem:[%s3 + $0xd0] sm:$0xff]
        %v589 = vld [vmem:[%s3 + $0xd8] sm:$0xff]
        %v590 = vld [vmem:[%s3 + $0xe0] sm:$0xff]
        %v591 = vld [vmem:[%s3 + $0xe8] sm:$0xff]
        %v592 = vld [vmem:[%s3 + $0xf0] sm:$0xff]
        %v593 = vld [vmem:[%s3 + $0xf8] sm:$0xff]
        %v594 = vld [vmem:[%s3 + $0x100] sm:$0xff]
        %v595 = vld [vmem:[%s3 + $0x108] sm:$0xff]
        %v596 = vld [vmem:[%s3 + $0x110] sm:$0xff]
        %v597 = vld [vmem:[%s3 + $0x118] sm:$0xff]
        %v598 = vld [vmem:[%s3 + $0x120] sm:$0xff]
        %v599 = vld [vmem:[%s3 + $0x128] sm:$0xff]
        %v600 = vld [vmem:[%s3 + $0x130] sm:$0xff]
        %v601 = vld [vmem:[%s3 + $0x138] sm:$0xff]
        %v602 = vld [vmem:[%s3 + $0x140] sm:$0xff]
        %v603 = vld [vmem:[%s3 + $0x148] sm:$0xff]
        %v604 = vld [vmem:[%s3 + $0x150] sm:$0xff]
        %v605 = vld [vmem:[%s3 + $0x158] sm:$0xff]
        %v606 = vld [vmem:[%s3 + $0x160] sm:$0xff]
        %v607 = vld [vmem:[%s3 + $0x168] sm:$0xff]
        %v608 = vld [vmem:[%s3 + $0x170] sm:$0xff]
        %v609 = vld [vmem:[%s3 + $0x178] sm:$0xff]
        %610 = vmatprep.subr.mxu0 0.0
        %611 = vmatpush1.msra.mxu0 %v562
        %612 = vmatprep.subr.mxu0 0.0
        %613 = vmatpush1.msra.mxu0 %v563
        %614 = vmatprep.subr.mxu0 0.0
        %615 = vmatpush1.msra.mxu0 %v564
        %616 = vmatprep.subr.mxu0 0.0
        %617 = vmatpush1.msra.mxu0 %v565
        %618 = vmatprep.subr.mxu0 0.0
        %619 = vmatpush1.msra.mxu0 %v566
        %620 = vmatprep.subr.mxu0 0.0
        %621 = vmatpush1.msra.mxu0 %v567
        %622 = vmatprep.subr.mxu0 0.0
        %623 = vmatpush1.msra.mxu0 %v568
        %624 = vmatprep.subr.mxu0 0.0
        %625 = vmatpush1.msra.mxu0 %v569
        %626 = vmatprep.subr.mxu0 0.0
        %627 = vmatpush1.msra.mxu0 %v570
        %628 = vmatprep.subr.mxu0 0.0
        %629 = vmatpush1.msra.mxu0 %v571
        %630 = vmatprep.subr.mxu0 0.0
        %631 = vmatpush1.msra.mxu0 %v572
        %632 = vmatprep.subr.mxu0 0.0
        %633 = vmatpush1.msra.mxu0 %v573
        %634 = vmatprep.subr.mxu0 0.0
        %635 = vmatpush1.msra.mxu0 %v574
        %636 = vmatprep.subr.mxu0 0.0
        %637 = vmatpush1.msra.mxu0 %v575
        %638 = vmatprep.subr.mxu0 0.0
        %639 = vmatpush1.msra.mxu0 %v576
        %640 = vmatprep.subr.mxu0 0.0
        %641 = vmatpush1.msra.mxu0 %v577
        %642 = vmatprep.subr.mxu0 0.0
        %643 = vmatpush1.msra.mxu0 %v578
        %644 = vmatprep.subr.mxu0 0.0
        %645 = vmatpush1.msra.mxu0 %v579
        %646 = vmatprep.subr.mxu0 0.0
        %647 = vmatpush1.msra.mxu0 %v580
        %648 = vmatprep.subr.mxu0 0.0
        %649 = vmatpush1.msra.mxu0 %v581
        %650 = vmatprep.subr.mxu0 0.0
        %651 = vmatpush1.msra.mxu0 %v582
        %652 = vmatprep.subr.mxu0 0.0
        %653 = vmatpush1.msra.mxu0 %v583
        %654 = vmatprep.subr.mxu0 0.0
        %655 = vmatpush1.msra.mxu0 %v584
        %656 = vmatprep.subr.mxu0 0.0
        %657 = vmatpush1.msra.mxu0 %v585
        %658 = vmatprep.subr.mxu0 0.0
        %659 = vmatpush1.msra.mxu0 %v586
        %660 = vmatprep.subr.mxu0 0.0
        %661 = vmatpush1.msra.mxu0 %v587
        %662 = vmatprep.subr.mxu0 0.0
        %663 = vmatpush1.msra.mxu0 %v588
        %664 = vmatprep.subr.mxu0 0.0
        %665 = vmatpush1.msra.mxu0 %v589
        %666 = vmatprep.subr.mxu0 0.0
        %667 = vmatpush1.msra.mxu0 %v590
        %668 = vmatprep.subr.mxu0 0.0
        %669 = vmatpush1.msra.mxu0 %v591
        %670 = vmatprep.subr.mxu0 0.0
        %671 = vmatpush1.msra.mxu0 %v592
        %672 = vmatprep.subr.mxu0 0.0
        %673 = vmatpush1.msra.mxu0 %v593
        %674 = vmatprep.mubr.f32.mxu0 %v546
        %675 = vmatmul.mubr.f32.gmra.mrb[0].mxu0 %v554
        %v676 = vpop.f32.mrb[0].mxu0
        %v677 = vadd.f32 0.0, %v676
        %v678 = vpop.f32.mrb[0].mxu0
        %679 = vmatprep.mubr.f32.mxu0 %v547
        %680 = vmatmul.mubr.f32.gmra.mrb[0].mxu0 %v555
        %v681 = vpop.f32.mrb[0].mxu0
        %v682 = vadd.f32 0.0, %v681
        %v683 = vpop.f32.mrb[0].mxu0
        %684 = vdwg.mxu0
        %685 = vmatprep.subr.mxu0 0.0
        %686 = vmatpush1.msra.mxu0 %v594
        %687 = vmatprep.subr.mxu0 0.0
        %688 = vmatpush1.msra.mxu0 %v595
        %689 = vmatprep.subr.mxu0 0.0
        %690 = vmatpush1.msra.mxu0 %v596
        %691 = vmatprep.subr.mxu0 0.0
        %692 = vmatpush1.msra.mxu0 %v597
        %693 = vmatprep.subr.mxu0 0.0
        %694 = vmatpush1.msra.mxu0 %v598
        %695 = vmatprep.subr.mxu0 0.0
        %696 = vmatpush1.msra.mxu0 %v599
        %697 = vmatprep.subr.mxu0 0.0
        %698 = vmatpush1.msra.mxu0 %v600
        %699 = vmatprep.subr.mxu0 0.0
        %700 = vmatpush1.msra.mxu0 %v601
        %701 = vmatprep.subr.mxu0 0.0
        %702 = vmatpush1.msra.mxu0 %v602
        %703 = vmatprep.subr.mxu0 0.0
        %704 = vmatpush1.msra.mxu0 %v603
        %705 = vmatprep.subr.mxu0 0.0
        %706 = vmatpush1.msra.mxu0 %v604
        %707 = vmatprep.subr.mxu0 0.0
        %708 = vmatpush1.msra.mxu0 %v605
        %709 = vmatprep.subr.mxu0 0.0
        %710 = vmatpush1.msra.mxu0 %v606
        %711 = vmatprep.subr.mxu0 0.0
        %712 = vmatpush1.msra.mxu0 %v607
        %713 = vmatprep.subr.mxu0 0.0
        %714 = vmatpush1.msra.mxu0 %v608
        %715 = vmatprep.subr.mxu0 0.0
        %716 = vmatpush1.msra.mxu0 %v609
        %717 = vmatprep.subr.mxu0 0.0
        %718 = vmatpush1.msra.mxu0 0.0
        %719 = vmatprep.subr.mxu0 0.0
        %720 = vmatpush1.msra.mxu0 0.0
        %721 = vmatprep.subr.mxu0 0.0
        %722 = vmatpush1.msra.mxu0 0.0
        %723 = vmatprep.subr.mxu0 0.0
        %724 = vmatpush1.msra.mxu0 0.0
        %725 = vmatprep.subr.mxu0 0.0
        %726 = vmatpush1.msra.mxu0 0.0
        %727 = vmatprep.subr.mxu0 0.0
        %728 = vmatpush1.msra.mxu0 0.0
        %729 = vmatprep.subr.mxu0 0.0
        %730 = vmatpush1.msra.mxu0 0.0
        %731 = vmatprep.subr.mxu0 0.0
        %732 = vmatpush1.msra.mxu0 0.0
        %733 = vmatprep.subr.mxu0 0.0
        %734 = vmatpush1.msra.mxu0 0.0
        %735 = vmatprep.subr.mxu0 0.0
        %736 = vmatpush1.msra.mxu0 0.0
        %737 = vmatprep.subr.mxu0 0.0
        %738 = vmatpush1.msra.mxu0 0.0
        %739 = vmatprep.subr.mxu0 0.0
        %740 = vmatpush1.msra.mxu0 0.0
        %741 = vmatprep.subr.mxu0 0.0
        %742 = vmatpush1.msra.mxu0 0.0
        %743 = vmatprep.subr.mxu0 0.0
        %744 = vmatpush1.msra.mxu0 0.0
        %745 = vmatprep.subr.mxu0 0.0
        %746 = vmatpush1.msra.mxu0 0.0
        %747 = vmatprep.subr.mxu0 0.0
        %748 = vmatpush1.msra.mxu0 0.0
        %749 = vmatprep.mubr.f32.mxu0 0.0
        %750 = vmatmul.mubr.f32.gmra.mrb[0].mxu0 %v560
        %v751 = vpop.f32.mrb[0].mxu0
        %v752 = vadd.f32 %v677, %v751
        %v753 = vpop.f32.mrb[0].mxu0
        %754 = vmatprep.mubr.f32.mxu0 0.0
        %755 = vmatmul.mubr.f32.gmra.mrb[0].mxu0 %v561
        %v756 = vpop.f32.mrb[0].mxu0
        %v757 = vadd.f32 %v682, %v756
        %v758 = vpop.f32.mrb[0].mxu0
        %759 = vdwg.mxu0
        %v760 = vlaneseq
        %v761 = vshrl.u32 %v760, 7
        %v762 = vsub.s32 0, %v761
        %v763 = vrot.slane %v549, %v762
        %v764 = vmul.f32 %v752, %v763
        %v765 = vmul.f32 %v757, %v763
        %v766 = vlaneseq
        %v767 = vshrl.u32 %v766, 7
        %v768 = vsub.s32 1, %v767
        %v769 = vrot.slane %v549, %v768
        %v770 = vadd.f32 %v764, %v769
        %v771 = vadd.f32 %v765, %v769
        %v772 = vmax.f32 %v770, 0.0
        %v773 = vmax.f32 %v771, 0.0
        %v774 = vadd.f32 %v772, %v546
        %v775 = vadd.f32 %v773, %v547
        %s776 = scalar_lea.vmem %s1, 4
        %v777 = vld [vmem:[%s776] sm:$0x3]
        %v778 = vrot.slane %v774, 7
        %v779 = vrot.slane %v775, 7
        %v780 = vsel %vm391, %v778, %v779
        %v781 = vsel %vm391, %v779, %v778
        %v782 = vsel %vm401, %v781, 0.0
        %v783 = vsel %vm402, %v780, 0.0
        %v784 = vrot.slane %v774, 1
        %v785 = vrot.slane %v775, 1
        %v786 = vsel %vm407, %v784, %v785
        %v787 = vsel %vm407, %v785, %v784
        %v788 = vsel %vm416, %v786, 0.0
        %v789 = vsel %vm417, %v787, 0.0
        %v790 = vld [vmem:[%s4] sm:$0xff]
        %v791 = vld [vmem:[%s4 + $0x8] sm:$0xff]
        %v792 = vld [vmem:[%s4 + $0x10] sm:$0xff]
        %v793 = vld [vmem:[%s4 + $0x18] sm:$0xff]
        %v794 = vld [vmem:[%s4 + $0x20] sm:$0xff]
        %v795 = vld [vmem:[%s4 + $0x28] sm:$0xff]
        %v796 = vld [vmem:[%s4 + $0x30] sm:$0xff]
        %v797 = vld [vmem:[%s4 + $0x38] sm:$0xff]
        %v798 = vld [vmem:[%s4 + $0x40] sm:$0xff]
        %v799 = vld [vmem:[%s4 + $0x48] sm:$0xff]
        %v800 = vld [vmem:[%s4 + $0x50] sm:$0xff]
        %v801 = vld [vmem:[%s4 + $0x58] sm:$0xff]
        %v802 = vld [vmem:[%s4 + $0x60] sm:$0xff]
        %v803 = vld [vmem:[%s4 + $0x68] sm:$0xff]
        %v804 = vld [vmem:[%s4 + $0x70] sm:$0xff]
        %v805 = vld [vmem:[%s4 + $0x78] sm:$0xff]
        %v806 = vld [vmem:[%s4 + $0x80] sm:$0xff]
        %v807 = vld [vmem:[%s4 + $0x88] sm:$0xff]
        %v808 = vld [vmem:[%s4 + $0x90] sm:$0xff]
        %v809 = vld [vmem:[%s4 + $0x98] sm:$0xff]
        %v810 = vld [vmem:[%s4 + $0xa0] sm:$0xff]
        %v811 = vld [vmem:[%s4 + $0xa8] sm:$0xff]
        %v812 = vld [vmem:[%s4 + $0xb0] sm:$0xff]
        %v813 = vld [vmem:[%s4 + $0xb8] sm:$0xff]
        %v814 = vld [vmem:[%s4 + $0xc0] sm:$0xff]
        %v815 = vld [vmem:[%s4 + $0xc8] sm:$0xff]
        %v816 = vld [vmem:[%s4 + $0xd0] sm:$0xff]
        %v817 = vld [vmem:[%s4 + $0xd8] sm:$0xff]
        %v818 = vld [vmem:[%s4 + $0xe0] sm:$0xff]
        %v819 = vld [vmem:[%s4 + $0xe8] sm:$0xff]
        %v820 = vld [vmem:[%s4 + $0xf0] sm:$0xff]
        %v821 = vld [vmem:[%s4 + $0xf8] sm:$0xff]
        %v822 = vld [vmem:[%s4 + $0x100] sm:$0xff]
        %v823 = vld [vmem:[%s4 + $0x108] sm:$0xff]
        %v824 = vld [vmem:[%s4 + $0x110] sm:$0xff]
        %v825 = vld [vmem:[%s4 + $0x118] sm:$0xff]
        %v826 = vld [vmem:[%s4 + $0x120] sm:$0xff]
        %v827 = vld [vmem:[%s4 + $0x128] sm:$0xff]
        %v828 = vld [vmem:[%s4 + $0x130] sm:$0xff]
        %v829 = vld [vmem:[%s4 + $0x138] sm:$0xff]
        %v830 = vld [vmem:[%s4 + $0x140] sm:$0xff]
        %v831 = vld [vmem:[%s4 + $0x148] sm:$0xff]
        %v832 = vld [vmem:[%s4 + $0x150] sm:$0xff]
        %v833 = vld [vmem:[%s4 + $0x158] sm:$0xff]
        %v834 = vld [vmem:[%s4 + $0x160] sm:$0xff]
        %v835 = vld [vmem:[%s4 + $0x168] sm:$0xff]
        %v836 = vld [vmem:[%s4 + $0x170] sm:$0xff]
        %v837 = vld [vmem:[%s4 + $0x178] sm:$0xff]
        %838 = vmatprep.subr.mxu0 0.0
        %839 = vmatpush1.msra.mxu0 %v790
        %840 = vmatprep.subr.mxu0 0.0
        %841 = vmatpush1.msra.mxu0 %v791
        %842 = vmatprep.subr.mxu0 0.0
        %843 = vmatpush1.msra.mxu0 %v792
        %844 = vmatprep.subr.mxu0 0.0
        %845 = vmatpush1.msra.mxu0 %v793
        %846 = vmatprep.subr.mxu0 0.0
        %847 = vmatpush1.msra.mxu0 %v794
        %848 = vmatprep.subr.mxu0 0.0
        %849 = vmatpush1.msra.mxu0 %v795
        %850 = vmatprep.subr.mxu0 0.0
        %851 = vmatpush1.msra.mxu0 %v796
        %852 = vmatprep.subr.mxu0 0.0
        %853 = vmatpush1.msra.mxu0 %v797
        %854 = vmatprep.subr.mxu0 0.0
        %855 = vmatpush1.msra.mxu0 %v798
        %856 = vmatprep.subr.mxu0 0.0
        %857 = vmatpush1.msra.mxu0 %v799
        %858 = vmatprep.subr.mxu0 0.0
        %859 = vmatpush1.msra.mxu0 %v800
        %860 = vmatprep.subr.mxu0 0.0
        %861 = vmatpush1.msra.mxu0 %v801
        %862 = vmatprep.subr.mxu0 0.0
        %863 = vmatpush1.msra.mxu0 %v802
        %864 = vmatprep.subr.mxu0 0.0
        %865 = vmatpush1.msra.mxu0 %v803
        %866 = vmatprep.subr.mxu0 0.0
        %867 = vmatpush1.msra.mxu0 %v804
        %868 = vmatprep.subr.mxu0 0.0
        %869 = vmatpush1.msra.mxu0 %v805
        %870 = vmatprep.subr.mxu0 0.0
        %871 = vmatpush1.msra.mxu0 %v806
        %872 = vmatprep.subr.mxu0 0.0
        %873 = vmatpush1.msra.mxu0 %v807
        %874 = vmatprep.subr.mxu0 0.0
        %875 = vmatpush1.msra.mxu0 %v808
        %876 = vmatprep.subr.mxu0 0.0
        %877 = vmatpush1.msra.mxu0 %v809
        %878 = vmatprep.subr.mxu0 0.0
        %879 = vmatpush1.msra.mxu0 %v810
        %880 = vmatprep.subr.mxu0 0.0
        %881 = vmatpush1.msra.mxu0 %v811
        %882 = vmatprep.subr.mxu0 0.0
        %883 = vmatpush1.msra.mxu0 %v812
        %884 = vmatprep.subr.mxu0 0.0
        %885 = vmatpush1.msra.mxu0 %v813
        %886 = vmatprep.subr.mxu0 0.0
        %887 = vmatpush1.msra.mxu0 %v814
        %888 = vmatprep.subr.mxu0 0.0
        %889 = vmatpush1.msra.mxu0 %v815
        %890 = vmatprep.subr.mxu0 0.0
        %891 = vmatpush1.msra.mxu0 %v816
        %892 = vmatprep.subr.mxu0 0.0
        %893 = vmatpush1.msra.mxu0 %v817
        %894 = vmatprep.subr.mxu0 0.0
        %895 = vmatpush1.msra.mxu0 %v818
        %896 = vmatprep.subr.mxu0 0.0
        %897 = vmatpush1.msra.mxu0 %v819
        %898 = vmatprep.subr.mxu0 0.0
        %899 = vmatpush1.msra.mxu0 %v820
        %900 = vmatprep.subr.mxu0 0.0
        %901 = vmatpush1.msra.mxu0 %v821
        %902 = vmatprep.mubr.f32.mxu0 %v774
        %903 = vmatmul.mubr.f32.gmra.mrb[0].mxu0 %v782
        %v904 = vpop.f32.mrb[0].mxu0
        %v905 = vadd.f32 0.0, %v904
        %v906 = vpop.f32.mrb[0].mxu0
        %907 = vmatprep.mubr.f32.mxu0 %v775
        %908 = vmatmul.mubr.f32.gmra.mrb[0].mxu0 %v783
        %v909 = vpop.f32.mrb[0].mxu0
        %v910 = vadd.f32 0.0, %v909
        %v911 = vpop.f32.mrb[0].mxu0
        %912 = vdwg.mxu0
        %913 = vmatprep.subr.mxu0 0.0
        %914 = vmatpush1.msra.mxu0 %v822
        %915 = vmatprep.subr.mxu0 0.0
        %916 = vmatpush1.msra.mxu0 %v823
        %917 = vmatprep.subr.mxu0 0.0
        %918 = vmatpush1.msra.mxu0 %v824
        %919 = vmatprep.subr.mxu0 0.0
        %920 = vmatpush1.msra.mxu0 %v825
        %921 = vmatprep.subr.mxu0 0.0
        %922 = vmatpush1.msra.mxu0 %v826
        %923 = vmatprep.subr.mxu0 0.0
        %924 = vmatpush1.msra.mxu0 %v827
        %925 = vmatprep.subr.mxu0 0.0
        %926 = vmatpush1.msra.mxu0 %v828
        %927 = vmatprep.subr.mxu0 0.0
        %928 = vmatpush1.msra.mxu0 %v829
        %929 = vmatprep.subr.mxu0 0.0
        %930 = vmatpush1.msra.mxu0 %v830
        %931 = vmatprep.subr.mxu0 0.0
        %932 = vmatpush1.msra.mxu0 %v831
        %933 = vmatprep.subr.mxu0 0.0
        %934 = vmatpush1.msra.mxu0 %v832
        %935 = vmatprep.subr.mxu0 0.0
        %936 = vmatpush1.msra.mxu0 %v833
        %937 = vmatprep.subr.mxu0 0.0
        %938 = vmatpush1.msra.mxu0 %v834
        %939 = vmatprep.subr.mxu0 0.0
        %940 = vmatpush1.msra.mxu0 %v835
        %941 = vmatprep.subr.mxu0 0.0
        %942 = vmatpush1.msra.mxu0 %v836
        %943 = vmatprep.subr.mxu0 0.0
        %944 = vmatpush1.msra.mxu0 %v837
        %945 = vmatprep.subr.mxu0 0.0
        %946 = vmatpush1.msra.mxu0 0.0
        %947 = vmatprep.subr.mxu0 0.0
        %948 = vmatpush1.msra.mxu0 0.0
        %949 = vmatprep.subr.mxu0 0.0
        %950 = vmatpush1.msra.mxu0 0.0
        %951 = vmatprep.subr.mxu0 0.0
        %952 = vmatpush1.msra.mxu0 0.0
        %953 = vmatprep.subr.mxu0 0.0
        %954 = vmatpush1.msra.mxu0 0.0
        %955 = vmatprep.subr.mxu0 0.0
        %956 = vmatpush1.msra.mxu0 0.0
        %957 = vmatprep.subr.mxu0 0.0
        %958 = vmatpush1.msra.mxu0 0.0
        %959 = vmatprep.subr.mxu0 0.0
        %960 = vmatpush1.msra.mxu0 0.0
        %961 = vmatprep.subr.mxu0 0.0
        %962 = vmatpush1.msra.mxu0 0.0
        %963 = vmatprep.subr.mxu0 0.0
        %964 = vmatpush1.msra.mxu0 0.0
        %965 = vmatprep.subr.mxu0 0.0
        %966 = vmatpush1.msra.mxu0 0.0
        %967 = vmatprep.subr.mxu0 0.0
        %968 = vmatpush1.msra.mxu0 0.0
        %969 = vmatprep.subr.mxu0 0.0
        %970 = vmatpush1.msra.mxu0 0.0
        %971 = vmatprep.subr.mxu0 0.0
        %972 = vmatpush1.msra.mxu0 0.0
        %973 = vmatprep.subr.mxu0 0.0
        %974 = vmatpush1.msra.mxu0 0.0
        %975 = vmatprep.subr.mxu0 0.0
        %976 = vmatpush1.msra.mxu0 0.0
        %977 = vmatprep.mubr.f32.mxu0 0.0
        %978 = vmatmul.mubr.f32.gmra.mrb[0].mxu0 %v788
        %v979 = vpop.f32.mrb[0].mxu0
        %v980 = vadd.f32 %v905, %v979
        %v981 = vpop.f32.mrb[0].mxu0
        %982 = vmatprep.mubr.f32.mxu0 0.0
        %983 = vmatmul.mubr.f32.gmra.mrb[0].mxu0 %v789
        %v984 = vpop.f32.mrb[0].mxu0
        %v985 = vadd.f32 %v910, %v984
        %v986 = vpop.f32.mrb[0].mxu0
        %987 = vdwg.mxu0
        %v988 = vlaneseq
        %v989 = vshrl.u32 %v988, 7
        %v990 = vsub.s32 0, %v989
        %v991 = vrot.slane %v777, %v990
        %v992 = vmul.f32 %v980, %v991
        %v993 = vmul.f32 %v985, %v991
        %v994 = vlaneseq
        %v995 = vshrl.u32 %v994, 7
        %v996 = vsub.s32 1, %v995
        %v997 = vrot.slane %v777, %v996
        %v998 = vadd.f32 %v992, %v997
        %v999 = vadd.f32 %v993, %v997
        %v1000 = vmax.f32 %v998, 0.0
        %v1001 = vmax.f32 %v999, 0.0
        %v1002 = vadd.f32 %v1000, %v774
        %v1003 = vadd.f32 %v1001, %v775
        %1006 = vrot.lane.b32.xlu0 %v1002, 112
        %v1007 = vpop.permute.xlu0 %1006
        %1008 = vrot.lane.b32.xlu0 %v1003, 112
        %v1009 = vpop.permute.xlu0 %1008
        %v1012 = vmax.f32 %v1002, %v1007
        %v1013 = vmax.f32 %v1003, %v1009
        %1014 = vrot.lane.b32.xlu0 %v1002, 96
        %v1015 = vpop.permute.xlu0 %1014
        %1016 = vrot.lane.b32.xlu0 %v1003, 96
        %v1017 = vpop.permute.xlu0 %1016
        %v1020 = vmax.f32 %v1012, %v1015
        %v1021 = vmax.f32 %v1013, %v1017
        %1022 = vrot.lane.b32.xlu0 %v1002, 80
        %v1023 = vpop.permute.xlu0 %1022
        %1024 = vrot.lane.b32.xlu0 %v1003, 80
        %v1025 = vpop.permute.xlu0 %1024
        %v1028 = vmax.f32 %v1020, %v1023
        %v1029 = vmax.f32 %v1021, %v1025
        %1030 = vrot.lane.b32.xlu0 %v1002, 64
        %v1031 = vpop.permute.xlu0 %1030
        %1032 = vrot.lane.b32.xlu0 %v1003, 64
        %v1033 = vpop.permute.xlu0 %1032
        %v1036 = vmax.f32 %v1028, %v1031
        %v1037 = vmax.f32 %v1029, %v1033
        %1038 = vrot.lane.b32.xlu0 %v1002, 48
        %v1039 = vpop.permute.xlu0 %1038
        %1040 = vrot.lane.b32.xlu0 %v1003, 48
        %v1041 = vpop.permute.xlu0 %1040
        %v1044 = vmax.f32 %v1036, %v1039
        %v1045 = vmax.f32 %v1037, %v1041
        %1046 = vrot.lane.b32.xlu0 %v1002, 32
        %v1047 = vpop.permute.xlu0 %1046
        %1048 = vrot.lane.b32.xlu0 %v1003, 32
        %v1049 = vpop.permute.xlu0 %1048
        %v1052 = vmax.f32 %v1044, %v1047
        %v1053 = vmax.f32 %v1045, %v1049
        %1054 = vrot.lane.b32.xlu0 %v1002, 16
        %v1055 = vpop.permute.xlu0 %1054
        %1056 = vrot.lane.b32.xlu0 %v1003, 16
        %v1057 = vpop.permute.xlu0 %1056
        %v1060 = vmax.f32 %v1052, %v1055
        %v1061 = vmax.f32 %v1053, %v1057
        %v1062 = vadd.f32 %v1002, %v1007
        %v1063 = vadd.f32 %v1003, %v1009
        %v1064 = vadd.f32 %v1062, %v1015
        %v1065 = vadd.f32 %v1063, %v1017
        %v1066 = vadd.f32 %v1064, %v1023
        %v1067 = vadd.f32 %v1065, %v1025
        %v1068 = vadd.f32 %v1066, %v1031
        %v1069 = vadd.f32 %v1067, %v1033
        %v1070 = vadd.f32 %v1068, %v1039
        %v1071 = vadd.f32 %v1069, %v1041
        %v1072 = vadd.f32 %v1070, %v1047
        %v1073 = vadd.f32 %v1071, %v1049
        %v1074 = vadd.f32 %v1072, %v1055
        %v1075 = vadd.f32 %v1073, %v1057
        %v1076 = vmul.f32 %v1074, 0.125
        %v1077 = vmul.f32 %v1075, 0.125
        %v1078 = vsel %vm377, %v1002, -inf
        %v1079 = vsel %vm377, %v1003, -inf
        %v1080 = vmax.f32 %v1078, %v1079
        %v1081 = vrot.slane %v1080, 4
        %v1082 = vmax.f32 %v1080, %v1081
        %v1083 = vrot.slane %v1082, 2
        %v1084 = vmax.f32 %v1082, %v1083
        %v1085 = vrot.slane %v1084, 1
        %v1086 = vmax.f32 %v1084, %v1085
        %vm1087 = vcmask 261248
        %v1088 = vsel %vm1087, %v1002, -inf
        %v1089 = vsel %vm1087, %v1003, -inf
        %v1090 = vmax.f32 %v1088, %v1089
        %v1091 = vrot.slane %v1090, 4
        %v1092 = vmax.f32 %v1090, %v1091
        %v1093 = vrot.slane %v1092, 2
        %v1094 = vmax.f32 %v1092, %v1093
        %v1095 = vrot.slane %v1094, 1
        %v1096 = vmax.f32 %v1094, %v1095
        %vm1097 = vcmask 392448
        %v1098 = vsel %vm1097, %v1002, -inf
        %v1099 = vsel %vm1097, %v1003, -inf
        %v1100 = vmax.f32 %v1098, %v1099
        %v1101 = vrot.slane %v1100, 4
        %v1102 = vmax.f32 %v1100, %v1101
        %v1103 = vrot.slane %v1102, 2
        %v1104 = vmax.f32 %v1102, %v1103
        %v1105 = vrot.slane %v1104, 1
        %v1106 = vmax.f32 %v1104, %v1105
        %vm1107 = vcmask 523648
        %v1108 = vsel %vm1107, %v1002, -inf
        %v1109 = vsel %vm1107, %v1003, -inf
        %v1110 = vmax.f32 %v1108, %v1109
        %v1111 = vrot.slane %v1110, 4
        %v1112 = vmax.f32 %v1110, %v1111
        %v1113 = vrot.slane %v1112, 2
        %v1114 = vmax.f32 %v1112, %v1113
        %v1115 = vrot.slane %v1114, 1
        %v1116 = vmax.f32 %v1114, %v1115
        %vm1117 = vcmask 654848
        %v1118 = vsel %vm1117, %v1002, -inf
        %v1119 = vsel %vm1117, %v1003, -inf
        %v1120 = vmax.f32 %v1118, %v1119
        %v1121 = vrot.slane %v1120, 4
        %v1122 = vmax.f32 %v1120, %v1121
        %v1123 = vrot.slane %v1122, 2
        %v1124 = vmax.f32 %v1122, %v1123
        %v1125 = vrot.slane %v1124, 1
        %v1126 = vmax.f32 %v1124, %v1125
        %vm1127 = vcmask 786048
        %v1128 = vsel %vm1127, %v1002, -inf
        %v1129 = vsel %vm1127, %v1003, -inf
        %v1130 = vmax.f32 %v1128, %v1129
        %v1131 = vrot.slane %v1130, 4
        %v1132 = vmax.f32 %v1130, %v1131
        %v1133 = vrot.slane %v1132, 2
        %v1134 = vmax.f32 %v1132, %v1133
        %v1135 = vrot.slane %v1134, 1
        %v1136 = vmax.f32 %v1134, %v1135
        %vm1137 = vcmask 917248
        %v1138 = vsel %vm1137, %v1002, -inf
        %v1139 = vsel %vm1137, %v1003, -inf
        %v1140 = vmax.f32 %v1138, %v1139
        %v1141 = vrot.slane %v1140, 4
        %v1142 = vmax.f32 %v1140, %v1141
        %v1143 = vrot.slane %v1142, 2
        %v1144 = vmax.f32 %v1142, %v1143
        %v1145 = vrot.slane %v1144, 1
        %v1146 = vmax.f32 %v1144, %v1145
        %vm1147 = vcmask 1048448
        %v1148 = vsel %vm1147, %v1002, -inf
        %v1149 = vsel %vm1147, %v1003, -inf
        %v1150 = vmax.f32 %v1148, %v1149
        %v1151 = vrot.slane %v1150, 4
        %v1152 = vmax.f32 %v1150, %v1151
        %v1153 = vrot.slane %v1152, 2
        %v1154 = vmax.f32 %v1152, %v1153
        %v1155 = vrot.slane %v1154, 1
        %v1156 = vmax.f32 %v1154, %v1155
        %1158 = vrot.lane.b32.xlu0 %v1096, 112
        %v1159 = vpop.permute.xlu0 %1158
        %1162 = vrot.lane.b32.xlu0 %v1106, 96
        %v1163 = vpop.permute.xlu0 %1162
        %1166 = vrot.lane.b32.xlu0 %v1116, 80
        %v1167 = vpop.permute.xlu0 %1166
        %1170 = vrot.lane.b32.xlu0 %v1126, 64
        %v1171 = vpop.permute.xlu0 %1170
        %1174 = vrot.lane.b32.xlu0 %v1136, 48
        %v1175 = vpop.permute.xlu0 %1174
        %1178 = vrot.lane.b32.xlu0 %v1146, 32
        %v1179 = vpop.permute.xlu0 %1178
        %1182 = vrot.lane.b32.xlu0 %v1156, 16
        %v1183 = vpop.permute.xlu0 %1182
        %vm1185 = vcmask 1040384
        %v1186 = vsel %vm1185, %v1086, %v1159
        %vm1187 = vcmask 1041408
        %v1188 = vsel %vm1187, %v1186, %v1163
        %vm1189 = vcmask 1042432
        %v1190 = vsel %vm1189, %v1188, %v1167
        %vm1191 = vcmask 1043456
        %v1192 = vsel %vm1191, %v1190, %v1171
        %vm1193 = vcmask 1044480
        %v1194 = vsel %vm1193, %v1192, %v1175
        %vm1195 = vcmask 1045504
        %v1196 = vsel %vm1195, %v1194, %v1179
        %vm1197 = vcmask 1046528
        %v1198 = vsel %vm1197, %v1196, %v1183
        %v1199 = vsel %vm377, %v1002, 0.0
        %v1200 = vsel %vm377, %v1003, 0.0
        %v1201 = vadd.f32 %v1199, %v1200
        %v1202 = vrot.slane %v1201, 4
        %v1203 = vadd.f32 %v1201, %v1202
        %v1204 = vrot.slane %v1203, 2
        %v1205 = vadd.f32 %v1203, %v1204
        %v1206 = vrot.slane %v1205, 1
        %v1207 = vadd.f32 %v1205, %v1206
        %v1208 = vrcp.pop 16.0
        %v1209 = vmul.f32 %v1207, %v1208
        %v1210 = vsel %vm1087, %v1002, 0.0
        %v1211 = vsel %vm1087, %v1003, 0.0
        %v1212 = vadd.f32 %v1210, %v1211
        %v1213 = vrot.slane %v1212, 4
        %v1214 = vadd.f32 %v1212, %v1213
        %v1215 = vrot.slane %v1214, 2
        %v1216 = vadd.f32 %v1214, %v1215
        %v1217 = vrot.slane %v1216, 1
        %v1218 = vadd.f32 %v1216, %v1217
        %v1219 = vmul.f32 %v1218, %v1208
        %v1220 = vsel %vm1097, %v1002, 0.0
        %v1221 = vsel %vm1097, %v1003, 0.0
        %v1222 = vadd.f32 %v1220, %v1221
        %v1223 = vrot.slane %v1222, 4
        %v1224 = vadd.f32 %v1222, %v1223
        %v1225 = vrot.slane %v1224, 2
        %v1226 = vadd.f32 %v1224, %v1225
        %v1227 = vrot.slane %v1226, 1
        %v1228 = vadd.f32 %v1226, %v1227
        %v1229 = vmul.f32 %v1228, %v1208
        %v1230 = vsel %vm1107, %v1002, 0.0
        %v1231 = vsel %vm1107, %v1003, 0.0
        %v1232 = vadd.f32 %v1230, %v1231
        %v1233 = vrot.slane %v1232, 4
        %v1234 = vadd.f32 %v1232, %v1233
        %v1235 = vrot.slane %v1234, 2
        %v1236 = vadd.f32 %v1234, %v1235
        %v1237 = vrot.slane %v1236, 1
        %v1238 = vadd.f32 %v1236, %v1237
        %v1239 = vmul.f32 %v1238, %v1208
        %v1240 = vsel %vm1117, %v1002, 0.0
        %v1241 = vsel %vm1117, %v1003, 0.0
        %v1242 = vadd.f32 %v1240, %v1241
        %v1243 = vrot.slane %v1242, 4
        %v1244 = vadd.f32 %v1242, %v1243
        %v1245 = vrot.slane %v1244, 2
        %v1246 = vadd.f32 %v1244, %v1245
        %v1247 = vrot.slane %v1246, 1
        %v1248 = vadd.f32 %v1246, %v1247
        %v1249 = vmul.f32 %v1248, %v1208
        %v1250 = vsel %vm1127, %v1002, 0.0
        %v1251 = vsel %vm1127, %v1003, 0.0
        %v1252 = vadd.f32 %v1250, %v1251
        %v1253 = vrot.slane %v1252, 4
        %v1254 = vadd.f32 %v1252, %v1253
        %v1255 = vrot.slane %v1254, 2
        %v1256 = vadd.f32 %v1254, %v1255
        %v1257 = vrot.slane %v1256, 1
        %v1258 = vadd.f32 %v1256, %v1257
        %v1259 = vmul.f32 %v1258, %v1208
        %v1260 = vsel %vm1137, %v1002, 0.0
        %v1261 = vsel %vm1137, %v1003, 0.0
        %v1262 = vadd.f32 %v1260, %v1261
        %v1263 = vrot.slane %v1262, 4
        %v1264 = vadd.f32 %v1262, %v1263
        %v1265 = vrot.slane %v1264, 2
        %v1266 = vadd.f32 %v1264, %v1265
        %v1267 = vrot.slane %v1266, 1
        %v1268 = vadd.f32 %v1266, %v1267
        %v1269 = vmul.f32 %v1268, %v1208
        %v1270 = vsel %vm1147, %v1002, 0.0
        %v1271 = vsel %vm1147, %v1003, 0.0
        %v1272 = vadd.f32 %v1270, %v1271
        %v1273 = vrot.slane %v1272, 4
        %v1274 = vadd.f32 %v1272, %v1273
        %v1275 = vrot.slane %v1274, 2
        %v1276 = vadd.f32 %v1274, %v1275
        %v1277 = vrot.slane %v1276, 1
        %v1278 = vadd.f32 %v1276, %v1277
        %v1279 = vmul.f32 %v1278, %v1208
        %1281 = vrot.lane.b32.xlu0 %v1219, 112
        %v1282 = vpop.permute.xlu0 %1281
        %1285 = vrot.lane.b32.xlu0 %v1229, 96
        %v1286 = vpop.permute.xlu0 %1285
        %1289 = vrot.lane.b32.xlu0 %v1239, 80
        %v1290 = vpop.permute.xlu0 %1289
        %1293 = vrot.lane.b32.xlu0 %v1249, 64
        %v1294 = vpop.permute.xlu0 %1293
        %1297 = vrot.lane.b32.xlu0 %v1259, 48
        %v1298 = vpop.permute.xlu0 %1297
        %1301 = vrot.lane.b32.xlu0 %v1269, 32
        %v1302 = vpop.permute.xlu0 %1301
        %1305 = vrot.lane.b32.xlu0 %v1279, 16
        %v1306 = vpop.permute.xlu0 %1305
        %v1308 = vsel %vm1185, %v1209, %v1282
        %v1309 = vsel %vm1187, %v1308, %v1286
        %v1310 = vsel %vm1189, %v1309, %v1290
        %v1311 = vsel %vm1191, %v1310, %v1294
        %v1312 = vsel %vm1193, %v1311, %v1298
        %v1313 = vsel %vm1195, %v1312, %v1302
        %v1314 = vsel %vm1197, %v1313, %v1306
        %1315 = vmax.xlane.f32.xlu0 %v1078
        %v1316 = vpop.xlane.xlu0 %1315
        %1317 = vmax.xlane.f32.xlu0 %v1079
        %v1318 = vpop.xlane.xlu0 %1317
        %1319 = vmax.xlane.f32.xlu0 %v1088
        %v1320 = vpop.xlane.xlu0 %1319
        %1321 = vmax.xlane.f32.xlu0 %v1089
        %v1322 = vpop.xlane.xlu0 %1321
        %1323 = vmax.xlane.f32.xlu0 %v1098
        %v1324 = vpop.xlane.xlu0 %1323
        %1325 = vmax.xlane.f32.xlu0 %v1099
        %v1326 = vpop.xlane.xlu0 %1325
        %1327 = vmax.xlane.f32.xlu0 %v1108
        %v1328 = vpop.xlane.xlu0 %1327
        %1329 = vmax.xlane.f32.xlu0 %v1109
        %v1330 = vpop.xlane.xlu0 %1329
        %1331 = vmax.xlane.f32.xlu0 %v1118
        %v1332 = vpop.xlane.xlu0 %1331
        %1333 = vmax.xlane.f32.xlu0 %v1119
        %v1334 = vpop.xlane.xlu0 %1333
        %1335 = vmax.xlane.f32.xlu0 %v1128
        %v1336 = vpop.xlane.xlu0 %1335
        %1337 = vmax.xlane.f32.xlu0 %v1129
        %v1338 = vpop.xlane.xlu0 %1337
        %1339 = vmax.xlane.f32.xlu0 %v1138
        %v1340 = vpop.xlane.xlu0 %1339
        %1341 = vmax.xlane.f32.xlu0 %v1139
        %v1342 = vpop.xlane.xlu0 %1341
        %1343 = vmax.xlane.f32.xlu0 %v1148
        %v1344 = vpop.xlane.xlu0 %1343
        %1345 = vmax.xlane.f32.xlu0 %v1149
        %v1346 = vpop.xlane.xlu0 %1345
        %vm1347 = vcmask 7168
        %v1348 = vsel %vm1347, %v1316, %v1320
        %v1349 = vsel %vm1347, %v1318, %v1322
        %vm1350 = vcmask 15360
        %v1351 = vsel %vm1350, %v1348, %v1324
        %v1352 = vsel %vm1350, %v1349, %v1326
        %vm1353 = vcmask 23552
        %v1354 = vsel %vm1353, %v1351, %v1328
        %v1355 = vsel %vm1353, %v1352, %v1330
        %vm1356 = vcmask 31744
        %v1357 = vsel %vm1356, %v1354, %v1332
        %v1358 = vsel %vm1356, %v1355, %v1334
        %vm1359 = vcmask 39936
        %v1360 = vsel %vm1359, %v1357, %v1336
        %v1361 = vsel %vm1359, %v1358, %v1338
        %vm1362 = vcmask 48128
        %v1363 = vsel %vm1362, %v1360, %v1340
        %v1364 = vsel %vm1362, %v1361, %v1342
        %vm1365 = vcmask 56320
        %v1366 = vsel %vm1365, %v1363, %v1344
        %v1367 = vsel %vm1365, %v1364, %v1346
        %1368 = vadd.xlane.f32.xlu0 %v1199
        %v1369 = vpop.xlane.xlu0 %1368
        %1370 = vadd.xlane.f32.xlu0 %v1200
        %v1371 = vpop.xlane.xlu0 %1370
        %v1372 = vmul.f32 %v1369, %v1208
        %v1373 = vmul.f32 %v1371, %v1208
        %v1374 = vsel %vm377, %v1007, 0.0
        %1375 = vadd.xlane.f32.xlu0 %v1374
        %v1376 = vpop.xlane.xlu0 %1375
        %v1377 = vsel %vm377, %v1009, 0.0
        %1378 = vadd.xlane.f32.xlu0 %v1377
        %v1379 = vpop.xlane.xlu0 %1378
        %v1380 = vmul.f32 %v1376, %v1208
        %v1381 = vmul.f32 %v1379, %v1208
        %v1382 = vsel %vm377, %v1015, 0.0
        %1383 = vadd.xlane.f32.xlu0 %v1382
        %v1384 = vpop.xlane.xlu0 %1383
        %v1385 = vsel %vm377, %v1017, 0.0
        %1386 = vadd.xlane.f32.xlu0 %v1385
        %v1387 = vpop.xlane.xlu0 %1386
        %v1388 = vmul.f32 %v1384, %v1208
        %v1389 = vmul.f32 %v1387, %v1208
        %v1390 = vsel %vm377, %v1023, 0.0
        %1391 = vadd.xlane.f32.xlu0 %v1390
        %v1392 = vpop.xlane.xlu0 %1391
        %v1393 = vsel %vm377, %v1025, 0.0
        %1394 = vadd.xlane.f32.xlu0 %v1393
        %v1395 = vpop.xlane.xlu0 %1394
        %v1396 = vmul.f32 %v1392, %v1208
        %v1397 = vmul.f32 %v1395, %v1208
        %v1398 = vsel %vm377, %v1031, 0.0
        %1399 = vadd.xlane.f32.xlu0 %v1398
        %v1400 = vpop.xlane.xlu0 %1399
        %v1401 = vsel %vm377, %v1033, 0.0
        %1402 = vadd.xlane.f32.xlu0 %v1401
        %v1403 = vpop.xlane.xlu0 %1402
        %v1404 = vmul.f32 %v1400, %v1208
        %v1405 = vmul.f32 %v1403, %v1208
        %v1406 = vsel %vm377, %v1039, 0.0
        %1407 = vadd.xlane.f32.xlu0 %v1406
        %v1408 = vpop.xlane.xlu0 %1407
        %v1409 = vsel %vm377, %v1041, 0.0
        %1410 = vadd.xlane.f32.xlu0 %v1409
        %v1411 = vpop.xlane.xlu0 %1410
        %v1412 = vmul.f32 %v1408, %v1208
        %v1413 = vmul.f32 %v1411, %v1208
        %v1414 = vsel %vm377, %v1047, 0.0
        %1415 = vadd.xlane.f32.xlu0 %v1414
        %v1416 = vpop.xlane.xlu0 %1415
        %v1417 = vsel %vm377, %v1049, 0.0
        %1418 = vadd.xlane.f32.xlu0 %v1417
        %v1419 = vpop.xlane.xlu0 %1418
        %v1420 = vmul.f32 %v1416, %v1208
        %v1421 = vmul.f32 %v1419, %v1208
        %v1422 = vsel %vm377, %v1055, 0.0
        %1423 = vadd.xlane.f32.xlu0 %v1422
        %v1424 = vpop.xlane.xlu0 %1423
        %v1425 = vsel %vm377, %v1057, 0.0
        %1426 = vadd.xlane.f32.xlu0 %v1425
        %v1427 = vpop.xlane.xlu0 %1426
        %v1428 = vmul.f32 %v1424, %v1208
        %v1429 = vmul.f32 %v1427, %v1208
        %v1430 = vsel %vm1347, %v1372, %v1380
        %v1431 = vsel %vm1347, %v1373, %v1381
        %v1432 = vsel %vm1350, %v1430, %v1388
        %v1433 = vsel %vm1350, %v1431, %v1389
        %v1434 = vsel %vm1353, %v1432, %v1396
        %v1435 = vsel %vm1353, %v1433, %v1397
        %v1436 = vsel %vm1356, %v1434, %v1404
        %v1437 = vsel %vm1356, %v1435, %v1405
        %v1438 = vsel %vm1359, %v1436, %v1412
        %v1439 = vsel %vm1359, %v1437, %v1413
        %v1440 = vsel %vm1362, %v1438, %v1420
        %v1441 = vsel %vm1362, %v1439, %v1421
        %v1442 = vsel %vm1365, %v1440, %v1428
        %v1443 = vsel %vm1365, %v1441, %v1429
        %s1444 = sld [smem:[#allocation2]]
        %v1445 = vrot.slane %v1060, 5
        %v1446 = vrot.slane %v1061, 5
        %vm1447 = vcmp.lt.s32.totalorder %v390, 3
        %v1448 = vsel %vm1447, %v1445, %v1446
        %v1449 = vsel %vm1447, %v1446, %v1445
        %v1450 = vadd.s32 %v390, 4294967293
        %v1451 = vadd.s32 %v394, 4294967293
        %vm1452 = vcmp.ge.s32.totalorder %v1450, 0
        %vm1453 = vcmp.ge.s32.totalorder %v1451, 0
        %vm1454 = vcmp.lt.s32.totalorder %v1450, 16
        %vm1455 = vcmp.lt.s32.totalorder %v1451, 16
        %vm1456 = vmand %vm1452, %vm1454
        %vm1457 = vmand %vm1453, %vm1455
        %v1458 = vsel %vm1456, %v1449, 0.0
        %v1459 = vsel %vm1457, %v1448, 0.0
        %v1460 = vrot.slane %v1060, 6
        %v1461 = vrot.slane %v1061, 6
        %vm1462 = vcmp.lt.s32.totalorder %v390, 2
        %v1463 = vsel %vm1462, %v1460, %v1461
        %v1464 = vsel %vm1462, %v1461, %v1460
        %v1465 = vadd.s32 %v390, 4294967294
        %v1466 = vadd.s32 %v394, 4294967294
        %vm1467 = vcmp.ge.s32.totalorder %v1465, 0
        %vm1468 = vcmp.ge.s32.totalorder %v1466, 0
        %vm1469 = vcmp.lt.s32.totalorder %v1465, 16
        %vm1470 = vcmp.lt.s32.totalorder %v1466, 16
        %vm1471 = vmand %vm1467, %vm1469
        %vm1472 = vmand %vm1468, %vm1470
        %v1473 = vsel %vm1471, %v1464, 0.0
        %v1474 = vsel %vm1472, %v1463, 0.0
        %v1475 = vrot.slane %v1060, 7
        %v1476 = vrot.slane %v1061, 7
        %v1477 = vsel %vm391, %v1475, %v1476
        %v1478 = vsel %vm391, %v1476, %v1475
        %v1479 = vsel %vm401, %v1478, 0.0
        %v1480 = vsel %vm402, %v1477, 0.0
        %v1481 = vrot.slane %v1060, 1
        %v1482 = vrot.slane %v1061, 1
        %v1483 = vsel %vm407, %v1481, %v1482
        %v1484 = vsel %vm407, %v1482, %v1481
        %v1485 = vsel %vm416, %v1483, 0.0
        %v1486 = vsel %vm417, %v1484, 0.0
        %v1487 = vrot.slane %v1060, 2
        %v1488 = vrot.slane %v1061, 2
        %vm1489 = vcmp.lt.s32.totalorder %v390, 6
        %v1490 = vsel %vm1489, %v1487, %v1488
        %v1491 = vsel %vm1489, %v1488, %v1487
        %v1492 = vadd.s32 %v390, 2
        %v1493 = vadd.s32 %v394, 2
        %vm1494 = vcmp.ge.s32.totalorder %v1492, 0
        %vm1495 = vcmp.ge.s32.totalorder %v1493, 0
        %vm1496 = vcmp.lt.s32.totalorder %v1492, 16
        %vm1497 = vcmp.lt.s32.totalorder %v1493, 16
        %vm1498 = vmand %vm1494, %vm1496
        %vm1499 = vmand %vm1495, %vm1497
        %v1500 = vsel %vm1498, %v1490, 0.0
        %v1501 = vsel %vm1499, %v1491, 0.0
        %v1502 = vrot.slane %v1060, 3
        %v1503 = vrot.slane %v1061, 3
        %vm1504 = vcmp.lt.s32.totalorder %v390, 5
        %v1505 = vsel %vm1504, %v1502, %v1503
        %v1506 = vsel %vm1504, %v1503, %v1502
        %v1507 = vadd.s32 %v390, 3
        %v1508 = vadd.s32 %v394, 3
        %vm1509 = vcmp.ge.s32.totalorder %v1507, 0
        %vm1510 = vcmp.ge.s32.totalorder %v1508, 0
        %vm1511 = vcmp.lt.s32.totalorder %v1507, 16
        %vm1512 = vcmp.lt.s32.totalorder %v1508, 16
        %vm1513 = vmand %vm1509, %vm1511
        %vm1514 = vmand %vm1510, %vm1512
        %v1515 = vsel %vm1513, %v1505, 0.0
        %v1516 = vsel %vm1514, %v1506, 0.0
        %v1517 = vrot.slane %v1076, 5
        %v1518 = vrot.slane %v1077, 5
        %v1519 = vsel %vm1447, %v1517, %v1518
        %v1520 = vsel %vm1447, %v1518, %v1517
        %v1521 = vsel %vm1456, %v1520, 0.0
        %v1522 = vsel %vm1457, %v1519, 0.0
        %v1523 = vrot.slane %v1076, 6
        %v1524 = vrot.slane %v1077, 6
        %v1525 = vsel %vm1462, %v1523, %v1524
        %v1526 = vsel %vm1462, %v1524, %v1523
        %v1527 = vsel %vm1471, %v1526, 0.0
        %v1528 = vsel %vm1472, %v1525, 0.0
        %v1529 = vrot.slane %v1076, 7
        %v1530 = vrot.slane %v1077, 7
        %v1531 = vsel %vm391, %v1529, %v1530
        %v1532 = vsel %vm391, %v1530, %v1529
        %v1533 = vsel %vm401, %v1532, 0.0
        %v1534 = vsel %vm402, %v1531, 0.0
        %v1535 = vrot.slane %v1076, 1
        %v1536 = vrot.slane %v1077, 1
        %v1537 = vsel %vm407, %v1535, %v1536
        %v1538 = vsel %vm407, %v1536, %v1535
        %v1539 = vsel %vm416, %v1537, 0.0
        %v1540 = vsel %vm417, %v1538, 0.0
        %v1541 = vrot.slane %v1076, 2
        %v1542 = vrot.slane %v1077, 2
        %v1543 = vsel %vm1489, %v1541, %v1542
        %v1544 = vsel %vm1489, %v1542, %v1541
        %v1545 = vsel %vm1498, %v1543, 0.0
        %v1546 = vsel %vm1499, %v1544, 0.0
        %v1547 = vrot.slane %v1076, 3
        %v1548 = vrot.slane %v1077, 3
        %v1549 = vsel %vm1504, %v1547, %v1548
        %v1550 = vsel %vm1504, %v1548, %v1547
        %v1551 = vsel %vm1513, %v1549, 0.0
        %v1552 = vsel %vm1514, %v1550, 0.0
        %1555 = vrot.lane.b32.xlu0 %v1473, 16
        %v1556 = vpop.permute.xlu0 %1555
        %1557 = vrot.lane.b32.xlu0 %v1474, 16
        %v1558 = vpop.permute.xlu0 %1557
        %1563 = vrot.lane.b32.xlu0 %v1479, 32
        %v1564 = vpop.permute.xlu0 %1563
        %1565 = vrot.lane.b32.xlu0 %v1480, 32
        %v1566 = vpop.permute.xlu0 %1565
        %1571 = vrot.lane.b32.xlu0 %v1060, 48
        %v1572 = vpop.permute.xlu0 %1571
        %1573 = vrot.lane.b32.xlu0 %v1061, 48
        %v1574 = vpop.permute.xlu0 %1573
        %1579 = vrot.lane.b32.xlu0 %v1485, 64
        %v1580 = vpop.permute.xlu0 %1579
        %1581 = vrot.lane.b32.xlu0 %v1486, 64
        %v1582 = vpop.permute.xlu0 %1581
        %1587 = vrot.lane.b32.xlu0 %v1500, 80
        %v1588 = vpop.permute.xlu0 %1587
        %1589 = vrot.lane.b32.xlu0 %v1501, 80
        %v1590 = vpop.permute.xlu0 %1589
        %1595 = vrot.lane.b32.xlu0 %v1515, 96
        %v1596 = vpop.permute.xlu0 %1595
        %1597 = vrot.lane.b32.xlu0 %v1516, 96
        %v1598 = vpop.permute.xlu0 %1597
        %1603 = vrot.lane.b32.xlu0 %v1521, 112
        %v1604 = vpop.permute.xlu0 %1603
        %1605 = vrot.lane.b32.xlu0 %v1522, 112
        %v1606 = vpop.permute.xlu0 %1605
        %1611 = vrot.lane.b32.xlu0 %v1533, 16
        %v1612 = vpop.permute.xlu0 %1611
        %1613 = vrot.lane.b32.xlu0 %v1534, 16
        %v1614 = vpop.permute.xlu0 %1613
        %1619 = vrot.lane.b32.xlu0 %v1076, 32
        %v1620 = vpop.permute.xlu0 %1619
        %1621 = vrot.lane.b32.xlu0 %v1077, 32
        %v1622 = vpop.permute.xlu0 %1621
        %1627 = vrot.lane.b32.xlu0 %v1539, 48
        %v1628 = vpop.permute.xlu0 %1627
        %1629 = vrot.lane.b32.xlu0 %v1540, 48
        %v1630 = vpop.permute.xlu0 %1629
        %1635 = vrot.lane.b32.xlu0 %v1545, 64
        %v1636 = vpop.permute.xlu0 %1635
        %1637 = vrot.lane.b32.xlu0 %v1546, 64
        %v1638 = vpop.permute.xlu0 %1637
        %1643 = vrot.lane.b32.xlu0 %v1551, 80
        %v1644 = vpop.permute.xlu0 %1643
        %1645 = vrot.lane.b32.xlu0 %v1552, 80
        %v1646 = vpop.permute.xlu0 %1645
        %v1649 = vsel %vm377, %v1458, %v1556
        %v1650 = vsel %vm377, %v1459, %v1558
        %v1651 = vsel %vm380, %v1649, %v1564
        %v1652 = vsel %vm380, %v1650, %v1566
        %v1653 = vsel %vm383, %v1651, %v1572
        %v1654 = vsel %vm383, %v1652, %v1574
        %v1655 = vsel %vm428, %v1653, %v1580
        %v1656 = vsel %vm428, %v1654, %v1582
        %vm1657 = vcmask 654336
        %v1658 = vsel %vm1657, %v1655, %v1588
        %v1659 = vsel %vm1657, %v1656, %v1590
        %vm1660 = vcmask 785408
        %v1661 = vsel %vm1660, %v1658, %v1596
        %v1662 = vsel %vm1660, %v1659, %v1598
        %vm1663 = vcmask 916480
        %v1664 = vsel %vm1663, %v1661, %v1604
        %v1665 = vsel %vm1663, %v1662, %v1606
        %v1666 = vsel %vm377, %v1527, %v1612
        %v1667 = vsel %vm377, %v1528, %v1614
        %v1668 = vsel %vm380, %v1666, %v1620
        %v1669 = vsel %vm380, %v1667, %v1622
        %v1670 = vsel %vm383, %v1668, %v1628
        %v1671 = vsel %vm383, %v1669, %v1630
        %v1672 = vsel %vm428, %v1670, %v1636
        %v1673 = vsel %vm428, %v1671, %v1638
        %v1674 = vsel %vm1657, %v1672, %v1644
        %v1675 = vsel %vm1657, %v1673, %v1646
        %v1676 = vld [vmem:[%s5] sm:$0xff]
        %v1677 = vld [vmem:[%s5 + $0x8] sm:$0xff]
        %v1678 = vld [vmem:[%s5 + $0x10] sm:$0xff]
        %v1679 = vld [vmem:[%s5 + $0x18] sm:$0xff]
        %v1680 = vld [vmem:[%s5 + $0x20] sm:$0xff]
        %v1681 = vld [vmem:[%s5 + $0x28] sm:$0xff]
        %v1682 = vld [vmem:[%s5 + $0x30] sm:$0xff]
        %v1683 = vld [vmem:[%s5 + $0x38] sm:$0xff]
        %v1684 = vld [vmem:[%s5 + $0x40] sm:$0xff]
        %v1685 = vld [vmem:[%s5 + $0x48] sm:$0xff]
        %v1686 = vld [vmem:[%s5 + $0x50] sm:$0xff]
        %v1687 = vld [vmem:[%s5 + $0x58] sm:$0xff]
        %v1688 = vld [vmem:[%s5 + $0x60] sm:$0xff]
        %v1689 = vld [vmem:[%s5 + $0x68] sm:$0xff]
        %v1690 = vld [vmem:[%s5 + $0x70] sm:$0xff]
        %v1691 = vld [vmem:[%s5 + $0x78] sm:$0xff]
        %v1692 = vld [vmem:[%s5 + $0x80] sm:$0xff]
        %v1693 = vld [vmem:[%s5 + $0x88] sm:$0xff]
        %v1694 = vld [vmem:[%s5 + $0x90] sm:$0xff]
        %v1695 = vld [vmem:[%s5 + $0x98] sm:$0xff]
        %v1696 = vld [vmem:[%s5 + $0xa0] sm:$0xff]
        %v1697 = vld [vmem:[%s5 + $0xa8] sm:$0xff]
        %v1698 = vld [vmem:[%s5 + $0xb0] sm:$0xff]
        %v1699 = vld [vmem:[%s5 + $0xb8] sm:$0xff]
        %v1700 = vld [vmem:[%s5 + $0xc0] sm:$0xff]
        %v1701 = vld [vmem:[%s5 + $0xc8] sm:$0xff]
        %v1702 = vld [vmem:[%s5 + $0xd0] sm:$0xff]
        %v1703 = vld [vmem:[%s5 + $0xd8] sm:$0xff]
        %v1704 = vstv %s1444
        %v1706 = vsel %vm1660, %v1674, 0
        %v1709 = vsel %vm1660, %v1675, 0
        %1711 = vmatprep.subr.mxu0 0.0
        %1712 = vmatpush1.msra.mxu0 %v1676
        %1713 = vmatprep.subr.mxu0 0.0
        %1714 = vmatpush1.msra.mxu0 %v1677
        %1715 = vmatprep.subr.mxu0 0.0
        %1716 = vmatpush1.msra.mxu0 %v1678
        %1717 = vmatprep.subr.mxu0 0.0
        %1718 = vmatpush1.msra.mxu0 %v1679
        %1719 = vmatprep.subr.mxu0 0.0
        %1720 = vmatpush1.msra.mxu0 %v1680
        %1721 = vmatprep.subr.mxu0 0.0
        %1722 = vmatpush1.msra.mxu0 %v1681
        %1723 = vmatprep.subr.mxu0 0.0
        %1724 = vmatpush1.msra.mxu0 %v1682
        %1725 = vmatprep.subr.mxu0 0.0
        %1726 = vmatpush1.msra.mxu0 %v1683
        %1727 = vmatprep.subr.mxu0 0.0
        %1728 = vmatpush1.msra.mxu0 %v1684
        %1729 = vmatprep.subr.mxu0 0.0
        %1730 = vmatpush1.msra.mxu0 %v1685
        %1731 = vmatprep.subr.mxu0 0.0
        %1732 = vmatpush1.msra.mxu0 %v1686
        %1733 = vmatprep.subr.mxu0 0.0
        %1734 = vmatpush1.msra.mxu0 %v1687
        %1735 = vmatprep.subr.mxu0 0.0
        %1736 = vmatpush1.msra.mxu0 %v1688
        %1737 = vmatprep.subr.mxu0 0.0
        %1738 = vmatpush1.msra.mxu0 %v1689
        %1739 = vmatprep.subr.mxu0 0.0
        %1740 = vmatpush1.msra.mxu0 %v1690
        %1741 = vmatprep.subr.mxu0 0.0
        %1742 = vmatpush1.msra.mxu0 %v1691
        %1743 = vmatprep.subr.mxu0 0.0
        %1744 = vmatpush1.msra.mxu0 %v1692
        %1745 = vmatprep.subr.mxu0 0.0
        %1746 = vmatpush1.msra.mxu0 %v1693
        %1747 = vmatprep.subr.mxu0 0.0
        %1748 = vmatpush1.msra.mxu0 %v1694
        %1749 = vmatprep.subr.mxu0 0.0
        %1750 = vmatpush1.msra.mxu0 %v1695
        %1751 = vmatprep.subr.mxu0 0.0
        %1752 = vmatpush1.msra.mxu0 %v1696
        %1753 = vmatprep.subr.mxu0 0.0
        %1754 = vmatpush1.msra.mxu0 %v1697
        %1755 = vmatprep.subr.mxu0 0.0
        %1756 = vmatpush1.msra.mxu0 %v1698
        %1757 = vmatprep.subr.mxu0 0.0
        %1758 = vmatpush1.msra.mxu0 %v1699
        %1759 = vmatprep.subr.mxu0 0.0
        %1760 = vmatpush1.msra.mxu0 %v1700
        %1761 = vmatprep.subr.mxu0 0.0
        %1762 = vmatpush1.msra.mxu0 %v1701
        %1763 = vmatprep.subr.mxu0 0.0
        %1764 = vmatpush1.msra.mxu0 %v1702
        %1765 = vmatprep.subr.mxu0 0.0
        %1766 = vmatpush1.msra.mxu0 %v1703
        %1767 = vmatprep.subr.mxu0 0.0
        %1768 = vmatpush1.msra.mxu0 0.0
        %1769 = vmatprep.subr.mxu0 0.0
        %1770 = vmatpush1.msra.mxu0 0.0
        %1771 = vmatprep.subr.mxu0 0.0
        %1772 = vmatpush1.msra.mxu0 0.0
        %1773 = vmatprep.subr.mxu0 0.0
        %1774 = vmatpush1.msra.mxu0 0.0
        %1775 = vmatprep.mubr.f32.mxu0 %v1706
        %1776 = vmatmul.mubr.f32.gmra.mrb[0].mxu0 %v1664
        %v1777 = vpop.f32.mrb[0].mxu0
        %v1778 = vadd.f32 %v1704, %v1777
        %v1779 = vpop.f32.mrb[0].mxu0
        %1780 = vmatprep.mubr.f32.mxu0 %v1709
        %1781 = vmatmul.mubr.f32.gmra.mrb[0].mxu0 %v1665
        %v1782 = vpop.f32.mrb[0].mxu0
        %v1783 = vadd.f32 %v1704, %v1782
        %v1784 = vpop.f32.mrb[0].mxu0
        %1785 = vdwg.mxu0
        %v1786 = vmul.f32 %v1778, 0.5
        %v1787 = vmul.f32 %v1783, 0.5
        %v1788 = vtanh.pop %v1786
        %v1789 = vtanh.pop %v1787
        %v1790 = vmul.f32 %v1788, 0.5
        %v1791 = vmul.f32 %v1789, 0.5
        %v1792 = vadd.f32 %v1790, 0.5
        %v1793 = vadd.f32 %v1791, 0.5
        %s1794 = sld [smem:[#allocation2 + $0x1]]
        %v1795 = vrot.slane %v1198, 5
        %vm1796 = vcmp.lt.s32.totalorder %v1450, 8
        %vm1797 = vmand %vm1452, %vm1796
        %v1798 = vsel %vm1797, %v1795, 0.0
        %v1799 = vrot.slane %v1198, 6
        %vm1800 = vcmp.lt.s32.totalorder %v1465, 8
        %vm1801 = vmand %vm1467, %vm1800
        %v1802 = vsel %vm1801, %v1799, 0.0
        %v1803 = vrot.slane %v1198, 7
        %vm1804 = vcmp.lt.s32.totalorder %v395, 8
        %vm1805 = vmand %vm397, %vm1804
        %v1806 = vsel %vm1805, %v1803, 0.0
        %v1807 = vrot.slane %v1198, 1
        %vm1808 = vcmp.lt.s32.totalorder %v410, 8
        %vm1809 = vmand %vm412, %vm1808
        %v1810 = vsel %vm1809, %v1807, 0.0
        %v1811 = vrot.slane %v1198, 2
        %vm1812 = vcmp.lt.s32.totalorder %v1492, 8
        %vm1813 = vmand %vm1494, %vm1812
        %v1814 = vsel %vm1813, %v1811, 0.0
        %v1815 = vrot.slane %v1198, 3
        %vm1816 = vcmp.lt.s32.totalorder %v1507, 8
        %vm1817 = vmand %vm1509, %vm1816
        %v1818 = vsel %vm1817, %v1815, 0.0
        %v1819 = vrot.slane %v1314, 5
        %v1820 = vsel %vm1797, %v1819, 0.0
        %v1821 = vrot.slane %v1314, 6
        %v1822 = vsel %vm1801, %v1821, 0.0
        %v1823 = vrot.slane %v1314, 7
        %v1824 = vsel %vm1805, %v1823, 0.0
        %v1825 = vrot.slane %v1314, 1
        %v1826 = vsel %vm1809, %v1825, 0.0
        %v1827 = vrot.slane %v1314, 2
        %v1828 = vsel %vm1813, %v1827, 0.0
        %v1829 = vrot.slane %v1314, 3
        %v1830 = vsel %vm1817, %v1829, 0.0
        %1832 = vrot.lane.b32.xlu0 %v1802, 16
        %v1833 = vpop.permute.xlu0 %1832
        %1836 = vrot.lane.b32.xlu0 %v1806, 32
        %v1837 = vpop.permute.xlu0 %1836
        %1840 = vrot.lane.b32.xlu0 %v1198, 48
        %v1841 = vpop.permute.xlu0 %1840
        %1844 = vrot.lane.b32.xlu0 %v1810, 64
        %v1845 = vpop.permute.xlu0 %1844
        %1848 = vrot.lane.b32.xlu0 %v1814, 80
        %v1849 = vpop.permute.xlu0 %1848
        %1852 = vrot.lane.b32.xlu0 %v1818, 96
        %v1853 = vpop.permute.xlu0 %1852
        %1856 = vrot.lane.b32.xlu0 %v1820, 112
        %v1857 = vpop.permute.xlu0 %1856
        %1860 = vrot.lane.b32.xlu0 %v1824, 16
        %v1861 = vpop.permute.xlu0 %1860
        %1864 = vrot.lane.b32.xlu0 %v1314, 32
        %v1865 = vpop.permute.xlu0 %1864
        %1868 = vrot.lane.b32.xlu0 %v1826, 48
        %v1869 = vpop.permute.xlu0 %1868
        %1872 = vrot.lane.b32.xlu0 %v1828, 64
        %v1873 = vpop.permute.xlu0 %1872
        %1876 = vrot.lane.b32.xlu0 %v1830, 80
        %v1877 = vpop.permute.xlu0 %1876
        %v1879 = vsel %vm377, %v1798, %v1833
        %v1880 = vsel %vm380, %v1879, %v1837
        %v1881 = vsel %vm383, %v1880, %v1841
        %v1882 = vsel %vm428, %v1881, %v1845
        %v1883 = vsel %vm1657, %v1882, %v1849
        %v1884 = vsel %vm1660, %v1883, %v1853
        %v1885 = vsel %vm1663, %v1884, %v1857
        %v1886 = vsel %vm377, %v1822, %v1861
        %v1887 = vsel %vm380, %v1886, %v1865
        %v1888 = vsel %vm383, %v1887, %v1869
        %v1889 = vsel %vm428, %v1888, %v1873
        %v1890 = vsel %vm1657, %v1889, %v1877
        %v1891 = vld [vmem:[%s6] sm:$0xff]
        %v1892 = vld [vmem:[%s6 + $0x8] sm:$0xff]
        %v1893 = vld [vmem:[%s6 + $0x10] sm:$0xff]
        %v1894 = vld [vmem:[%s6 + $0x18] sm:$0xff]
        %v1895 = vld [vmem:[%s6 + $0x20] sm:$0xff]
        %v1896 = vld [vmem:[%s6 + $0x28] sm:$0xff]
        %v1897 = vld [vmem:[%s6 + $0x30] sm:$0xff]
        %v1898 = vld [vmem:[%s6 + $0x38] sm:$0xff]
        %v1899 = vld [vmem:[%s6 + $0x40] sm:$0xff]
        %v1900 = vld [vmem:[%s6 + $0x48] sm:$0xff]
        %v1901 = vld [vmem:[%s6 + $0x50] sm:$0xff]
        %v1902 = vld [vmem:[%s6 + $0x58] sm:$0xff]
        %v1903 = vld [vmem:[%s6 + $0x60] sm:$0xff]
        %v1904 = vld [vmem:[%s6 + $0x68] sm:$0xff]
        %v1905 = vld [vmem:[%s6 + $0x70] sm:$0xff]
        %v1906 = vld [vmem:[%s6 + $0x78] sm:$0xff]
        %v1907 = vld [vmem:[%s6 + $0x80] sm:$0xff]
        %v1908 = vld [vmem:[%s6 + $0x88] sm:$0xff]
        %v1909 = vld [vmem:[%s6 + $0x90] sm:$0xff]
        %v1910 = vld [vmem:[%s6 + $0x98] sm:$0xff]
        %v1911 = vld [vmem:[%s6 + $0xa0] sm:$0xff]
        %v1912 = vld [vmem:[%s6 + $0xa8] sm:$0xff]
        %v1913 = vld [vmem:[%s6 + $0xb0] sm:$0xff]
        %v1914 = vld [vmem:[%s6 + $0xb8] sm:$0xff]
        %v1915 = vld [vmem:[%s6 + $0xc0] sm:$0xff]
        %v1916 = vld [vmem:[%s6 + $0xc8] sm:$0xff]
        %v1917 = vld [vmem:[%s6 + $0xd0] sm:$0xff]
        %v1918 = vld [vmem:[%s6 + $0xd8] sm:$0xff]
        %v1919 = vstv %s1794
        %v1921 = vsel %vm1660, %v1890, 0
        %1923 = vmatprep.subr.mxu0 0.0
        %1924 = vmatpush1.msra.mxu0 %v1891
        %1925 = vmatprep.subr.mxu0 0.0
        %1926 = vmatpush1.msra.mxu0 %v1892
        %1927 = vmatprep.subr.mxu0 0.0
        %1928 = vmatpush1.msra.mxu0 %v1893
        %1929 = vmatprep.subr.mxu0 0.0
        %1930 = vmatpush1.msra.mxu0 %v1894
        %1931 = vmatprep.subr.mxu0 0.0
        %1932 = vmatpush1.msra.mxu0 %v1895
        %1933 = vmatprep.subr.mxu0 0.0
        %1934 = vmatpush1.msra.mxu0 %v1896
        %1935 = vmatprep.subr.mxu0 0.0
        %1936 = vmatpush1.msra.mxu0 %v1897
        %1937 = vmatprep.subr.mxu0 0.0
        %1938 = vmatpush1.msra.mxu0 %v1898
        %1939 = vmatprep.subr.mxu0 0.0
        %1940 = vmatpush1.msra.mxu0 %v1899
        %1941 = vmatprep.subr.mxu0 0.0
        %1942 = vmatpush1.msra.mxu0 %v1900
        %1943 = vmatprep.subr.mxu0 0.0
        %1944 = vmatpush1.msra.mxu0 %v1901
        %1945 = vmatprep.subr.mxu0 0.0
        %1946 = vmatpush1.msra.mxu0 %v1902
        %1947 = vmatprep.subr.mxu0 0.0
        %1948 = vmatpush1.msra.mxu0 %v1903
        %1949 = vmatprep.subr.mxu0 0.0
        %1950 = vmatpush1.msra.mxu0 %v1904
        %1951 = vmatprep.subr.mxu0 0.0
        %1952 = vmatpush1.msra.mxu0 %v1905
        %1953 = vmatprep.subr.mxu0 0.0
        %1954 = vmatpush1.msra.mxu0 %v1906
        %1955 = vmatprep.subr.mxu0 0.0
        %1956 = vmatpush1.msra.mxu0 %v1907
        %1957 = vmatprep.subr.mxu0 0.0
        %1958 = vmatpush1.msra.mxu0 %v1908
        %1959 = vmatprep.subr.mxu0 0.0
        %1960 = vmatpush1.msra.mxu0 %v1909
        %1961 = vmatprep.subr.mxu0 0.0
        %1962 = vmatpush1.msra.mxu0 %v1910
        %1963 = vmatprep.subr.mxu0 0.0
        %1964 = vmatpush1.msra.mxu0 %v1911
        %1965 = vmatprep.subr.mxu0 0.0
        %1966 = vmatpush1.msra.mxu0 %v1912
        %1967 = vmatprep.subr.mxu0 0.0
        %1968 = vmatpush1.msra.mxu0 %v1913
        %1969 = vmatprep.subr.mxu0 0.0
        %1970 = vmatpush1.msra.mxu0 %v1914
        %1971 = vmatprep.subr.mxu0 0.0
        %1972 = vmatpush1.msra.mxu0 %v1915
        %1973 = vmatprep.subr.mxu0 0.0
        %1974 = vmatpush1.msra.mxu0 %v1916
        %1975 = vmatprep.subr.mxu0 0.0
        %1976 = vmatpush1.msra.mxu0 %v1917
        %1977 = vmatprep.subr.mxu0 0.0
        %1978 = vmatpush1.msra.mxu0 %v1918
        %1979 = vmatprep.subr.mxu0 0.0
        %1980 = vmatpush1.msra.mxu0 0.0
        %1981 = vmatprep.subr.mxu0 0.0
        %1982 = vmatpush1.msra.mxu0 0.0
        %1983 = vmatprep.subr.mxu0 0.0
        %1984 = vmatpush1.msra.mxu0 0.0
        %1985 = vmatprep.subr.mxu0 0.0
        %1986 = vmatpush1.msra.mxu0 0.0
        %1987 = vmatprep.mubr.f32.mxu0 %v1921
        %1988 = vmatmul.mubr.f32.gmra.mrb[0].mxu0 %v1885
        %v1989 = vpop.f32.mrb[0].mxu0
        %v1990 = vadd.f32 %v1919, %v1989
        %v1991 = vpop.f32.mrb[0].mxu0
        %1992 = vdwg.mxu0
        %v1993 = vmul.f32 %v1990, 0.5
        %v1994 = vtanh.pop %v1993
        %v1995 = vmul.f32 %v1994, 0.5
        %v1996 = vadd.f32 %v1995, 0.5
        %s1997 = sld [smem:[#allocation2 + $0x2]]
        %v1998 = vrot.slane %v1366, 5
        %v1999 = vrot.slane %v1367, 5
        %v2000 = vsel %vm1447, %v1998, %v1999
        %v2001 = vsel %vm1447, %v1999, %v1998
        %v2002 = vsel %vm1456, %v2001, 0.0
        %v2003 = vsel %vm1457, %v2000, 0.0
        %v2004 = vrot.slane %v1366, 6
        %v2005 = vrot.slane %v1367, 6
        %v2006 = vsel %vm1462, %v2004, %v2005
        %v2007 = vsel %vm1462, %v2005, %v2004
        %v2008 = vsel %vm1471, %v2007, 0.0
        %v2009 = vsel %vm1472, %v2006, 0.0
        %v2010 = vrot.slane %v1366, 7
        %v2011 = vrot.slane %v1367, 7
        %v2012 = vsel %vm391, %v2010, %v2011
        %v2013 = vsel %vm391, %v2011, %v2010
        %v2014 = vsel %vm401, %v2013, 0.0
        %v2015 = vsel %vm402, %v2012, 0.0
        %v2016 = vrot.slane %v1366, 1
        %v2017 = vrot.slane %v1367, 1
        %v2018 = vsel %vm407, %v2016, %v2017
        %v2019 = vsel %vm407, %v2017, %v2016
        %v2020 = vsel %vm416, %v2018, 0.0
        %v2021 = vsel %vm417, %v2019, 0.0
        %v2022 = vrot.slane %v1366, 2
        %v2023 = vrot.slane %v1367, 2
        %v2024 = vsel %vm1489, %v2022, %v2023
        %v2025 = vsel %vm1489, %v2023, %v2022
        %v2026 = vsel %vm1498, %v2024, 0.0
        %v2027 = vsel %vm1499, %v2025, 0.0
        %v2028 = vrot.slane %v1366, 3
        %v2029 = vrot.slane %v1367, 3
        %v2030 = vsel %vm1504, %v2028, %v2029
        %v2031 = vsel %vm1504, %v2029, %v2028
        %v2032 = vsel %vm1513, %v2030, 0.0
        %v2033 = vsel %vm1514, %v2031, 0.0
        %v2034 = vrot.slane %v1442, 5
        %v2035 = vrot.slane %v1443, 5
        %v2036 = vsel %vm1447, %v2034, %v2035
        %v2037 = vsel %vm1447, %v2035, %v2034
        %v2038 = vsel %vm1456, %v2037, 0.0
        %v2039 = vsel %vm1457, %v2036, 0.0
        %v2040 = vrot.slane %v1442, 6
        %v2041 = vrot.slane %v1443, 6
        %v2042 = vsel %vm1462, %v2040, %v2041
        %v2043 = vsel %vm1462, %v2041, %v2040
        %v2044 = vsel %vm1471, %v2043, 0.0
        %v2045 = vsel %vm1472, %v2042, 0.0
        %v2046 = vrot.slane %v1442, 7
        %v2047 = vrot.slane %v1443, 7
        %v2048 = vsel %vm391, %v2046, %v2047
        %v2049 = vsel %vm391, %v2047, %v2046
        %v2050 = vsel %vm401, %v2049, 0.0
        %v2051 = vsel %vm402, %v2048, 0.0
        %v2052 = vrot.slane %v1442, 1
        %v2053 = vrot.slane %v1443, 1
        %v2054 = vsel %vm407, %v2052, %v2053
        %v2055 = vsel %vm407, %v2053, %v2052
        %v2056 = vsel %vm416, %v2054, 0.0
        %v2057 = vsel %vm417, %v2055, 0.0
        %v2058 = vrot.slane %v1442, 2
        %v2059 = vrot.slane %v1443, 2
        %v2060 = vsel %vm1489, %v2058, %v2059
        %v2061 = vsel %vm1489, %v2059, %v2058
        %v2062 = vsel %vm1498, %v2060, 0.0
        %v2063 = vsel %vm1499, %v2061, 0.0
        %v2064 = vrot.slane %v1442, 3
        %v2065 = vrot.slane %v1443, 3
        %v2066 = vsel %vm1504, %v2064, %v2065
        %v2067 = vsel %vm1504, %v2065, %v2064
        %v2068 = vsel %vm1513, %v2066, 0.0
        %v2069 = vsel %vm1514, %v2067, 0.0
        %2072 = vrot.lane.b32.xlu0 %v2008, 8
        %v2073 = vpop.permute.xlu0 %2072
        %2074 = vrot.lane.b32.xlu0 %v2009, 8
        %v2075 = vpop.permute.xlu0 %2074
        %2080 = vrot.lane.b32.xlu0 %v2014, 16
        %v2081 = vpop.permute.xlu0 %2080
        %2082 = vrot.lane.b32.xlu0 %v2015, 16
        %v2083 = vpop.permute.xlu0 %2082
        %2088 = vrot.lane.b32.xlu0 %v1366, 24
        %v2089 = vpop.permute.xlu0 %2088
        %2090 = vrot.lane.b32.xlu0 %v1367, 24
        %v2091 = vpop.permute.xlu0 %2090
        %2096 = vrot.lane.b32.xlu0 %v2020, 32
        %v2097 = vpop.permute.xlu0 %2096
        %2098 = vrot.lane.b32.xlu0 %v2021, 32
        %v2099 = vpop.permute.xlu0 %2098
        %2104 = vrot.lane.b32.xlu0 %v2026, 40
        %v2105 = vpop.permute.xlu0 %2104
        %2106 = vrot.lane.b32.xlu0 %v2027, 40
        %v2107 = vpop.permute.xlu0 %2106
        %2112 = vrot.lane.b32.xlu0 %v2032, 48
        %v2113 = vpop.permute.xlu0 %2112
        %2114 = vrot.lane.b32.xlu0 %v2033, 48
        %v2115 = vpop.permute.xlu0 %2114
        %2120 = vrot.lane.b32.xlu0 %v2038, 56
        %v2121 = vpop.permute.xlu0 %2120
        %2122 = vrot.lane.b32.xlu0 %v2039, 56
        %v2123 = vpop.permute.xlu0 %2122
        %2128 = vrot.lane.b32.xlu0 %v2044, 64
        %v2129 = vpop.permute.xlu0 %2128
        %2130 = vrot.lane.b32.xlu0 %v2045, 64
        %v2131 = vpop.permute.xlu0 %2130
        %2136 = vrot.lane.b32.xlu0 %v2050, 72
        %v2137 = vpop.permute.xlu0 %2136
        %2138 = vrot.lane.b32.xlu0 %v2051, 72
        %v2139 = vpop.permute.xlu0 %2138
        %2144 = vrot.lane.b32.xlu0 %v1442, 80
        %v2145 = vpop.permute.xlu0 %2144
        %2146 = vrot.lane.b32.xlu0 %v1443, 80
        %v2147 = vpop.permute.xlu0 %2146
        %2152 = vrot.lane.b32.xlu0 %v2056, 88
        %v2153 = vpop.permute.xlu0 %2152
        %2154 = vrot.lane.b32.xlu0 %v2057, 88
        %v2155 = vpop.permute.xlu0 %2154
        %2160 = vrot.lane.b32.xlu0 %v2062, 96
        %v2161 = vpop.permute.xlu0 %2160
        %2162 = vrot.lane.b32.xlu0 %v2063, 96
        %v2163 = vpop.permute.xlu0 %2162
        %2168 = vrot.lane.b32.xlu0 %v2068, 104
        %v2169 = vpop.permute.xlu0 %2168
        %2170 = vrot.lane.b32.xlu0 %v2069, 104
        %v2171 = vpop.permute.xlu0 %2170
        %vm2174 = vcmask 64512
        %v2175 = vsel %vm2174, %v2002, %v2073
        %v2176 = vsel %vm2174, %v2003, %v2075
        %v2177 = vsel %vm377, %v2175, %v2081
        %v2178 = vsel %vm377, %v2176, %v2083
        %vm2179 = vcmask 195584
        %v2180 = vsel %vm2179, %v2177, %v2089
        %v2181 = vsel %vm2179, %v2178, %v2091
        %v2182 = vsel %vm380, %v2180, %v2097
        %v2183 = vsel %vm380, %v2181, %v2099
        %vm2184 = vcmask 326656
        %v2185 = vsel %vm2184, %v2182, %v2105
        %v2186 = vsel %vm2184, %v2183, %v2107
        %v2187 = vsel %vm383, %v2185, %v2113
        %v2188 = vsel %vm383, %v2186, %v2115
        %vm2189 = vcmask 457728
        %v2190 = vsel %vm2189, %v2187, %v2121
        %v2191 = vsel %vm2189, %v2188, %v2123
        %v2192 = vsel %vm428, %v2190, %v2129
        %v2193 = vsel %vm428, %v2191, %v2131
        %vm2194 = vcmask 588800
        %v2195 = vsel %vm2194, %v2192, %v2137
        %v2196 = vsel %vm2194, %v2193, %v2139
        %v2197 = vsel %vm1657, %v2195, %v2145
        %v2198 = vsel %vm1657, %v2196, %v2147
        %vm2199 = vcmask 719872
        %v2200 = vsel %vm2199, %v2197, %v2153
        %v2201 = vsel %vm2199, %v2198, %v2155
        %v2202 = vsel %vm1660, %v2200, %v2161
        %v2203 = vsel %vm1660, %v2201, %v2163
        %vm2204 = vcmask 850944
        %v2205 = vsel %vm2204, %v2202, %v2169
        %v2206 = vsel %vm2204, %v2203, %v2171
        %v2207 = vld [vmem:[%s7] sm:$0xff]
        %v2208 = vld [vmem:[%s7 + $0x8] sm:$0xff]
        %v2209 = vld [vmem:[%s7 + $0x10] sm:$0xff]
        %v2210 = vld [vmem:[%s7 + $0x18] sm:$0xff]
        %v2211 = vld [vmem:[%s7 + $0x20] sm:$0xff]
        %v2212 = vld [vmem:[%s7 + $0x28] sm:$0xff]
        %v2213 = vld [vmem:[%s7 + $0x30] sm:$0xff]
        %v2214 = vld [vmem:[%s7 + $0x38] sm:$0xff]
        %v2215 = vld [vmem:[%s7 + $0x40] sm:$0xff]
        %v2216 = vld [vmem:[%s7 + $0x48] sm:$0xff]
        %v2217 = vld [vmem:[%s7 + $0x50] sm:$0xff]
        %v2218 = vld [vmem:[%s7 + $0x58] sm:$0xff]
        %v2219 = vld [vmem:[%s7 + $0x60] sm:$0xff]
        %v2220 = vld [vmem:[%s7 + $0x68] sm:$0xff]
        %v2221 = vstv %s1997
        %v2223 = vsel %vm1663, %v2205, 0
        %v2226 = vsel %vm1663, %v2206, 0
        %2228 = vmatprep.subr.mxu0 0.0
        %2229 = vmatpush1.msra.mxu0 %v2207
        %2230 = vmatprep.subr.mxu0 0.0
        %2231 = vmatpush1.msra.mxu0 %v2208
        %2232 = vmatprep.subr.mxu0 0.0
        %2233 = vmatpush1.msra.mxu0 %v2209
        %2234 = vmatprep.subr.mxu0 0.0
        %2235 = vmatpush1.msra.mxu0 %v2210
        %2236 = vmatprep.subr.mxu0 0.0
        %2237 = vmatpush1.msra.mxu0 %v2211
        %2238 = vmatprep.subr.mxu0 0.0
        %2239 = vmatpush1.msra.mxu0 %v2212
        %2240 = vmatprep.subr.mxu0 0.0
        %2241 = vmatpush1.msra.mxu0 %v2213
        %2242 = vmatprep.subr.mxu0 0.0
        %2243 = vmatpush1.msra.mxu0 %v2214
        %2244 = vmatprep.subr.mxu0 0.0
        %2245 = vmatpush1.msra.mxu0 %v2215
        %2246 = vmatprep.subr.mxu0 0.0
        %2247 = vmatpush1.msra.mxu0 %v2216
        %2248 = vmatprep.subr.mxu0 0.0
        %2249 = vmatpush1.msra.mxu0 %v2217
        %2250 = vmatprep.subr.mxu0 0.0
        %2251 = vmatpush1.msra.mxu0 %v2218
        %2252 = vmatprep.subr.mxu0 0.0
        %2253 = vmatpush1.msra.mxu0 %v2219
        %2254 = vmatprep.subr.mxu0 0.0
        %2255 = vmatpush1.msra.mxu0 %v2220
        %2256 = vmatprep.subr.mxu0 0.0
        %2257 = vmatpush1.msra.mxu0 0.0
        %2258 = vmatprep.subr.mxu0 0.0
        %2259 = vmatpush1.msra.mxu0 0.0
        %2260 = vmatprep.subr.mxu0 0.0
        %2261 = vmatpush1.msra.mxu0 0.0
        %2262 = vmatprep.subr.mxu0 0.0
        %2263 = vmatpush1.msra.mxu0 0.0
        %2264 = vmatprep.subr.mxu0 0.0
        %2265 = vmatpush1.msra.mxu0 0.0
        %2266 = vmatprep.subr.mxu0 0.0
        %2267 = vmatpush1.msra.mxu0 0.0
        %2268 = vmatprep.subr.mxu0 0.0
        %2269 = vmatpush1.msra.mxu0 0.0
        %2270 = vmatprep.subr.mxu0 0.0
        %2271 = vmatpush1.msra.mxu0 0.0
        %2272 = vmatprep.subr.mxu0 0.0
        %2273 = vmatpush1.msra.mxu0 0.0
        %2274 = vmatprep.subr.mxu0 0.0
        %2275 = vmatpush1.msra.mxu0 0.0
        %2276 = vmatprep.subr.mxu0 0.0
        %2277 = vmatpush1.msra.mxu0 0.0
        %2278 = vmatprep.subr.mxu0 0.0
        %2279 = vmatpush1.msra.mxu0 0.0
        %2280 = vmatprep.subr.mxu0 0.0
        %2281 = vmatpush1.msra.mxu0 0.0
        %2282 = vmatprep.subr.mxu0 0.0
        %2283 = vmatpush1.msra.mxu0 0.0
        %2284 = vmatprep.subr.mxu0 0.0
        %2285 = vmatpush1.msra.mxu0 0.0
        %2286 = vmatprep.subr.mxu0 0.0
        %2287 = vmatpush1.msra.mxu0 0.0
        %2288 = vmatprep.subr.mxu0 0.0
        %2289 = vmatpush1.msra.mxu0 0.0
        %2290 = vmatprep.subr.mxu0 0.0
        %2291 = vmatpush1.msra.mxu0 0.0
        %2292 = vmatprep.mubr.f32.mxu0 0.0
        %2293 = vmatmul.mubr.f32.gmra.mrb[0].mxu0 %v2223
        %v2294 = vpop.f32.mrb[0].mxu0
        %v2295 = vadd.f32 %v2221, %v2294
        %v2296 = vpop.f32.mrb[0].mxu0
        %2297 = vmatprep.mubr.f32.mxu0 0.0
        %2298 = vmatmul.mubr.f32.gmra.mrb[0].mxu0 %v2226
        %v2299 = vpop.f32.mrb[0].mxu0
        %v2300 = vadd.f32 %v2221, %v2299
        %v2301 = vpop.f32.mrb[0].mxu0
        %2302 = vdwg.mxu0
        %v2303 = vmul.f32 %v2295, 0.5
        %v2304 = vmul.f32 %v2300, 0.5
        %v2305 = vtanh.pop %v2303
        %v2306 = vtanh.pop %v2304
        %v2307 = vmul.f32 %v2305, 0.5
        %v2308 = vmul.f32 %v2306, 0.5
        %v2309 = vadd.f32 %v2307, 0.5
        %v2310 = vadd.f32 %v2308, 0.5
        %2313 = vrot.lane.b32.xlu0 %v1792, 16
        %v2314 = vpop.permute.xlu0 %2313
        %2315 = vrot.lane.b32.xlu0 %v1793, 16
        %v2316 = vpop.permute.xlu0 %2315
        %2319 = vrot.lane.b32.xlu0 %v1792, 32
        %v2320 = vpop.permute.xlu0 %2319
        %2321 = vrot.lane.b32.xlu0 %v1793, 32
        %v2322 = vpop.permute.xlu0 %2321
        %2325 = vrot.lane.b32.xlu0 %v1792, 48
        %v2326 = vpop.permute.xlu0 %2325
        %2327 = vrot.lane.b32.xlu0 %v1793, 48
        %v2328 = vpop.permute.xlu0 %2327
        %2331 = vrot.lane.b32.xlu0 %v1792, 64
        %v2332 = vpop.permute.xlu0 %2331
        %2333 = vrot.lane.b32.xlu0 %v1793, 64
        %v2334 = vpop.permute.xlu0 %2333
        %2337 = vrot.lane.b32.xlu0 %v1792, 80
        %v2338 = vpop.permute.xlu0 %2337
        %2339 = vrot.lane.b32.xlu0 %v1793, 80
        %v2340 = vpop.permute.xlu0 %2339
        %2343 = vrot.lane.b32.xlu0 %v1792, 96
        %v2344 = vpop.permute.xlu0 %2343
        %2345 = vrot.lane.b32.xlu0 %v1793, 96
        %v2346 = vpop.permute.xlu0 %2345
        %2349 = vrot.lane.b32.xlu0 %v1792, 112
        %v2350 = vpop.permute.xlu0 %2349
        %2351 = vrot.lane.b32.xlu0 %v1793, 112
        %v2352 = vpop.permute.xlu0 %2351
        %v2355 = vsel %vm377, %v1792, %v2314
        %v2356 = vsel %vm377, %v1793, %v2316
        %v2357 = vsel %vm380, %v2355, %v2320
        %v2358 = vsel %vm380, %v2356, %v2322
        %v2359 = vsel %vm383, %v2357, %v2326
        %v2360 = vsel %vm383, %v2358, %v2328
        %v2361 = vsel %vm428, %v2359, %v2332
        %v2362 = vsel %vm428, %v2360, %v2334
        %v2363 = vsel %vm1657, %v2361, %v2338
        %v2364 = vsel %vm1657, %v2362, %v2340
        %v2365 = vsel %vm1660, %v2363, %v2344
        %v2366 = vsel %vm1660, %v2364, %v2346
        %v2367 = vsel %vm1663, %v2365, %v2350
        %v2368 = vsel %vm1663, %v2366, %v2352
        %v2370 = vrot.slane %v1996, 1
        %2371 = vrot.lane.b32.xlu0 %v2370, 16
        %v2372 = vpop.permute.xlu0 %2371
        %v2374 = vrot.slane %v1996, 2
        %2375 = vrot.lane.b32.xlu0 %v2374, 32
        %v2376 = vpop.permute.xlu0 %2375
        %v2378 = vrot.slane %v1996, 3
        %2379 = vrot.lane.b32.xlu0 %v2378, 48
        %v2380 = vpop.permute.xlu0 %2379
        %v2382 = vrot.slane %v1996, 4
        %2383 = vrot.lane.b32.xlu0 %v2382, 64
        %v2384 = vpop.permute.xlu0 %2383
        %v2386 = vrot.slane %v1996, 5
        %2387 = vrot.lane.b32.xlu0 %v2386, 80
        %v2388 = vpop.permute.xlu0 %2387
        %v2390 = vrot.slane %v1996, 6
        %2391 = vrot.lane.b32.xlu0 %v2390, 96
        %v2392 = vpop.permute.xlu0 %2391
        %v2394 = vrot.slane %v1996, 7
        %2395 = vrot.lane.b32.xlu0 %v2394, 112
        %v2396 = vpop.permute.xlu0 %2395
        %v2398 = vsel %vm377, %v1996, %v2372
        %v2399 = vsel %vm380, %v2398, %v2376
        %v2400 = vsel %vm383, %v2399, %v2380
        %v2401 = vsel %vm428, %v2400, %v2384
        %v2402 = vsel %vm1657, %v2401, %v2388
        %v2403 = vsel %vm1660, %v2402, %v2392
        %v2404 = vsel %vm1663, %v2403, %v2396
        %2406 = vset.pattern.permute.xlu0 0
        %2407 = vperm.xlu0 %2406, %v2309
        %v2408 = vpop.permute.xlu0 %2407
        %2411 = vset.pattern.permute.xlu0 0
        %2412 = vperm.xlu0 %2411, %v2310
        %v2413 = vpop.permute.xlu0 %2412
        %2415 = vset.pattern.permute.xlu0 1
        %2416 = vperm.xlu0 %2415, %v2309
        %v2417 = vpop.permute.xlu0 %2416
        %2419 = vset.pattern.permute.xlu0 1
        %2420 = vperm.xlu0 %2419, %v2310
        %v2421 = vpop.permute.xlu0 %2420
        %2423 = vset.pattern.permute.xlu0 2
        %2424 = vperm.xlu0 %2423, %v2309
        %v2425 = vpop.permute.xlu0 %2424
        %2427 = vset.pattern.permute.xlu0 2
        %2428 = vperm.xlu0 %2427, %v2310
        %v2429 = vpop.permute.xlu0 %2428
        %2431 = vset.pattern.permute.xlu0 3
        %2432 = vperm.xlu0 %2431, %v2309
        %v2433 = vpop.permute.xlu0 %2432
        %2435 = vset.pattern.permute.xlu0 3
        %2436 = vperm.xlu0 %2435, %v2310
        %v2437 = vpop.permute.xlu0 %2436
        %2439 = vset.pattern.permute.xlu0 4
        %2440 = vperm.xlu0 %2439, %v2309
        %v2441 = vpop.permute.xlu0 %2440
        %2443 = vset.pattern.permute.xlu0 4
        %2444 = vperm.xlu0 %2443, %v2310
        %v2445 = vpop.permute.xlu0 %2444
        %2447 = vset.pattern.permute.xlu0 5
        %2448 = vperm.xlu0 %2447, %v2309
        %v2449 = vpop.permute.xlu0 %2448
        %2451 = vset.pattern.permute.xlu0 5
        %2452 = vperm.xlu0 %2451, %v2310
        %v2453 = vpop.permute.xlu0 %2452
        %2455 = vset.pattern.permute.xlu0 6
        %2456 = vperm.xlu0 %2455, %v2309
        %v2457 = vpop.permute.xlu0 %2456
        %2459 = vset.pattern.permute.xlu0 6
        %2460 = vperm.xlu0 %2459, %v2310
        %v2461 = vpop.permute.xlu0 %2460
        %2463 = vset.pattern.permute.xlu0 7
        %2464 = vperm.xlu0 %2463, %v2309
        %v2465 = vpop.permute.xlu0 %2464
        %2467 = vset.pattern.permute.xlu0 7
        %2468 = vperm.xlu0 %2467, %v2310
        %v2469 = vpop.permute.xlu0 %2468
        %v2471 = vsel %vm377, %v2408, %v2417
        %v2472 = vsel %vm377, %v2413, %v2421
        %v2473 = vsel %vm380, %v2471, %v2425
        %v2474 = vsel %vm380, %v2472, %v2429
        %v2475 = vsel %vm383, %v2473, %v2433
        %v2476 = vsel %vm383, %v2474, %v2437
        %v2477 = vsel %vm428, %v2475, %v2441
        %v2478 = vsel %vm428, %v2476, %v2445
        %v2479 = vsel %vm1657, %v2477, %v2449
        %v2480 = vsel %vm1657, %v2478, %v2453
        %v2481 = vsel %vm1660, %v2479, %v2457
        %v2482 = vsel %vm1660, %v2480, %v2461
        %v2483 = vsel %vm1663, %v2481, %v2465
        %v2484 = vsel %vm1663, %v2482, %v2469
        %v2485 = vlaneseq
        %v2486 = vshrl.u32 %v2485, 7
        %v2487 = vsub.s32 0, %v2486
        %v2488 = vrot.slane %v2404, %v2487
        %v2489 = vadd.f32 %v2367, %v2488
        %v2490 = vadd.f32 %v2368, %v2488
        %v2491 = vadd.f32 %v2489, %v2483
        %v2492 = vadd.f32 %v2490, %v2484
        %v2493 = vmul.f32 %v2491, 0.33333334
        %v2494 = vmul.f32 %v2492, 0.33333334
        %v2495 = vmul.f32 %v1002, %v2493
        %v2496 = vmul.f32 %v1003, %v2494
        %2497 = vst.msk [vmem:[%s339] sm:$0xff] %vm377, %v2495
        %2498 = vst.msk [vmem:[%s339 + $0x8] sm:$0xff] %vm377, %v2496
        %2501 = vrot.lane.b32.xlu0 %v2495, 112
        %v2502 = vpop.permute.xlu0 %2501
        %2503 = vrot.lane.b32.xlu0 %v2496, 112
        %v2504 = vpop.permute.xlu0 %2503
        %s2507 = scalar_lea.vmem %s339, 16 [#allocation5]
        %2508 = vst.msk [vmem:[%s2507] sm:$0xff] %vm377, %v2502
        %2509 = vst.msk [vmem:[%s2507 + $0x8] sm:$0xff] %vm377, %v2504
        %2510 = vrot.lane.b32.xlu0 %v2495, 96
        %v2511 = vpop.permute.xlu0 %2510
        %2512 = vrot.lane.b32.xlu0 %v2496, 96
        %v2513 = vpop.permute.xlu0 %2512
        %s2516 = scalar_lea.vmem %s339, 32 [#allocation5]
        %2517 = vst.msk [vmem:[%s2516] sm:$0xff] %vm377, %v2511
        %2518 = vst.msk [vmem:[%s2516 + $0x8] sm:$0xff] %vm377, %v2513
        %2519 = vrot.lane.b32.xlu0 %v2495, 80
        %v2520 = vpop.permute.xlu0 %2519
        %2521 = vrot.lane.b32.xlu0 %v2496, 80
        %v2522 = vpop.permute.xlu0 %2521
        %s2525 = scalar_lea.vmem %s339, 48 [#allocation5]
        %2526 = vst.msk [vmem:[%s2525] sm:$0xff] %vm377, %v2520
        %2527 = vst.msk [vmem:[%s2525 + $0x8] sm:$0xff] %vm377, %v2522
        %2528 = vrot.lane.b32.xlu0 %v2495, 64
        %v2529 = vpop.permute.xlu0 %2528
        %2530 = vrot.lane.b32.xlu0 %v2496, 64
        %v2531 = vpop.permute.xlu0 %2530
        %s2534 = scalar_lea.vmem %s339, 64 [#allocation5]
        %2535 = vst.msk [vmem:[%s2534] sm:$0xff] %vm377, %v2529
        %2536 = vst.msk [vmem:[%s2534 + $0x8] sm:$0xff] %vm377, %v2531
        %2537 = vrot.lane.b32.xlu0 %v2495, 48
        %v2538 = vpop.permute.xlu0 %2537
        %2539 = vrot.lane.b32.xlu0 %v2496, 48
        %v2540 = vpop.permute.xlu0 %2539
        %s2543 = scalar_lea.vmem %s339, 80 [#allocation5]
        %2544 = vst.msk [vmem:[%s2543] sm:$0xff] %vm377, %v2538
        %2545 = vst.msk [vmem:[%s2543 + $0x8] sm:$0xff] %vm377, %v2540
        %2546 = vrot.lane.b32.xlu0 %v2495, 32
        %v2547 = vpop.permute.xlu0 %2546
        %2548 = vrot.lane.b32.xlu0 %v2496, 32
        %v2549 = vpop.permute.xlu0 %2548
        %s2552 = scalar_lea.vmem %s339, 96 [#allocation5]
        %2553 = vst.msk [vmem:[%s2552] sm:$0xff] %vm377, %v2547
        %2554 = vst.msk [vmem:[%s2552 + $0x8] sm:$0xff] %vm377, %v2549
        %2555 = vrot.lane.b32.xlu0 %v2495, 16
        %v2556 = vpop.permute.xlu0 %2555
        %2557 = vrot.lane.b32.xlu0 %v2496, 16
        %v2558 = vpop.permute.xlu0 %2557
        %s2561 = scalar_lea.vmem %s339, 112 [#allocation5]
        %2562 = vst.msk [vmem:[%s2561] sm:$0xff] %vm377, %v2556
        %2563 = vst.msk [vmem:[%s2561 + $0x8] sm:$0xff] %vm377, %v2558
        %s2564 = sand.u32 %s226, 1
        %s2565 = scalar_lea.sflag [#allocation3], %s2564
        %s2566 = sand.u32 %s226, 1
        %s2567 = smul.addr %s2566, 128
        %s2568 = scalar_lea.vmem [#allocation5], %s2567
        // Predicated region
        $region61: #{conv_block_i_forward.1} parent=55 // pred_check
          %p2569 = pneg %p236
        $region62: #{conv_block_i_forward.1} parent=55 // pred_check_branch
          %2571 = sbr.rel (%p2569) target = $region64
        $region63: #{conv_block_i_forward.1} parent=55 // pred_region
          %s2573 = ssub.s32 2048, 2048
          %2574 = vsyncadd %s2565, %s2573
          %s2575 = smul.addr %s24, 16
          %s2576 = smul.addr %s2575, 128
          %s2577 = scalar_lea.hbm %s9, %s2576
          %s2578 = sshll.u32 %s2568, 4
          %s2579 = int_to_ptr.vmem [resolvable:$true] %s2578
          %2584 = dma.vmem_to_hbm [thread:$0]  %s2579, 2048, %s2577, %s2565, 128, 128, 8
        $region64: #{conv_block_i_forward.1} parent=55 // pred_fallthru
          _
      $region56: #{conv_block_i_forward.1} parent=5 // pred_fallthru
        _
      %p2585 = scmp.le.s32.totalorder 2, %s19
      // Predicated region
      $region65: #{conv_block_i_forward.1} parent=5 // pred_check
        %p2586 = pneg %p2585
      $region66: #{conv_block_i_forward.1} parent=5 // pred_check_branch
        %2588 = sbr.rel (%p2586) target = $region68
      $region67: #{conv_block_i_forward.1} parent=5 // pred_region
        %s2589 = ssub.s32 %s19, 2
        // Predicated region
        $region69: #{conv_block_i_forward.1} parent=67 // pred_check
          %p2590 = pneg %p242
        $region70: #{conv_block_i_forward.1} parent=67 // pred_check_branch
          %2592 = sbr.rel (%p2590) target = $region72
        $region71: #{conv_block_i_forward.1} parent=67 // pred_region
          %s2593 = sand.u32 %s227, 1
          %s2594 = scalar_lea.sflag [#allocation3], %s2593
          %s2595 = sand.u32 %s227, 1
          %s2596 = smul.addr %s2595, 128
          %s2597 = scalar_lea.vmem [#allocation5], %s2596
          %2598 = dma.done %s2594, 2048
        $region72: #{conv_block_i_forward.1} parent=67 // pred_fallthru
          _
      $region68: #{conv_block_i_forward.1} parent=5 // pred_fallthru
        _
    $region6: #{conv_block_i_forward.1} parent=1 // loop_footer
      %s23 = sadd.s32 1, %s19
    $region7: #{conv_block_i_forward.1} parent=1 // loop_footer_branch
      %18 = sbr.rel target = $region3
    $region8: #{conv_block_i_forward.1} parent=1 // loop_exit
      _
    %2599 = vsyncpa [#allocation3], 1
    %s2600 = scalar_lea.sflag [#allocation3], 1
    %2601 = vsyncpa %s2600, 1
    %2602 = vsyncpa [#allocation4], 1
    %s2603 = scalar_lea.sflag [#allocation4], 1
    %2604 = vsyncpa %s2603, 1

</llo_original>
